<compile_context>
chip_gen: v7x
topology: tpu7x:2x2x1
jax: 0.10.0
libtpu: 0.0.40
codegen_flags: <defaults>
</compile_context>

<pallas_src>
import jax
import jax.numpy as jnp
from jax.experimental import pallas as pl
from jax.experimental.pallas import tpu as pltpu

K_IN = 64      # Linear in_features
N_OUT = 10     # Linear out_features


def _net_kernel(x_ref, y_ref, w_ref, b_ref, o_ref):
    # Elementwise (VPU + EUP): sin(x) + cos(y) on a (TB, 64) tile.
    act = jnp.sin(x_ref[...]) + jnp.cos(y_ref[...])
    # MXU: (TB, 64) @ (64, 10) in f32, add broadcast bias, narrow (TB, 10) store.
    o_ref[...] = (
        jnp.dot(act, w_ref[...], preferred_element_type=jnp.float32) + b_ref[...]
    )


def _pick_batch_tile(B, tb):
    """Batch tile: multiple of 8, and >= 2 tiles when possible (v7x megacore)."""
    if B <= 16:
        return B                      # single tile; block dim == full dim is legal
    half = -(-B // 2)                 # cdiv(B, 2) -> at least 2 tiles
    half = ((half + 7) // 8) * 8      # round up to multiple of 8
    TB = min(tb, half)
    TB = max(8, (TB // 8) * 8)        # round down to multiple of 8
    return TB


def net_forward(x, y, weight, bias, *, tb=512):
    """x, y: [B, 64] f32; weight: [10, 64]; bias: [10] -> [B, 10]."""
    B, K = x.shape
    assert K == K_IN

    w_t = weight.T                    # [64, 10] (tiny; fused by XLA, VMEM resident)
    b_row = bias.reshape(1, N_OUT)    # [1, 10]

    TB = _pick_batch_tile(B, tb)
    grid = (pl.cdiv(B, TB),)

    cost = pl.CostEstimate(
        flops=2 * B * K * N_OUT + B * K,                 # matmul + elementwise add
        transcendentals=2 * B * K,                       # sin + cos per element
        bytes_accessed=(2 * B * K + B * N_OUT + K * N_OUT + N_OUT) * 4,
    )

    return pl.pallas_call(
        _net_kernel,
        out_shape=jax.ShapeDtypeStruct((B, N_OUT), jnp.float32),
        grid_spec=pltpu.PrefetchScalarGridSpec(
            num_scalar_prefetch=0,
            grid=grid,
            in_specs=[
                pl.BlockSpec((TB, K), lambda i: (i, 0)),       # x tile
                pl.BlockSpec((TB, K), lambda i: (i, 0)),       # y tile
                pl.BlockSpec((K, N_OUT), lambda i: (0, 0)),    # weight (resident)
                pl.BlockSpec((1, N_OUT), lambda i: (0, 0)),    # bias   (resident)
            ],
            out_specs=pl.BlockSpec((TB, N_OUT), lambda i: (i, 0)),
        ),
        compiler_params=pltpu.CompilerParams(
            dimension_semantics=("parallel",),    # independent batch tiles
        ),
        cost_estimate=cost,
    )(x, y, w_t, b_row)


if __name__ == "__main__":
    key = jax.random.PRNGKey(0)
    kx, ky, kw, kb = jax.random.split(key, 4)

    B = 256  # small, but still 2 pipelined tiles of 128 rows
    x = jax.random.normal(kx, (B, K_IN), dtype=jnp.float32)
    y = jax.random.normal(ky, (B, K_IN), dtype=jnp.float32)

    # Deterministic Linear(64, 10) params: W [10, 64], b [10].
    bound = 1.0 / jnp.sqrt(K_IN)
    weight = jax.random.uniform(
        kw, (N_OUT, K_IN), minval=-bound, maxval=bound, dtype=jnp.float32
    )
    bias = jax.random.uniform(
        kb, (N_OUT,), minval=-bound, maxval=bound, dtype=jnp.float32
    )

    out = net_forward(x, y, weight, bias)
    jax.block_until_ready(out)

    # Plain-JAX reference (same math as the PyTorch module).
    ref = (jnp.sin(x) + jnp.cos(y)) @ weight.T + bias
    assert out.shape == (B, N_OUT)
    assert jnp.allclose(out, ref, atol=1e-5, rtol=1e-5)

    print("KERNEL_OK")
</pallas_src>

<mosaic_0001>
module attributes {stable_mosaic.version = 11 : i64} {
  func.func @_net_kernel(%arg0: i32, %arg1: memref<128x64xf32, #tpu.memory_space<vmem>>, %arg2: memref<128x64xf32, #tpu.memory_space<vmem>>, %arg3: memref<64x10xf32, #tpu.memory_space<vmem>>, %arg4: memref<1x10xf32, #tpu.memory_space<vmem>>, %arg5: memref<128x10xf32, #tpu.memory_space<vmem>>) attributes {dimension_semantics = [#tpu.dimension_semantics<parallel>], iteration_bounds = array<i64: 2>, scalar_prefetch = 0 : i64, scratch_operands = 0 : i64, tpu.core_type = #tpu.core_type<tc>, window_params = [{transform_indices = @transform_0, window_bounds = array<i64: 128, 64>}, {transform_indices = @transform_1, window_bounds = array<i64: 128, 64>}, {pipeline_mode = #tpu.pipeline_mode<synchronous>, transform_indices = @transform_2, window_bounds = array<i64: 64, 10>}, {pipeline_mode = #tpu.pipeline_mode<synchronous>, transform_indices = @transform_3, window_bounds = array<i64: 1, 10>}, {transform_indices = @transform_4, window_bounds = array<i64: 128, 10>}]} {
    %c0 = arith.constant 0 : index
    %c0_0 = arith.constant 0 : index
    %0 = vector.load %arg1[%c0, %c0_0] : memref<128x64xf32, #tpu.memory_space<vmem>>, vector<128x64xf32>
    %1 = math.sin %0 : vector<128x64xf32>
    %c0_1 = arith.constant 0 : index
    %c0_2 = arith.constant 0 : index
    %2 = vector.load %arg2[%c0_1, %c0_2] : memref<128x64xf32, #tpu.memory_space<vmem>>, vector<128x64xf32>
    %3 = math.cos %2 : vector<128x64xf32>
    %4 = arith.addf %1, %3 : vector<128x64xf32>
    %c0_3 = arith.constant 0 : index
    %c0_4 = arith.constant 0 : index
    %5 = vector.load %arg3[%c0_3, %c0_4] : memref<64x10xf32, #tpu.memory_space<vmem>>, vector<64x10xf32>
    %cst = arith.constant dense<0.000000e+00> : vector<128x10xf32>
    %6 = tpu.matmul %4, %5, %cst {dimension_numbers = #tpu.dot_dimension_numbers<[1], [0], [0], [1], [0, 0, 1, 1], [], []>} : vector<128x64xf32>, vector<64x10xf32>, vector<128x10xf32> -> vector<128x10xf32>
    %c0_5 = arith.constant 0 : index
    %c0_6 = arith.constant 0 : index
    %7 = vector.load %arg4[%c0_5, %c0_6] : memref<1x10xf32, #tpu.memory_space<vmem>>, vector<1x10xf32>
    %8 = vector.broadcast %7 : vector<1x10xf32> to vector<128x10xf32>
    %9 = arith.addf %6, %8 : vector<128x10xf32>
    %c0_7 = arith.constant 0 : index
    %c0_8 = arith.constant 0 : index
    %10 = vector.load %arg5[%c0_7, %c0_8] : memref<128x10xf32, #tpu.memory_space<vmem>>, vector<128x10xf32>
    tpu.vector_store %arg5[%c0_7, %c0_8], %9 {strides = array<i32>} : memref<128x10xf32, #tpu.memory_space<vmem>>, vector<128x10xf32>,
    return
  }
  func.func @transform_0(%arg0: i32) -> (i32, i32) {
    %c0_i32 = arith.constant 0 : i32
    %c0_i32_0 = arith.constant 0 : i32
    return %arg0, %c0_i32 : i32, i32
  }
  func.func @transform_1(%arg0: i32) -> (i32, i32) {
    %c0_i32 = arith.constant 0 : i32
    %c0_i32_0 = arith.constant 0 : i32
    return %arg0, %c0_i32 : i32, i32
  }
  func.func @transform_2(%arg0: i32) -> (i32, i32) {
    %c0_i32 = arith.constant 0 : i32
    %c0_i32_0 = arith.constant 0 : i32
    %c0_i32_1 = arith.constant 0 : i32
    return %c0_i32, %c0_i32_0 : i32, i32
  }
  func.func @transform_3(%arg0: i32) -> (i32, i32) {
    %c0_i32 = arith.constant 0 : i32
    %c0_i32_0 = arith.constant 0 : i32
    %c0_i32_1 = arith.constant 0 : i32
    return %c0_i32, %c0_i32_0 : i32, i32
  }
  func.func @transform_4(%arg0: i32) -> (i32, i32) {
    %c0_i32 = arith.constant 0 : i32
    %c0_i32_0 = arith.constant 0 : i32
    return %arg0, %c0_i32 : i32, i32
  }
}

</mosaic_0001>

<llo_original>
// kernel: tpu_custom_call.1
$region0: #{tpu_custom_call.1}
  #allocation0 [shape = 'u32[]', space=smem, size = 0x4, offset = 0x4, fixed_abs, tag = 'smem constant byte address 0x4 - core index']
  #allocation1 [shape = 'u32[144,128]{1,0:T(1,128)}', space=vmem, size = 0x12000, scoped, tag = 'internal scratch']
  %s0 = inlined_call_operand.vmem [shape: f32[256,64], index: 0, kind: input, shape index: {}]
  %s1 = inlined_call_operand.vmem [shape: f32[256,64], index: 1, kind: input, shape index: {}]
  %s2 = inlined_call_operand.vmem [shape: f32[64,10], index: 2, kind: input, shape index: {}]
  %s3 = inlined_call_operand.vmem [shape: f32[1,10], index: 3, kind: input, shape index: {}]
  %s4 = inlined_call_operand.vmem [shape: f32[256,10], index: 4, kind: output, shape index: {}]
  %s5 = sld [smem:[#allocation0]]
  $region49: #{tpu_custom_call.1} parent=0
    _
  %s7 = ssub.s32 1, %s5
  %s8 = scalar_select 0, %s7, %s5
  loop: start=0, step=1, limit=4
  $region2: #{tpu_custom_call.1} parent=0 // loop_pre_header
    _
  $region3: #{tpu_custom_call.1} parent=0 // loop_header
    %s10 = sphi 0, %s14
    %p11 = scmp.ge.s32.totalorder %s10, 4
    %s20 = sphi 0, %s22
    %s23 = sphi 0, %s20
    %s24 = sphi 0, %s23
    %s40 = sphi 0, %s24
    %s46 = sphi 0, %s48
    %s49 = sphi 0, %s46
    %s50 = sphi 0, %s49
    %s66 = sphi 0, %s50
    %s70 = sphi 0, %s70
    %s72 = sphi 0, %s70
    %s73 = sphi 0, %s72
    %s87 = sphi 0, %s73
    %s91 = sphi 0, %s91
    %s93 = sphi 0, %s91
    %s94 = sphi 0, %s93
    %s108 = sphi 0, %s94
    %s114 = sphi 0, %s116
    %s117 = sphi 0, %s114
    %s118 = sphi 0, %s117
    %s134 = sphi 0, %s118
  $region4: #{tpu_custom_call.1} parent=0 // loop_header_branch
    %13 = sbr.rel (%p11) target = $region8
  $region5: #{tpu_custom_call.1} parent=0 // loop_body
    %s15 = ssub.s32 %s10, 1
    %s16 = ssub.s32 %s10, 2
    %s17 = sadd.s32 %s10, 1
    %s18 = ssub.s32 %s10, %s17
    %p19 = scmp.eq.s32.totalorder %s18, 0
    %s21 = sadd.s32 %s20, 1
    %s22 = scalar_select %p19, %s20, %s21
    %p25 = pneg %p19
    %p26 = scmp.eq.s32.totalorder %s10, 1
    %p27 = por %p25, %p26
    %p28 = scmp.ne.s32.totalorder %s20, %s23
    %p29 = scmp.eq.s32.totalorder %s10, 0
    %p30 = por %p28, %p29
    %p31 = scmp.ne.s32.totalorder %s20, %s23
    %p32 = scmp.eq.s32.totalorder %s15, 1
    %p33 = por %p31, %p32
    %p34 = scmp.ne.s32.totalorder %s23, %s24
    %p35 = scmp.eq.s32.totalorder %s15, 0
    %p36 = por %p34, %p35
    %p37 = scmp.ne.s32.totalorder %s23, %s24
    %p38 = scmp.eq.s32.totalorder %s16, 1
    %p39 = por %p37, %p38
    %p41 = scmp.ne.s32.totalorder %s24, %s40
    %p42 = scmp.eq.s32.totalorder %s16, 0
    %p43 = por %p41, %p42
    %s44 = ssub.s32 %s10, %s17
    %p45 = scmp.eq.s32.totalorder %s44, 0
    %s47 = sadd.s32 %s46, 1
    %s48 = scalar_select %p45, %s46, %s47
    %p51 = pneg %p45
    %p52 = scmp.eq.s32.totalorder %s10, 1
    %p53 = por %p51, %p52
    %p54 = scmp.ne.s32.totalorder %s46, %s49
    %p55 = scmp.eq.s32.totalorder %s10, 0
    %p56 = por %p54, %p55
    %p57 = scmp.ne.s32.totalorder %s46, %s49
    %p58 = scmp.eq.s32.totalorder %s15, 1
    %p59 = por %p57, %p58
    %p60 = scmp.ne.s32.totalorder %s49, %s50
    %p61 = scmp.eq.s32.totalorder %s15, 0
    %p62 = por %p60, %p61
    %p63 = scmp.ne.s32.totalorder %s49, %s50
    %p64 = scmp.eq.s32.totalorder %s16, 1
    %p65 = por %p63, %p64
    %p67 = scmp.ne.s32.totalorder %s50, %s66
    %p68 = scmp.eq.s32.totalorder %s16, 0
    %p69 = por %p67, %p68
    %s71 = sadd.s32 %s70, 1
    %p74 = scmp.eq.s32.totalorder %s10, 1
    %p75 = scmp.ne.s32.totalorder %s70, %s72
    %p76 = scmp.eq.s32.totalorder %s10, 0
    %p77 = por %p75, %p76
    %p78 = scmp.ne.s32.totalorder %s70, %s72
    %p79 = scmp.eq.s32.totalorder %s15, 1
    %p80 = por %p78, %p79
    %p81 = scmp.ne.s32.totalorder %s72, %s73
    %p82 = scmp.eq.s32.totalorder %s15, 0
    %p83 = por %p81, %p82
    %p84 = scmp.ne.s32.totalorder %s72, %s73
    %p85 = scmp.eq.s32.totalorder %s16, 1
    %p86 = por %p84, %p85
    %p88 = scmp.ne.s32.totalorder %s73, %s87
    %p89 = scmp.eq.s32.totalorder %s16, 0
    %p90 = por %p88, %p89
    %s92 = sadd.s32 %s91, 1
    %p95 = scmp.eq.s32.totalorder %s10, 1
    %p96 = scmp.ne.s32.totalorder %s91, %s93
    %p97 = scmp.eq.s32.totalorder %s10, 0
    %p98 = por %p96, %p97
    %p99 = scmp.ne.s32.totalorder %s91, %s93
    %p100 = scmp.eq.s32.totalorder %s15, 1
    %p101 = por %p99, %p100
    %p102 = scmp.ne.s32.totalorder %s93, %s94
    %p103 = scmp.eq.s32.totalorder %s15, 0
    %p104 = por %p102, %p103
    %p105 = scmp.ne.s32.totalorder %s93, %s94
    %p106 = scmp.eq.s32.totalorder %s16, 1
    %p107 = por %p105, %p106
    %p109 = scmp.ne.s32.totalorder %s94, %s108
    %p110 = scmp.eq.s32.totalorder %s16, 0
    %p111 = por %p109, %p110
    %s112 = ssub.s32 %s10, %s17
    %p113 = scmp.eq.s32.totalorder %s112, 0
    %s115 = sadd.s32 %s114, 1
    %s116 = scalar_select %p113, %s114, %s115
    %p119 = pneg %p113
    %p120 = scmp.eq.s32.totalorder %s10, 1
    %p121 = por %p119, %p120
    %p122 = scmp.ne.s32.totalorder %s114, %s117
    %p123 = scmp.eq.s32.totalorder %s10, 0
    %p124 = por %p122, %p123
    %p125 = scmp.ne.s32.totalorder %s114, %s117
    %p126 = scmp.eq.s32.totalorder %s15, 1
    %p127 = por %p125, %p126
    %p128 = scmp.ne.s32.totalorder %s117, %s118
    %p129 = scmp.eq.s32.totalorder %s15, 0
    %p130 = por %p128, %p129
    %p131 = scmp.ne.s32.totalorder %s117, %s118
    %p132 = scmp.eq.s32.totalorder %s16, 1
    %p133 = por %p131, %p132
    %p135 = scmp.ne.s32.totalorder %s118, %s134
    %p136 = scmp.eq.s32.totalorder %s16, 0
    %p137 = por %p135, %p136
    %p138 = scmp.le.s32.totalorder 1, %s10
    %p139 = scmp.lt.s32.totalorder %s10, 3
    %p140 = pnand %p138, %p139
    %p141 = pneg %p140
    // Predicated region
    $region9: #{tpu_custom_call.1} parent=5 // pred_check
      _
    $region10: #{tpu_custom_call.1} parent=5 // pred_check_branch
      %143 = sbr.rel (%p140) target = $region12
    $region11: #{tpu_custom_call.1} parent=5 // pred_region
      %s144 = ssub.s32 %s10, 1
      // Predicated region
      $region13: #{tpu_custom_call.1} parent=11 // pred_check
        %p145 = pneg %p83
      $region14: #{tpu_custom_call.1} parent=11 // pred_check_branch
        %147 = sbr.rel (%p145) target = $region16
      $region15: #{tpu_custom_call.1} parent=11 // pred_region
        _
      $region16: #{tpu_custom_call.1} parent=11 // pred_fallthru
        _
      // Predicated region
      $region17: #{tpu_custom_call.1} parent=11 // pred_check
        %p148 = pneg %p104
      $region18: #{tpu_custom_call.1} parent=11 // pred_check_branch
        %150 = sbr.rel (%p148) target = $region20
      $region19: #{tpu_custom_call.1} parent=11 // pred_region
        _
      $region20: #{tpu_custom_call.1} parent=11 // pred_fallthru
        _
    $region12: #{tpu_custom_call.1} parent=5 // pred_fallthru
      _
    %p151 = scmp.lt.s32.totalorder %s10, 2
    // Predicated region
    $region21: #{tpu_custom_call.1} parent=5 // pred_check
      %p152 = pneg %p151
    $region22: #{tpu_custom_call.1} parent=5 // pred_check_branch
      %154 = sbr.rel (%p152) target = $region24
    $region23: #{tpu_custom_call.1} parent=5 // pred_region
      // Predicated region
      $region25: #{tpu_custom_call.1} parent=23 // pred_check
        %p155 = pneg %p30
      $region26: #{tpu_custom_call.1} parent=23 // pred_check_branch
        %157 = sbr.rel (%p155) target = $region28
      $region27: #{tpu_custom_call.1} parent=23 // pred_region
        %s158 = smul.u32 16, %s10
        %p159 = scmp.lt.s32.totalorder %s158, 31
        %s160 = scalar_select %p159, %s158, 31
        %s161 = smul.addr %s160, 8
        %s162 = scalar_lea.vmem %s0, %s161
        %s163 = smul.u32 16, %s10
      $region28: #{tpu_custom_call.1} parent=23 // pred_fallthru
        _
      // Predicated region
      $region29: #{tpu_custom_call.1} parent=23 // pred_check
        %p164 = pneg %p56
      $region30: #{tpu_custom_call.1} parent=23 // pred_check_branch
        %166 = sbr.rel (%p164) target = $region32
      $region31: #{tpu_custom_call.1} parent=23 // pred_region
        %s167 = smul.u32 16, %s10
        %p168 = scmp.lt.s32.totalorder %s167, 31
        %s169 = scalar_select %p168, %s167, 31
        %s170 = smul.addr %s169, 8
        %s171 = scalar_lea.vmem %s1, %s170
        %s172 = smul.u32 16, %s10
      $region32: #{tpu_custom_call.1} parent=23 // pred_fallthru
        _
    $region24: #{tpu_custom_call.1} parent=5 // pred_fallthru
      _
    %p173 = scmp.le.s32.totalorder 1, %s10
    %p174 = scmp.lt.s32.totalorder %s10, 3
    %p175 = pnand %p173, %p174
    %p176 = pneg %p175
    // Predicated region
    $region33: #{tpu_custom_call.1} parent=5 // pred_check
      _
    $region34: #{tpu_custom_call.1} parent=5 // pred_check_branch
      %178 = sbr.rel (%p175) target = $region36
    $region35: #{tpu_custom_call.1} parent=5 // pred_region
      %s179 = ssub.s32 %s10, 1
      %s180 = smul.u32 16, %s15
      %p181 = scmp.lt.s32.totalorder %s180, 31
      %s182 = scalar_select %p181, %s180, 31
      %s183 = smul.addr %s182, 8
      %s184 = scalar_lea.vmem %s0, %s183
      %p185 = pneg %p36
      %p186 = pneg %p33
      %s187 = smul.u32 16, %s15
      %p188 = scmp.lt.s32.totalorder %s187, 31
      %s189 = scalar_select %p188, %s187, 31
      %s190 = smul.addr %s189, 8
      %s191 = scalar_lea.vmem %s1, %s190
      %p192 = pneg %p62
      %p193 = pneg %p59
      %p194 = pneg %p83
      %p195 = pneg %p80
      %p196 = pneg %p104
      %p197 = pneg %p101
      %p198 = pneg %p130
      %p199 = pneg %p127
      %s200 = smul.u32 16, %s15
      %p201 = scmp.lt.s32.totalorder %s200, 31
      %s202 = scalar_select %p201, %s200, 31
      %s203 = smul.addr %s202, 8
      %s204 = scalar_lea.vmem %s4, %s203
      %s205 = smul.u32 16, %s15
      %p206 = scmp.lt.s32.totalorder %s205, 31
      %s207 = scalar_select %p206, %s205, 31
      %s208 = smul.addr %s207, 8
      %s209 = scalar_lea.vmem %s0, %s208
      %s210 = smul.u32 16, %s15
      %s211 = smul.u32 16, %s15
      %p212 = scmp.lt.s32.totalorder %s211, 31
      %s213 = scalar_select %p212, %s211, 31
      %s214 = smul.addr %s213, 8
      %s215 = scalar_lea.vmem %s1, %s214
      %s216 = smul.u32 16, %s15
      %s217 = smul.u32 16, %s15
      %p218 = scmp.lt.s32.totalorder %s217, 31
      %s219 = scalar_select %p218, %s217, 31
      %s220 = smul.addr %s219, 8
      %s221 = scalar_lea.vmem %s4, %s220
      %s222 = smul.u32 16, %s15
      %v223 = vld [vmem:[%s209] sm:$0xff]
      %v224 = vld [vmem:[%s209 + $0x8] sm:$0xff]
      %v225 = vld [vmem:[%s209 + $0x10] sm:$0xff]
      %v226 = vld [vmem:[%s209 + $0x18] sm:$0xff]
      %v227 = vld [vmem:[%s209 + $0x20] sm:$0xff]
      %v228 = vld [vmem:[%s209 + $0x28] sm:$0xff]
      %v229 = vld [vmem:[%s209 + $0x30] sm:$0xff]
      %v230 = vld [vmem:[%s209 + $0x38] sm:$0xff]
      %v231 = vld [vmem:[%s209 + $0x40] sm:$0xff]
      %v232 = vld [vmem:[%s209 + $0x48] sm:$0xff]
      %v233 = vld [vmem:[%s209 + $0x50] sm:$0xff]
      %v234 = vld [vmem:[%s209 + $0x58] sm:$0xff]
      %v235 = vld [vmem:[%s209 + $0x60] sm:$0xff]
      %v236 = vld [vmem:[%s209 + $0x68] sm:$0xff]
      %v237 = vld [vmem:[%s209 + $0x70] sm:$0xff]
      %v238 = vld [vmem:[%s209 + $0x78] sm:$0xff]
      %v239 = vand.u32 2147483647, %v223
      %vm240 = vcmp.le.f32.partialorder %v239, 0.7853982
      %vm241 = vcmp.lt.s32.totalorder %v223, 0
      %v242 = vand.u32 %v223, 2139095040
      %v243 = vshrl.u32 %v242, 23
      %v244 = vsub.s32 %v243, 127
      %v245 = vand.u32 2147483647, %v223
      %v246 = vand.u32 %v245, 8388607
      %v247 = vor.u32 %v246, 8388608
      %v248 = vsub.s32 0, %v247
      %v249 = vadd.s32 %v244, 1
      %vm250 = vcmp.gt.s32.totalorder %v249, 0
      %v251 = vsel %vm250, %v249, 0
      %v252 = vshrl.u32 %v251, 5
      %v253 = vand.u32 %v251, 31
      %v254 = vsub.s32 32, %v253
      %v255 = vshrl.u32 683565275, %v254
      %v256 = vshll.u32 683565275, %v253
      %v257 = vshrl.u32 2475754826, %v254
      %v258 = vor.u32 %v256, %v257
      %v259 = vshll.u32 2475754826, %v253
      %v260 = vshrl.u32 2131351028, %v254
      %v261 = vor.u32 %v259, %v260
      %v262 = vshll.u32 2131351028, %v253
      %v263 = vshrl.u32 2102212464, %v254
      %v264 = vor.u32 %v262, %v263
      %v265 = vshll.u32 2102212464, %v253
      %v266 = vshrl.u32 920167782, %v254
      %v267 = vor.u32 %v265, %v266
      %v268 = vshll.u32 920167782, %v253
      %v269 = vshrl.u32 1326507024, %v254
      %v270 = vor.u32 %v268, %v269
      %vm271 = vcmp.lt.s32.totalorder %v252, 1
      %vm272 = vcmp.lt.s32.totalorder %v252, 2
      %vm273 = vcmp.lt.s32.totalorder %v252, 3
      %vm274 = vcmp.lt.s32.totalorder %v252, 4
      %v275 = vsel %vm271, %v255, %v258
      %v276 = vsel %vm274, %v264, 2102212464
      %v277 = vsel %vm273, %v261, %v276
      %v278 = vsel %vm272, %v275, %v277
      %v279 = vsel %vm271, %v258, %v261
      %v280 = vsel %vm274, %v267, 920167782
      %v281 = vsel %vm273, %v264, %v280
      %v282 = vsel %vm272, %v279, %v281
      %v283 = vsel %vm271, %v261, %v264
      %v284 = vsel %vm274, %v270, 1326507024
      %v285 = vsel %vm273, %v267, %v284
      %v286 = vsel %vm272, %v283, %v285
      %v287 = vshll.u32 %v247, 8
      %v288 = vmul.u32.u64.compose %v287, %v286
      %v289 = vextract.low.u32 %v288
      %v290 = vextract.high.u32 %v288
      %v291 = vmul.u32.u64.compose %v287, %v282
      %v292 = vextract.low.u32 %v291
      %v293 = vextract.high.u32 %v291
      %v294 = vmul.u32 %v287, %v278
      %v295 = vadd.s32 %v290, %v292
      %vm296 = vc.u32 %v290, %v292
      %v297 = vadd.s32 %v293, 1
      %v298 = vsel %vm296, %v297, %v293
      %v299 = vadd.s32 %v294, %v298
      %v300 = vadd.s32 %v299, 536870912
      %v301 = vshrl.u32 %v300, 30
      %v302 = vshll.u32 %v301, 30
      %v303 = vsub.s32 %v299, %v302
      %vm304 = vcmp.lt.s32.totalorder %v303, 0
      %v305 = vsub.s32 0, %v303
      %v306 = vsel %vm304, %v305, %v303
      %v307 = vclz %v306
      %v308 = vsub.s32 %v307, 2
      %vm309 = vcmp.gt.s32.totalorder 0, %v308
      %v310 = vsel %vm309, 0, %v308
      %v311 = vsub.s32 32, %v310
      %v312 = vshll.u32 %v303, %v310
      %v313 = vshrl.u32 %v295, %v311
      %v314 = vor.u32 %v312, %v313
      %v315 = vsub.s32 4294967266, %v310
      %v316 = vadd.s32 %v315, 127
      %v317 = vshll.u32 %v316, 23
      %v318 = vor.u32 4788187, %v317
      %v319 = vand.u32 2147483647, %v318
      %v321 = vcvt.s32.f32 %v314
      %v322 = vmul.f32 %v321, %v319
      %v323 = vxor.u32 %v322, 2147483648
      %v324 = vsel %vm241, %v323, %v322
      %v325 = vsub.s32 4, %v301
      %v326 = vsel %vm241, %v325, %v301
      %v327 = vsel %vm240, %v223, %v324
      %v328 = vsel %vm240, 0, %v326
      %v329 = vcosq.f32.pop %v327
      %v330 = vsinq.f32.pop %v327
      %vm331 = vweird.f32 %v223
      %v332 = vadd.s32 %v328, 3
      %v333 = vand.u32 %v332, 3
      %vm334 = vcmp.lt.s32.totalorder %v333, 2
      %vm335 = vcmp.eq.s32.totalorder %v333, 0
      %v336 = vxor.u32 %v330, 2147483648
      %v337 = vsel %vm335, %v329, %v336
      %vm338 = vcmp.eq.s32.totalorder %v333, 2
      %v339 = vxor.u32 %v329, 2147483648
      %v340 = vsel %vm338, %v339, %v330
      %v341 = vsel %vm334, %v337, %v340
      %v342 = vsel %vm331, nan, %v341
      %v343 = vand.u32 2147483647, %v224
      %vm344 = vcmp.le.f32.partialorder %v343, 0.7853982
      %vm345 = vcmp.lt.s32.totalorder %v224, 0
      %v346 = vand.u32 %v224, 2139095040
      %v347 = vshrl.u32 %v346, 23
      %v348 = vsub.s32 %v347, 127
      %v349 = vand.u32 2147483647, %v224
      %v350 = vand.u32 %v349, 8388607
      %v351 = vor.u32 %v350, 8388608
      %v352 = vsub.s32 0, %v351
      %v353 = vadd.s32 %v348, 1
      %vm354 = vcmp.gt.s32.totalorder %v353, 0
      %v355 = vsel %vm354, %v353, 0
      %v356 = vshrl.u32 %v355, 5
      %v357 = vand.u32 %v355, 31
      %v358 = vsub.s32 32, %v357
      %v359 = vshrl.u32 683565275, %v358
      %v360 = vshll.u32 683565275, %v357
      %v361 = vshrl.u32 2475754826, %v358
      %v362 = vor.u32 %v360, %v361
      %v363 = vshll.u32 2475754826, %v357
      %v364 = vshrl.u32 2131351028, %v358
      %v365 = vor.u32 %v363, %v364
      %v366 = vshll.u32 2131351028, %v357
      %v367 = vshrl.u32 2102212464, %v358
      %v368 = vor.u32 %v366, %v367
      %v369 = vshll.u32 2102212464, %v357
      %v370 = vshrl.u32 920167782, %v358
      %v371 = vor.u32 %v369, %v370
      %v372 = vshll.u32 920167782, %v357
      %v373 = vshrl.u32 1326507024, %v358
      %v374 = vor.u32 %v372, %v373
      %vm375 = vcmp.lt.s32.totalorder %v356, 1
      %vm376 = vcmp.lt.s32.totalorder %v356, 2
      %vm377 = vcmp.lt.s32.totalorder %v356, 3
      %vm378 = vcmp.lt.s32.totalorder %v356, 4
      %v379 = vsel %vm375, %v359, %v362
      %v380 = vsel %vm378, %v368, 2102212464
      %v381 = vsel %vm377, %v365, %v380
      %v382 = vsel %vm376, %v379, %v381
      %v383 = vsel %vm375, %v362, %v365
      %v384 = vsel %vm378, %v371, 920167782
      %v385 = vsel %vm377, %v368, %v384
      %v386 = vsel %vm376, %v383, %v385
      %v387 = vsel %vm375, %v365, %v368
      %v388 = vsel %vm378, %v374, 1326507024
      %v389 = vsel %vm377, %v371, %v388
      %v390 = vsel %vm376, %v387, %v389
      %v391 = vshll.u32 %v351, 8
      %v392 = vmul.u32.u64.compose %v391, %v390
      %v393 = vextract.low.u32 %v392
      %v394 = vextract.high.u32 %v392
      %v395 = vmul.u32.u64.compose %v391, %v386
      %v396 = vextract.low.u32 %v395
      %v397 = vextract.high.u32 %v395
      %v398 = vmul.u32 %v391, %v382
      %v399 = vadd.s32 %v394, %v396
      %vm400 = vc.u32 %v394, %v396
      %v401 = vadd.s32 %v397, 1
      %v402 = vsel %vm400, %v401, %v397
      %v403 = vadd.s32 %v398, %v402
      %v404 = vadd.s32 %v403, 536870912
      %v405 = vshrl.u32 %v404, 30
      %v406 = vshll.u32 %v405, 30
      %v407 = vsub.s32 %v403, %v406
      %vm408 = vcmp.lt.s32.totalorder %v407, 0
      %v409 = vsub.s32 0, %v407
      %v410 = vsel %vm408, %v409, %v407
      %v411 = vclz %v410
      %v412 = vsub.s32 %v411, 2
      %vm413 = vcmp.gt.s32.totalorder 0, %v412
      %v414 = vsel %vm413, 0, %v412
      %v415 = vsub.s32 32, %v414
      %v416 = vshll.u32 %v407, %v414
      %v417 = vshrl.u32 %v399, %v415
      %v418 = vor.u32 %v416, %v417
      %v419 = vsub.s32 4294967266, %v414
      %v420 = vadd.s32 %v419, 127
      %v421 = vshll.u32 %v420, 23
      %v422 = vor.u32 4788187, %v421
      %v423 = vand.u32 2147483647, %v422
      %v425 = vcvt.s32.f32 %v418
      %v426 = vmul.f32 %v425, %v423
      %v427 = vxor.u32 %v426, 2147483648
      %v428 = vsel %vm345, %v427, %v426
      %v429 = vsub.s32 4, %v405
      %v430 = vsel %vm345, %v429, %v405
      %v431 = vsel %vm344, %v224, %v428
      %v432 = vsel %vm344, 0, %v430
      %v433 = vcosq.f32.pop %v431
      %v434 = vsinq.f32.pop %v431
      %vm435 = vweird.f32 %v224
      %v436 = vadd.s32 %v432, 3
      %v437 = vand.u32 %v436, 3
      %vm438 = vcmp.lt.s32.totalorder %v437, 2
      %vm439 = vcmp.eq.s32.totalorder %v437, 0
      %v440 = vxor.u32 %v434, 2147483648
      %v441 = vsel %vm439, %v433, %v440
      %vm442 = vcmp.eq.s32.totalorder %v437, 2
      %v443 = vxor.u32 %v433, 2147483648
      %v444 = vsel %vm442, %v443, %v434
      %v445 = vsel %vm438, %v441, %v444
      %v446 = vsel %vm435, nan, %v445
      %v447 = vand.u32 2147483647, %v225
      %vm448 = vcmp.le.f32.partialorder %v447, 0.7853982
      %vm449 = vcmp.lt.s32.totalorder %v225, 0
      %v450 = vand.u32 %v225, 2139095040
      %v451 = vshrl.u32 %v450, 23
      %v452 = vsub.s32 %v451, 127
      %v453 = vand.u32 2147483647, %v225
      %v454 = vand.u32 %v453, 8388607
      %v455 = vor.u32 %v454, 8388608
      %v456 = vsub.s32 0, %v455
      %v457 = vadd.s32 %v452, 1
      %vm458 = vcmp.gt.s32.totalorder %v457, 0
      %v459 = vsel %vm458, %v457, 0
      %v460 = vshrl.u32 %v459, 5
      %v461 = vand.u32 %v459, 31
      %v462 = vsub.s32 32, %v461
      %v463 = vshrl.u32 683565275, %v462
      %v464 = vshll.u32 683565275, %v461
      %v465 = vshrl.u32 2475754826, %v462
      %v466 = vor.u32 %v464, %v465
      %v467 = vshll.u32 2475754826, %v461
      %v468 = vshrl.u32 2131351028, %v462
      %v469 = vor.u32 %v467, %v468
      %v470 = vshll.u32 2131351028, %v461
      %v471 = vshrl.u32 2102212464, %v462
      %v472 = vor.u32 %v470, %v471
      %v473 = vshll.u32 2102212464, %v461
      %v474 = vshrl.u32 920167782, %v462
      %v475 = vor.u32 %v473, %v474
      %v476 = vshll.u32 920167782, %v461
      %v477 = vshrl.u32 1326507024, %v462
      %v478 = vor.u32 %v476, %v477
      %vm479 = vcmp.lt.s32.totalorder %v460, 1
      %vm480 = vcmp.lt.s32.totalorder %v460, 2
      %vm481 = vcmp.lt.s32.totalorder %v460, 3
      %vm482 = vcmp.lt.s32.totalorder %v460, 4
      %v483 = vsel %vm479, %v463, %v466
      %v484 = vsel %vm482, %v472, 2102212464
      %v485 = vsel %vm481, %v469, %v484
      %v486 = vsel %vm480, %v483, %v485
      %v487 = vsel %vm479, %v466, %v469
      %v488 = vsel %vm482, %v475, 920167782
      %v489 = vsel %vm481, %v472, %v488
      %v490 = vsel %vm480, %v487, %v489
      %v491 = vsel %vm479, %v469, %v472
      %v492 = vsel %vm482, %v478, 1326507024
      %v493 = vsel %vm481, %v475, %v492
      %v494 = vsel %vm480, %v491, %v493
      %v495 = vshll.u32 %v455, 8
      %v496 = vmul.u32.u64.compose %v495, %v494
      %v497 = vextract.low.u32 %v496
      %v498 = vextract.high.u32 %v496
      %v499 = vmul.u32.u64.compose %v495, %v490
      %v500 = vextract.low.u32 %v499
      %v501 = vextract.high.u32 %v499
      %v502 = vmul.u32 %v495, %v486
      %v503 = vadd.s32 %v498, %v500
      %vm504 = vc.u32 %v498, %v500
      %v505 = vadd.s32 %v501, 1
      %v506 = vsel %vm504, %v505, %v501
      %v507 = vadd.s32 %v502, %v506
      %v508 = vadd.s32 %v507, 536870912
      %v509 = vshrl.u32 %v508, 30
      %v510 = vshll.u32 %v509, 30
      %v511 = vsub.s32 %v507, %v510
      %vm512 = vcmp.lt.s32.totalorder %v511, 0
      %v513 = vsub.s32 0, %v511
      %v514 = vsel %vm512, %v513, %v511
      %v515 = vclz %v514
      %v516 = vsub.s32 %v515, 2
      %vm517 = vcmp.gt.s32.totalorder 0, %v516
      %v518 = vsel %vm517, 0, %v516
      %v519 = vsub.s32 32, %v518
      %v520 = vshll.u32 %v511, %v518
      %v521 = vshrl.u32 %v503, %v519
      %v522 = vor.u32 %v520, %v521
      %v523 = vsub.s32 4294967266, %v518
      %v524 = vadd.s32 %v523, 127
      %v525 = vshll.u32 %v524, 23
      %v526 = vor.u32 4788187, %v525
      %v527 = vand.u32 2147483647, %v526
      %v529 = vcvt.s32.f32 %v522
      %v530 = vmul.f32 %v529, %v527
      %v531 = vxor.u32 %v530, 2147483648
      %v532 = vsel %vm449, %v531, %v530
      %v533 = vsub.s32 4, %v509
      %v534 = vsel %vm449, %v533, %v509
      %v535 = vsel %vm448, %v225, %v532
      %v536 = vsel %vm448, 0, %v534
      %v537 = vcosq.f32.pop %v535
      %v538 = vsinq.f32.pop %v535
      %vm539 = vweird.f32 %v225
      %v540 = vadd.s32 %v536, 3
      %v541 = vand.u32 %v540, 3
      %vm542 = vcmp.lt.s32.totalorder %v541, 2
      %vm543 = vcmp.eq.s32.totalorder %v541, 0
      %v544 = vxor.u32 %v538, 2147483648
      %v545 = vsel %vm543, %v537, %v544
      %vm546 = vcmp.eq.s32.totalorder %v541, 2
      %v547 = vxor.u32 %v537, 2147483648
      %v548 = vsel %vm546, %v547, %v538
      %v549 = vsel %vm542, %v545, %v548
      %v550 = vsel %vm539, nan, %v549
      %v551 = vand.u32 2147483647, %v226
      %vm552 = vcmp.le.f32.partialorder %v551, 0.7853982
      %vm553 = vcmp.lt.s32.totalorder %v226, 0
      %v554 = vand.u32 %v226, 2139095040
      %v555 = vshrl.u32 %v554, 23
      %v556 = vsub.s32 %v555, 127
      %v557 = vand.u32 2147483647, %v226
      %v558 = vand.u32 %v557, 8388607
      %v559 = vor.u32 %v558, 8388608
      %v560 = vsub.s32 0, %v559
      %v561 = vadd.s32 %v556, 1
      %vm562 = vcmp.gt.s32.totalorder %v561, 0
      %v563 = vsel %vm562, %v561, 0
      %v564 = vshrl.u32 %v563, 5
      %v565 = vand.u32 %v563, 31
      %v566 = vsub.s32 32, %v565
      %v567 = vshrl.u32 683565275, %v566
      %v568 = vshll.u32 683565275, %v565
      %v569 = vshrl.u32 2475754826, %v566
      %v570 = vor.u32 %v568, %v569
      %v571 = vshll.u32 2475754826, %v565
      %v572 = vshrl.u32 2131351028, %v566
      %v573 = vor.u32 %v571, %v572
      %v574 = vshll.u32 2131351028, %v565
      %v575 = vshrl.u32 2102212464, %v566
      %v576 = vor.u32 %v574, %v575
      %v577 = vshll.u32 2102212464, %v565
      %v578 = vshrl.u32 920167782, %v566
      %v579 = vor.u32 %v577, %v578
      %v580 = vshll.u32 920167782, %v565
      %v581 = vshrl.u32 1326507024, %v566
      %v582 = vor.u32 %v580, %v581
      %vm583 = vcmp.lt.s32.totalorder %v564, 1
      %vm584 = vcmp.lt.s32.totalorder %v564, 2
      %vm585 = vcmp.lt.s32.totalorder %v564, 3
      %vm586 = vcmp.lt.s32.totalorder %v564, 4
      %v587 = vsel %vm583, %v567, %v570
      %v588 = vsel %vm586, %v576, 2102212464
      %v589 = vsel %vm585, %v573, %v588
      %v590 = vsel %vm584, %v587, %v589
      %v591 = vsel %vm583, %v570, %v573
      %v592 = vsel %vm586, %v579, 920167782
      %v593 = vsel %vm585, %v576, %v592
      %v594 = vsel %vm584, %v591, %v593
      %v595 = vsel %vm583, %v573, %v576
      %v596 = vsel %vm586, %v582, 1326507024
      %v597 = vsel %vm585, %v579, %v596
      %v598 = vsel %vm584, %v595, %v597
      %v599 = vshll.u32 %v559, 8
      %v600 = vmul.u32.u64.compose %v599, %v598
      %v601 = vextract.low.u32 %v600
      %v602 = vextract.high.u32 %v600
      %v603 = vmul.u32.u64.compose %v599, %v594
      %v604 = vextract.low.u32 %v603
      %v605 = vextract.high.u32 %v603
      %v606 = vmul.u32 %v599, %v590
      %v607 = vadd.s32 %v602, %v604
      %vm608 = vc.u32 %v602, %v604
      %v609 = vadd.s32 %v605, 1
      %v610 = vsel %vm608, %v609, %v605
      %v611 = vadd.s32 %v606, %v610
      %v612 = vadd.s32 %v611, 536870912
      %v613 = vshrl.u32 %v612, 30
      %v614 = vshll.u32 %v613, 30
      %v615 = vsub.s32 %v611, %v614
      %vm616 = vcmp.lt.s32.totalorder %v615, 0
      %v617 = vsub.s32 0, %v615
      %v618 = vsel %vm616, %v617, %v615
      %v619 = vclz %v618
      %v620 = vsub.s32 %v619, 2
      %vm621 = vcmp.gt.s32.totalorder 0, %v620
      %v622 = vsel %vm621, 0, %v620
      %v623 = vsub.s32 32, %v622
      %v624 = vshll.u32 %v615, %v622
      %v625 = vshrl.u32 %v607, %v623
      %v626 = vor.u32 %v624, %v625
      %v627 = vsub.s32 4294967266, %v622
      %v628 = vadd.s32 %v627, 127
      %v629 = vshll.u32 %v628, 23
      %v630 = vor.u32 4788187, %v629
      %v631 = vand.u32 2147483647, %v630
      %v633 = vcvt.s32.f32 %v626
      %v634 = vmul.f32 %v633, %v631
      %v635 = vxor.u32 %v634, 2147483648
      %v636 = vsel %vm553, %v635, %v634
      %v637 = vsub.s32 4, %v613
      %v638 = vsel %vm553, %v637, %v613
      %v639 = vsel %vm552, %v226, %v636
      %v640 = vsel %vm552, 0, %v638
      %v641 = vcosq.f32.pop %v639
      %v642 = vsinq.f32.pop %v639
      %vm643 = vweird.f32 %v226
      %v644 = vadd.s32 %v640, 3
      %v645 = vand.u32 %v644, 3
      %vm646 = vcmp.lt.s32.totalorder %v645, 2
      %vm647 = vcmp.eq.s32.totalorder %v645, 0
      %v648 = vxor.u32 %v642, 2147483648
      %v649 = vsel %vm647, %v641, %v648
      %vm650 = vcmp.eq.s32.totalorder %v645, 2
      %v651 = vxor.u32 %v641, 2147483648
      %v652 = vsel %vm650, %v651, %v642
      %v653 = vsel %vm646, %v649, %v652
      %v654 = vsel %vm643, nan, %v653
      %v655 = vand.u32 2147483647, %v227
      %vm656 = vcmp.le.f32.partialorder %v655, 0.7853982
      %vm657 = vcmp.lt.s32.totalorder %v227, 0
      %v658 = vand.u32 %v227, 2139095040
      %v659 = vshrl.u32 %v658, 23
      %v660 = vsub.s32 %v659, 127
      %v661 = vand.u32 2147483647, %v227
      %v662 = vand.u32 %v661, 8388607
      %v663 = vor.u32 %v662, 8388608
      %v664 = vsub.s32 0, %v663
      %v665 = vadd.s32 %v660, 1
      %vm666 = vcmp.gt.s32.totalorder %v665, 0
      %v667 = vsel %vm666, %v665, 0
      %v668 = vshrl.u32 %v667, 5
      %v669 = vand.u32 %v667, 31
      %v670 = vsub.s32 32, %v669
      %v671 = vshrl.u32 683565275, %v670
      %v672 = vshll.u32 683565275, %v669
      %v673 = vshrl.u32 2475754826, %v670
      %v674 = vor.u32 %v672, %v673
      %v675 = vshll.u32 2475754826, %v669
      %v676 = vshrl.u32 2131351028, %v670
      %v677 = vor.u32 %v675, %v676
      %v678 = vshll.u32 2131351028, %v669
      %v679 = vshrl.u32 2102212464, %v670
      %v680 = vor.u32 %v678, %v679
      %v681 = vshll.u32 2102212464, %v669
      %v682 = vshrl.u32 920167782, %v670
      %v683 = vor.u32 %v681, %v682
      %v684 = vshll.u32 920167782, %v669
      %v685 = vshrl.u32 1326507024, %v670
      %v686 = vor.u32 %v684, %v685
      %vm687 = vcmp.lt.s32.totalorder %v668, 1
      %vm688 = vcmp.lt.s32.totalorder %v668, 2
      %vm689 = vcmp.lt.s32.totalorder %v668, 3
      %vm690 = vcmp.lt.s32.totalorder %v668, 4
      %v691 = vsel %vm687, %v671, %v674
      %v692 = vsel %vm690, %v680, 2102212464
      %v693 = vsel %vm689, %v677, %v692
      %v694 = vsel %vm688, %v691, %v693
      %v695 = vsel %vm687, %v674, %v677
      %v696 = vsel %vm690, %v683, 920167782
      %v697 = vsel %vm689, %v680, %v696
      %v698 = vsel %vm688, %v695, %v697
      %v699 = vsel %vm687, %v677, %v680
      %v700 = vsel %vm690, %v686, 1326507024
      %v701 = vsel %vm689, %v683, %v700
      %v702 = vsel %vm688, %v699, %v701
      %v703 = vshll.u32 %v663, 8
      %v704 = vmul.u32.u64.compose %v703, %v702
      %v705 = vextract.low.u32 %v704
      %v706 = vextract.high.u32 %v704
      %v707 = vmul.u32.u64.compose %v703, %v698
      %v708 = vextract.low.u32 %v707
      %v709 = vextract.high.u32 %v707
      %v710 = vmul.u32 %v703, %v694
      %v711 = vadd.s32 %v706, %v708
      %vm712 = vc.u32 %v706, %v708
      %v713 = vadd.s32 %v709, 1
      %v714 = vsel %vm712, %v713, %v709
      %v715 = vadd.s32 %v710, %v714
      %v716 = vadd.s32 %v715, 536870912
      %v717 = vshrl.u32 %v716, 30
      %v718 = vshll.u32 %v717, 30
      %v719 = vsub.s32 %v715, %v718
      %vm720 = vcmp.lt.s32.totalorder %v719, 0
      %v721 = vsub.s32 0, %v719
      %v722 = vsel %vm720, %v721, %v719
      %v723 = vclz %v722
      %v724 = vsub.s32 %v723, 2
      %vm725 = vcmp.gt.s32.totalorder 0, %v724
      %v726 = vsel %vm725, 0, %v724
      %v727 = vsub.s32 32, %v726
      %v728 = vshll.u32 %v719, %v726
      %v729 = vshrl.u32 %v711, %v727
      %v730 = vor.u32 %v728, %v729
      %v731 = vsub.s32 4294967266, %v726
      %v732 = vadd.s32 %v731, 127
      %v733 = vshll.u32 %v732, 23
      %v734 = vor.u32 4788187, %v733
      %v735 = vand.u32 2147483647, %v734
      %v737 = vcvt.s32.f32 %v730
      %v738 = vmul.f32 %v737, %v735
      %v739 = vxor.u32 %v738, 2147483648
      %v740 = vsel %vm657, %v739, %v738
      %v741 = vsub.s32 4, %v717
      %v742 = vsel %vm657, %v741, %v717
      %v743 = vsel %vm656, %v227, %v740
      %v744 = vsel %vm656, 0, %v742
      %v745 = vcosq.f32.pop %v743
      %v746 = vsinq.f32.pop %v743
      %vm747 = vweird.f32 %v227
      %v748 = vadd.s32 %v744, 3
      %v749 = vand.u32 %v748, 3
      %vm750 = vcmp.lt.s32.totalorder %v749, 2
      %vm751 = vcmp.eq.s32.totalorder %v749, 0
      %v752 = vxor.u32 %v746, 2147483648
      %v753 = vsel %vm751, %v745, %v752
      %vm754 = vcmp.eq.s32.totalorder %v749, 2
      %v755 = vxor.u32 %v745, 2147483648
      %v756 = vsel %vm754, %v755, %v746
      %v757 = vsel %vm750, %v753, %v756
      %v758 = vsel %vm747, nan, %v757
      %v759 = vand.u32 2147483647, %v228
      %vm760 = vcmp.le.f32.partialorder %v759, 0.7853982
      %vm761 = vcmp.lt.s32.totalorder %v228, 0
      %v762 = vand.u32 %v228, 2139095040
      %v763 = vshrl.u32 %v762, 23
      %v764 = vsub.s32 %v763, 127
      %v765 = vand.u32 2147483647, %v228
      %v766 = vand.u32 %v765, 8388607
      %v767 = vor.u32 %v766, 8388608
      %v768 = vsub.s32 0, %v767
      %v769 = vadd.s32 %v764, 1
      %vm770 = vcmp.gt.s32.totalorder %v769, 0
      %v771 = vsel %vm770, %v769, 0
      %v772 = vshrl.u32 %v771, 5
      %v773 = vand.u32 %v771, 31
      %v774 = vsub.s32 32, %v773
      %v775 = vshrl.u32 683565275, %v774
      %v776 = vshll.u32 683565275, %v773
      %v777 = vshrl.u32 2475754826, %v774
      %v778 = vor.u32 %v776, %v777
      %v779 = vshll.u32 2475754826, %v773
      %v780 = vshrl.u32 2131351028, %v774
      %v781 = vor.u32 %v779, %v780
      %v782 = vshll.u32 2131351028, %v773
      %v783 = vshrl.u32 2102212464, %v774
      %v784 = vor.u32 %v782, %v783
      %v785 = vshll.u32 2102212464, %v773
      %v786 = vshrl.u32 920167782, %v774
      %v787 = vor.u32 %v785, %v786
      %v788 = vshll.u32 920167782, %v773
      %v789 = vshrl.u32 1326507024, %v774
      %v790 = vor.u32 %v788, %v789
      %vm791 = vcmp.lt.s32.totalorder %v772, 1
      %vm792 = vcmp.lt.s32.totalorder %v772, 2
      %vm793 = vcmp.lt.s32.totalorder %v772, 3
      %vm794 = vcmp.lt.s32.totalorder %v772, 4
      %v795 = vsel %vm791, %v775, %v778
      %v796 = vsel %vm794, %v784, 2102212464
      %v797 = vsel %vm793, %v781, %v796
      %v798 = vsel %vm792, %v795, %v797
      %v799 = vsel %vm791, %v778, %v781
      %v800 = vsel %vm794, %v787, 920167782
      %v801 = vsel %vm793, %v784, %v800
      %v802 = vsel %vm792, %v799, %v801
      %v803 = vsel %vm791, %v781, %v784
      %v804 = vsel %vm794, %v790, 1326507024
      %v805 = vsel %vm793, %v787, %v804
      %v806 = vsel %vm792, %v803, %v805
      %v807 = vshll.u32 %v767, 8
      %v808 = vmul.u32.u64.compose %v807, %v806
      %v809 = vextract.low.u32 %v808
      %v810 = vextract.high.u32 %v808
      %v811 = vmul.u32.u64.compose %v807, %v802
      %v812 = vextract.low.u32 %v811
      %v813 = vextract.high.u32 %v811
      %v814 = vmul.u32 %v807, %v798
      %v815 = vadd.s32 %v810, %v812
      %vm816 = vc.u32 %v810, %v812
      %v817 = vadd.s32 %v813, 1
      %v818 = vsel %vm816, %v817, %v813
      %v819 = vadd.s32 %v814, %v818
      %v820 = vadd.s32 %v819, 536870912
      %v821 = vshrl.u32 %v820, 30
      %v822 = vshll.u32 %v821, 30
      %v823 = vsub.s32 %v819, %v822
      %vm824 = vcmp.lt.s32.totalorder %v823, 0
      %v825 = vsub.s32 0, %v823
      %v826 = vsel %vm824, %v825, %v823
      %v827 = vclz %v826
      %v828 = vsub.s32 %v827, 2
      %vm829 = vcmp.gt.s32.totalorder 0, %v828
      %v830 = vsel %vm829, 0, %v828
      %v831 = vsub.s32 32, %v830
      %v832 = vshll.u32 %v823, %v830
      %v833 = vshrl.u32 %v815, %v831
      %v834 = vor.u32 %v832, %v833
      %v835 = vsub.s32 4294967266, %v830
      %v836 = vadd.s32 %v835, 127
      %v837 = vshll.u32 %v836, 23
      %v838 = vor.u32 4788187, %v837
      %v839 = vand.u32 2147483647, %v838
      %v841 = vcvt.s32.f32 %v834
      %v842 = vmul.f32 %v841, %v839
      %v843 = vxor.u32 %v842, 2147483648
      %v844 = vsel %vm761, %v843, %v842
      %v845 = vsub.s32 4, %v821
      %v846 = vsel %vm761, %v845, %v821
      %v847 = vsel %vm760, %v228, %v844
      %v848 = vsel %vm760, 0, %v846
      %v849 = vcosq.f32.pop %v847
      %v850 = vsinq.f32.pop %v847
      %vm851 = vweird.f32 %v228
      %v852 = vadd.s32 %v848, 3
      %v853 = vand.u32 %v852, 3
      %vm854 = vcmp.lt.s32.totalorder %v853, 2
      %vm855 = vcmp.eq.s32.totalorder %v853, 0
      %v856 = vxor.u32 %v850, 2147483648
      %v857 = vsel %vm855, %v849, %v856
      %vm858 = vcmp.eq.s32.totalorder %v853, 2
      %v859 = vxor.u32 %v849, 2147483648
      %v860 = vsel %vm858, %v859, %v850
      %v861 = vsel %vm854, %v857, %v860
      %v862 = vsel %vm851, nan, %v861
      %v863 = vand.u32 2147483647, %v229
      %vm864 = vcmp.le.f32.partialorder %v863, 0.7853982
      %vm865 = vcmp.lt.s32.totalorder %v229, 0
      %v866 = vand.u32 %v229, 2139095040
      %v867 = vshrl.u32 %v866, 23
      %v868 = vsub.s32 %v867, 127
      %v869 = vand.u32 2147483647, %v229
      %v870 = vand.u32 %v869, 8388607
      %v871 = vor.u32 %v870, 8388608
      %v872 = vsub.s32 0, %v871
      %v873 = vadd.s32 %v868, 1
      %vm874 = vcmp.gt.s32.totalorder %v873, 0
      %v875 = vsel %vm874, %v873, 0
      %v876 = vshrl.u32 %v875, 5
      %v877 = vand.u32 %v875, 31
      %v878 = vsub.s32 32, %v877
      %v879 = vshrl.u32 683565275, %v878
      %v880 = vshll.u32 683565275, %v877
      %v881 = vshrl.u32 2475754826, %v878
      %v882 = vor.u32 %v880, %v881
      %v883 = vshll.u32 2475754826, %v877
      %v884 = vshrl.u32 2131351028, %v878
      %v885 = vor.u32 %v883, %v884
      %v886 = vshll.u32 2131351028, %v877
      %v887 = vshrl.u32 2102212464, %v878
      %v888 = vor.u32 %v886, %v887
      %v889 = vshll.u32 2102212464, %v877
      %v890 = vshrl.u32 920167782, %v878
      %v891 = vor.u32 %v889, %v890
      %v892 = vshll.u32 920167782, %v877
      %v893 = vshrl.u32 1326507024, %v878
      %v894 = vor.u32 %v892, %v893
      %vm895 = vcmp.lt.s32.totalorder %v876, 1
      %vm896 = vcmp.lt.s32.totalorder %v876, 2
      %vm897 = vcmp.lt.s32.totalorder %v876, 3
      %vm898 = vcmp.lt.s32.totalorder %v876, 4
      %v899 = vsel %vm895, %v879, %v882
      %v900 = vsel %vm898, %v888, 2102212464
      %v901 = vsel %vm897, %v885, %v900
      %v902 = vsel %vm896, %v899, %v901
      %v903 = vsel %vm895, %v882, %v885
      %v904 = vsel %vm898, %v891, 920167782
      %v905 = vsel %vm897, %v888, %v904
      %v906 = vsel %vm896, %v903, %v905
      %v907 = vsel %vm895, %v885, %v888
      %v908 = vsel %vm898, %v894, 1326507024
      %v909 = vsel %vm897, %v891, %v908
      %v910 = vsel %vm896, %v907, %v909
      %v911 = vshll.u32 %v871, 8
      %v912 = vmul.u32.u64.compose %v911, %v910
      %v913 = vextract.low.u32 %v912
      %v914 = vextract.high.u32 %v912
      %v915 = vmul.u32.u64.compose %v911, %v906
      %v916 = vextract.low.u32 %v915
      %v917 = vextract.high.u32 %v915
      %v918 = vmul.u32 %v911, %v902
      %v919 = vadd.s32 %v914, %v916
      %vm920 = vc.u32 %v914, %v916
      %v921 = vadd.s32 %v917, 1
      %v922 = vsel %vm920, %v921, %v917
      %v923 = vadd.s32 %v918, %v922
      %v924 = vadd.s32 %v923, 536870912
      %v925 = vshrl.u32 %v924, 30
      %v926 = vshll.u32 %v925, 30
      %v927 = vsub.s32 %v923, %v926
      %vm928 = vcmp.lt.s32.totalorder %v927, 0
      %v929 = vsub.s32 0, %v927
      %v930 = vsel %vm928, %v929, %v927
      %v931 = vclz %v930
      %v932 = vsub.s32 %v931, 2
      %vm933 = vcmp.gt.s32.totalorder 0, %v932
      %v934 = vsel %vm933, 0, %v932
      %v935 = vsub.s32 32, %v934
      %v936 = vshll.u32 %v927, %v934
      %v937 = vshrl.u32 %v919, %v935
      %v938 = vor.u32 %v936, %v937
      %v939 = vsub.s32 4294967266, %v934
      %v940 = vadd.s32 %v939, 127
      %v941 = vshll.u32 %v940, 23
      %v942 = vor.u32 4788187, %v941
      %v943 = vand.u32 2147483647, %v942
      %v945 = vcvt.s32.f32 %v938
      %v946 = vmul.f32 %v945, %v943
      %v947 = vxor.u32 %v946, 2147483648
      %v948 = vsel %vm865, %v947, %v946
      %v949 = vsub.s32 4, %v925
      %v950 = vsel %vm865, %v949, %v925
      %v951 = vsel %vm864, %v229, %v948
      %v952 = vsel %vm864, 0, %v950
      %v953 = vcosq.f32.pop %v951
      %v954 = vsinq.f32.pop %v951
      %vm955 = vweird.f32 %v229
      %v956 = vadd.s32 %v952, 3
      %v957 = vand.u32 %v956, 3
      %vm958 = vcmp.lt.s32.totalorder %v957, 2
      %vm959 = vcmp.eq.s32.totalorder %v957, 0
      %v960 = vxor.u32 %v954, 2147483648
      %v961 = vsel %vm959, %v953, %v960
      %vm962 = vcmp.eq.s32.totalorder %v957, 2
      %v963 = vxor.u32 %v953, 2147483648
      %v964 = vsel %vm962, %v963, %v954
      %v965 = vsel %vm958, %v961, %v964
      %v966 = vsel %vm955, nan, %v965
      %v967 = vand.u32 2147483647, %v230
      %vm968 = vcmp.le.f32.partialorder %v967, 0.7853982
      %vm969 = vcmp.lt.s32.totalorder %v230, 0
      %v970 = vand.u32 %v230, 2139095040
      %v971 = vshrl.u32 %v970, 23
      %v972 = vsub.s32 %v971, 127
      %v973 = vand.u32 2147483647, %v230
      %v974 = vand.u32 %v973, 8388607
      %v975 = vor.u32 %v974, 8388608
      %v976 = vsub.s32 0, %v975
      %v977 = vadd.s32 %v972, 1
      %vm978 = vcmp.gt.s32.totalorder %v977, 0
      %v979 = vsel %vm978, %v977, 0
      %v980 = vshrl.u32 %v979, 5
      %v981 = vand.u32 %v979, 31
      %v982 = vsub.s32 32, %v981
      %v983 = vshrl.u32 683565275, %v982
      %v984 = vshll.u32 683565275, %v981
      %v985 = vshrl.u32 2475754826, %v982
      %v986 = vor.u32 %v984, %v985
      %v987 = vshll.u32 2475754826, %v981
      %v988 = vshrl.u32 2131351028, %v982
      %v989 = vor.u32 %v987, %v988
      %v990 = vshll.u32 2131351028, %v981
      %v991 = vshrl.u32 2102212464, %v982
      %v992 = vor.u32 %v990, %v991
      %v993 = vshll.u32 2102212464, %v981
      %v994 = vshrl.u32 920167782, %v982
      %v995 = vor.u32 %v993, %v994
      %v996 = vshll.u32 920167782, %v981
      %v997 = vshrl.u32 1326507024, %v982
      %v998 = vor.u32 %v996, %v997
      %vm999 = vcmp.lt.s32.totalorder %v980, 1
      %vm1000 = vcmp.lt.s32.totalorder %v980, 2
      %vm1001 = vcmp.lt.s32.totalorder %v980, 3
      %vm1002 = vcmp.lt.s32.totalorder %v980, 4
      %v1003 = vsel %vm999, %v983, %v986
      %v1004 = vsel %vm1002, %v992, 2102212464
      %v1005 = vsel %vm1001, %v989, %v1004
      %v1006 = vsel %vm1000, %v1003, %v1005
      %v1007 = vsel %vm999, %v986, %v989
      %v1008 = vsel %vm1002, %v995, 920167782
      %v1009 = vsel %vm1001, %v992, %v1008
      %v1010 = vsel %vm1000, %v1007, %v1009
      %v1011 = vsel %vm999, %v989, %v992
      %v1012 = vsel %vm1002, %v998, 1326507024
      %v1013 = vsel %vm1001, %v995, %v1012
      %v1014 = vsel %vm1000, %v1011, %v1013
      %v1015 = vshll.u32 %v975, 8
      %v1016 = vmul.u32.u64.compose %v1015, %v1014
      %v1017 = vextract.low.u32 %v1016
      %v1018 = vextract.high.u32 %v1016
      %v1019 = vmul.u32.u64.compose %v1015, %v1010
      %v1020 = vextract.low.u32 %v1019
      %v1021 = vextract.high.u32 %v1019
      %v1022 = vmul.u32 %v1015, %v1006
      %v1023 = vadd.s32 %v1018, %v1020
      %vm1024 = vc.u32 %v1018, %v1020
      %v1025 = vadd.s32 %v1021, 1
      %v1026 = vsel %vm1024, %v1025, %v1021
      %v1027 = vadd.s32 %v1022, %v1026
      %v1028 = vadd.s32 %v1027, 536870912
      %v1029 = vshrl.u32 %v1028, 30
      %v1030 = vshll.u32 %v1029, 30
      %v1031 = vsub.s32 %v1027, %v1030
      %vm1032 = vcmp.lt.s32.totalorder %v1031, 0
      %v1033 = vsub.s32 0, %v1031
      %v1034 = vsel %vm1032, %v1033, %v1031
      %v1035 = vclz %v1034
      %v1036 = vsub.s32 %v1035, 2
      %vm1037 = vcmp.gt.s32.totalorder 0, %v1036
      %v1038 = vsel %vm1037, 0, %v1036
      %v1039 = vsub.s32 32, %v1038
      %v1040 = vshll.u32 %v1031, %v1038
      %v1041 = vshrl.u32 %v1023, %v1039
      %v1042 = vor.u32 %v1040, %v1041
      %v1043 = vsub.s32 4294967266, %v1038
      %v1044 = vadd.s32 %v1043, 127
      %v1045 = vshll.u32 %v1044, 23
      %v1046 = vor.u32 4788187, %v1045
      %v1047 = vand.u32 2147483647, %v1046
      %v1049 = vcvt.s32.f32 %v1042
      %v1050 = vmul.f32 %v1049, %v1047
      %v1051 = vxor.u32 %v1050, 2147483648
      %v1052 = vsel %vm969, %v1051, %v1050
      %v1053 = vsub.s32 4, %v1029
      %v1054 = vsel %vm969, %v1053, %v1029
      %v1055 = vsel %vm968, %v230, %v1052
      %v1056 = vsel %vm968, 0, %v1054
      %v1057 = vcosq.f32.pop %v1055
      %v1058 = vsinq.f32.pop %v1055
      %vm1059 = vweird.f32 %v230
      %v1060 = vadd.s32 %v1056, 3
      %v1061 = vand.u32 %v1060, 3
      %vm1062 = vcmp.lt.s32.totalorder %v1061, 2
      %vm1063 = vcmp.eq.s32.totalorder %v1061, 0
      %v1064 = vxor.u32 %v1058, 2147483648
      %v1065 = vsel %vm1063, %v1057, %v1064
      %vm1066 = vcmp.eq.s32.totalorder %v1061, 2
      %v1067 = vxor.u32 %v1057, 2147483648
      %v1068 = vsel %vm1066, %v1067, %v1058
      %v1069 = vsel %vm1062, %v1065, %v1068
      %v1070 = vsel %vm1059, nan, %v1069
      %v1071 = vand.u32 2147483647, %v231
      %vm1072 = vcmp.le.f32.partialorder %v1071, 0.7853982
      %vm1073 = vcmp.lt.s32.totalorder %v231, 0
      %v1074 = vand.u32 %v231, 2139095040
      %v1075 = vshrl.u32 %v1074, 23
      %v1076 = vsub.s32 %v1075, 127
      %v1077 = vand.u32 2147483647, %v231
      %v1078 = vand.u32 %v1077, 8388607
      %v1079 = vor.u32 %v1078, 8388608
      %v1080 = vsub.s32 0, %v1079
      %v1081 = vadd.s32 %v1076, 1
      %vm1082 = vcmp.gt.s32.totalorder %v1081, 0
      %v1083 = vsel %vm1082, %v1081, 0
      %v1084 = vshrl.u32 %v1083, 5
      %v1085 = vand.u32 %v1083, 31
      %v1086 = vsub.s32 32, %v1085
      %v1087 = vshrl.u32 683565275, %v1086
      %v1088 = vshll.u32 683565275, %v1085
      %v1089 = vshrl.u32 2475754826, %v1086
      %v1090 = vor.u32 %v1088, %v1089
      %v1091 = vshll.u32 2475754826, %v1085
      %v1092 = vshrl.u32 2131351028, %v1086
      %v1093 = vor.u32 %v1091, %v1092
      %v1094 = vshll.u32 2131351028, %v1085
      %v1095 = vshrl.u32 2102212464, %v1086
      %v1096 = vor.u32 %v1094, %v1095
      %v1097 = vshll.u32 2102212464, %v1085
      %v1098 = vshrl.u32 920167782, %v1086
      %v1099 = vor.u32 %v1097, %v1098
      %v1100 = vshll.u32 920167782, %v1085
      %v1101 = vshrl.u32 1326507024, %v1086
      %v1102 = vor.u32 %v1100, %v1101
      %vm1103 = vcmp.lt.s32.totalorder %v1084, 1
      %vm1104 = vcmp.lt.s32.totalorder %v1084, 2
      %vm1105 = vcmp.lt.s32.totalorder %v1084, 3
      %vm1106 = vcmp.lt.s32.totalorder %v1084, 4
      %v1107 = vsel %vm1103, %v1087, %v1090
      %v1108 = vsel %vm1106, %v1096, 2102212464
      %v1109 = vsel %vm1105, %v1093, %v1108
      %v1110 = vsel %vm1104, %v1107, %v1109
      %v1111 = vsel %vm1103, %v1090, %v1093
      %v1112 = vsel %vm1106, %v1099, 920167782
      %v1113 = vsel %vm1105, %v1096, %v1112
      %v1114 = vsel %vm1104, %v1111, %v1113
      %v1115 = vsel %vm1103, %v1093, %v1096
      %v1116 = vsel %vm1106, %v1102, 1326507024
      %v1117 = vsel %vm1105, %v1099, %v1116
      %v1118 = vsel %vm1104, %v1115, %v1117
      %v1119 = vshll.u32 %v1079, 8
      %v1120 = vmul.u32.u64.compose %v1119, %v1118
      %v1121 = vextract.low.u32 %v1120
      %v1122 = vextract.high.u32 %v1120
      %v1123 = vmul.u32.u64.compose %v1119, %v1114
      %v1124 = vextract.low.u32 %v1123
      %v1125 = vextract.high.u32 %v1123
      %v1126 = vmul.u32 %v1119, %v1110
      %v1127 = vadd.s32 %v1122, %v1124
      %vm1128 = vc.u32 %v1122, %v1124
      %v1129 = vadd.s32 %v1125, 1
      %v1130 = vsel %vm1128, %v1129, %v1125
      %v1131 = vadd.s32 %v1126, %v1130
      %v1132 = vadd.s32 %v1131, 536870912
      %v1133 = vshrl.u32 %v1132, 30
      %v1134 = vshll.u32 %v1133, 30
      %v1135 = vsub.s32 %v1131, %v1134
      %vm1136 = vcmp.lt.s32.totalorder %v1135, 0
      %v1137 = vsub.s32 0, %v1135
      %v1138 = vsel %vm1136, %v1137, %v1135
      %v1139 = vclz %v1138
      %v1140 = vsub.s32 %v1139, 2
      %vm1141 = vcmp.gt.s32.totalorder 0, %v1140
      %v1142 = vsel %vm1141, 0, %v1140
      %v1143 = vsub.s32 32, %v1142
      %v1144 = vshll.u32 %v1135, %v1142
      %v1145 = vshrl.u32 %v1127, %v1143
      %v1146 = vor.u32 %v1144, %v1145
      %v1147 = vsub.s32 4294967266, %v1142
      %v1148 = vadd.s32 %v1147, 127
      %v1149 = vshll.u32 %v1148, 23
      %v1150 = vor.u32 4788187, %v1149
      %v1151 = vand.u32 2147483647, %v1150
      %v1153 = vcvt.s32.f32 %v1146
      %v1154 = vmul.f32 %v1153, %v1151
      %v1155 = vxor.u32 %v1154, 2147483648
      %v1156 = vsel %vm1073, %v1155, %v1154
      %v1157 = vsub.s32 4, %v1133
      %v1158 = vsel %vm1073, %v1157, %v1133
      %v1159 = vsel %vm1072, %v231, %v1156
      %v1160 = vsel %vm1072, 0, %v1158
      %v1161 = vcosq.f32.pop %v1159
      %v1162 = vsinq.f32.pop %v1159
      %vm1163 = vweird.f32 %v231
      %v1164 = vadd.s32 %v1160, 3
      %v1165 = vand.u32 %v1164, 3
      %vm1166 = vcmp.lt.s32.totalorder %v1165, 2
      %vm1167 = vcmp.eq.s32.totalorder %v1165, 0
      %v1168 = vxor.u32 %v1162, 2147483648
      %v1169 = vsel %vm1167, %v1161, %v1168
      %vm1170 = vcmp.eq.s32.totalorder %v1165, 2
      %v1171 = vxor.u32 %v1161, 2147483648
      %v1172 = vsel %vm1170, %v1171, %v1162
      %v1173 = vsel %vm1166, %v1169, %v1172
      %v1174 = vsel %vm1163, nan, %v1173
      %v1175 = vand.u32 2147483647, %v232
      %vm1176 = vcmp.le.f32.partialorder %v1175, 0.7853982
      %vm1177 = vcmp.lt.s32.totalorder %v232, 0
      %v1178 = vand.u32 %v232, 2139095040
      %v1179 = vshrl.u32 %v1178, 23
      %v1180 = vsub.s32 %v1179, 127
      %v1181 = vand.u32 2147483647, %v232
      %v1182 = vand.u32 %v1181, 8388607
      %v1183 = vor.u32 %v1182, 8388608
      %v1184 = vsub.s32 0, %v1183
      %v1185 = vadd.s32 %v1180, 1
      %vm1186 = vcmp.gt.s32.totalorder %v1185, 0
      %v1187 = vsel %vm1186, %v1185, 0
      %v1188 = vshrl.u32 %v1187, 5
      %v1189 = vand.u32 %v1187, 31
      %v1190 = vsub.s32 32, %v1189
      %v1191 = vshrl.u32 683565275, %v1190
      %v1192 = vshll.u32 683565275, %v1189
      %v1193 = vshrl.u32 2475754826, %v1190
      %v1194 = vor.u32 %v1192, %v1193
      %v1195 = vshll.u32 2475754826, %v1189
      %v1196 = vshrl.u32 2131351028, %v1190
      %v1197 = vor.u32 %v1195, %v1196
      %v1198 = vshll.u32 2131351028, %v1189
      %v1199 = vshrl.u32 2102212464, %v1190
      %v1200 = vor.u32 %v1198, %v1199
      %v1201 = vshll.u32 2102212464, %v1189
      %v1202 = vshrl.u32 920167782, %v1190
      %v1203 = vor.u32 %v1201, %v1202
      %v1204 = vshll.u32 920167782, %v1189
      %v1205 = vshrl.u32 1326507024, %v1190
      %v1206 = vor.u32 %v1204, %v1205
      %vm1207 = vcmp.lt.s32.totalorder %v1188, 1
      %vm1208 = vcmp.lt.s32.totalorder %v1188, 2
      %vm1209 = vcmp.lt.s32.totalorder %v1188, 3
      %vm1210 = vcmp.lt.s32.totalorder %v1188, 4
      %v1211 = vsel %vm1207, %v1191, %v1194
      %v1212 = vsel %vm1210, %v1200, 2102212464
      %v1213 = vsel %vm1209, %v1197, %v1212
      %v1214 = vsel %vm1208, %v1211, %v1213
      %v1215 = vsel %vm1207, %v1194, %v1197
      %v1216 = vsel %vm1210, %v1203, 920167782
      %v1217 = vsel %vm1209, %v1200, %v1216
      %v1218 = vsel %vm1208, %v1215, %v1217
      %v1219 = vsel %vm1207, %v1197, %v1200
      %v1220 = vsel %vm1210, %v1206, 1326507024
      %v1221 = vsel %vm1209, %v1203, %v1220
      %v1222 = vsel %vm1208, %v1219, %v1221
      %v1223 = vshll.u32 %v1183, 8
      %v1224 = vmul.u32.u64.compose %v1223, %v1222
      %v1225 = vextract.low.u32 %v1224
      %v1226 = vextract.high.u32 %v1224
      %v1227 = vmul.u32.u64.compose %v1223, %v1218
      %v1228 = vextract.low.u32 %v1227
      %v1229 = vextract.high.u32 %v1227
      %v1230 = vmul.u32 %v1223, %v1214
      %v1231 = vadd.s32 %v1226, %v1228
      %vm1232 = vc.u32 %v1226, %v1228
      %v1233 = vadd.s32 %v1229, 1
      %v1234 = vsel %vm1232, %v1233, %v1229
      %v1235 = vadd.s32 %v1230, %v1234
      %v1236 = vadd.s32 %v1235, 536870912
      %v1237 = vshrl.u32 %v1236, 30
      %v1238 = vshll.u32 %v1237, 30
      %v1239 = vsub.s32 %v1235, %v1238
      %vm1240 = vcmp.lt.s32.totalorder %v1239, 0
      %v1241 = vsub.s32 0, %v1239
      %v1242 = vsel %vm1240, %v1241, %v1239
      %v1243 = vclz %v1242
      %v1244 = vsub.s32 %v1243, 2
      %vm1245 = vcmp.gt.s32.totalorder 0, %v1244
      %v1246 = vsel %vm1245, 0, %v1244
      %v1247 = vsub.s32 32, %v1246
      %v1248 = vshll.u32 %v1239, %v1246
      %v1249 = vshrl.u32 %v1231, %v1247
      %v1250 = vor.u32 %v1248, %v1249
      %v1251 = vsub.s32 4294967266, %v1246
      %v1252 = vadd.s32 %v1251, 127
      %v1253 = vshll.u32 %v1252, 23
      %v1254 = vor.u32 4788187, %v1253
      %v1255 = vand.u32 2147483647, %v1254
      %v1257 = vcvt.s32.f32 %v1250
      %v1258 = vmul.f32 %v1257, %v1255
      %v1259 = vxor.u32 %v1258, 2147483648
      %v1260 = vsel %vm1177, %v1259, %v1258
      %v1261 = vsub.s32 4, %v1237
      %v1262 = vsel %vm1177, %v1261, %v1237
      %v1263 = vsel %vm1176, %v232, %v1260
      %v1264 = vsel %vm1176, 0, %v1262
      %v1265 = vcosq.f32.pop %v1263
      %v1266 = vsinq.f32.pop %v1263
      %vm1267 = vweird.f32 %v232
      %v1268 = vadd.s32 %v1264, 3
      %v1269 = vand.u32 %v1268, 3
      %vm1270 = vcmp.lt.s32.totalorder %v1269, 2
      %vm1271 = vcmp.eq.s32.totalorder %v1269, 0
      %v1272 = vxor.u32 %v1266, 2147483648
      %v1273 = vsel %vm1271, %v1265, %v1272
      %vm1274 = vcmp.eq.s32.totalorder %v1269, 2
      %v1275 = vxor.u32 %v1265, 2147483648
      %v1276 = vsel %vm1274, %v1275, %v1266
      %v1277 = vsel %vm1270, %v1273, %v1276
      %v1278 = vsel %vm1267, nan, %v1277
      %v1279 = vand.u32 2147483647, %v233
      %vm1280 = vcmp.le.f32.partialorder %v1279, 0.7853982
      %vm1281 = vcmp.lt.s32.totalorder %v233, 0
      %v1282 = vand.u32 %v233, 2139095040
      %v1283 = vshrl.u32 %v1282, 23
      %v1284 = vsub.s32 %v1283, 127
      %v1285 = vand.u32 2147483647, %v233
      %v1286 = vand.u32 %v1285, 8388607
      %v1287 = vor.u32 %v1286, 8388608
      %v1288 = vsub.s32 0, %v1287
      %v1289 = vadd.s32 %v1284, 1
      %vm1290 = vcmp.gt.s32.totalorder %v1289, 0
      %v1291 = vsel %vm1290, %v1289, 0
      %v1292 = vshrl.u32 %v1291, 5
      %v1293 = vand.u32 %v1291, 31
      %v1294 = vsub.s32 32, %v1293
      %v1295 = vshrl.u32 683565275, %v1294
      %v1296 = vshll.u32 683565275, %v1293
      %v1297 = vshrl.u32 2475754826, %v1294
      %v1298 = vor.u32 %v1296, %v1297
      %v1299 = vshll.u32 2475754826, %v1293
      %v1300 = vshrl.u32 2131351028, %v1294
      %v1301 = vor.u32 %v1299, %v1300
      %v1302 = vshll.u32 2131351028, %v1293
      %v1303 = vshrl.u32 2102212464, %v1294
      %v1304 = vor.u32 %v1302, %v1303
      %v1305 = vshll.u32 2102212464, %v1293
      %v1306 = vshrl.u32 920167782, %v1294
      %v1307 = vor.u32 %v1305, %v1306
      %v1308 = vshll.u32 920167782, %v1293
      %v1309 = vshrl.u32 1326507024, %v1294
      %v1310 = vor.u32 %v1308, %v1309
      %vm1311 = vcmp.lt.s32.totalorder %v1292, 1
      %vm1312 = vcmp.lt.s32.totalorder %v1292, 2
      %vm1313 = vcmp.lt.s32.totalorder %v1292, 3
      %vm1314 = vcmp.lt.s32.totalorder %v1292, 4
      %v1315 = vsel %vm1311, %v1295, %v1298
      %v1316 = vsel %vm1314, %v1304, 2102212464
      %v1317 = vsel %vm1313, %v1301, %v1316
      %v1318 = vsel %vm1312, %v1315, %v1317
      %v1319 = vsel %vm1311, %v1298, %v1301
      %v1320 = vsel %vm1314, %v1307, 920167782
      %v1321 = vsel %vm1313, %v1304, %v1320
      %v1322 = vsel %vm1312, %v1319, %v1321
      %v1323 = vsel %vm1311, %v1301, %v1304
      %v1324 = vsel %vm1314, %v1310, 1326507024
      %v1325 = vsel %vm1313, %v1307, %v1324
      %v1326 = vsel %vm1312, %v1323, %v1325
      %v1327 = vshll.u32 %v1287, 8
      %v1328 = vmul.u32.u64.compose %v1327, %v1326
      %v1329 = vextract.low.u32 %v1328
      %v1330 = vextract.high.u32 %v1328
      %v1331 = vmul.u32.u64.compose %v1327, %v1322
      %v1332 = vextract.low.u32 %v1331
      %v1333 = vextract.high.u32 %v1331
      %v1334 = vmul.u32 %v1327, %v1318
      %v1335 = vadd.s32 %v1330, %v1332
      %vm1336 = vc.u32 %v1330, %v1332
      %v1337 = vadd.s32 %v1333, 1
      %v1338 = vsel %vm1336, %v1337, %v1333
      %v1339 = vadd.s32 %v1334, %v1338
      %v1340 = vadd.s32 %v1339, 536870912
      %v1341 = vshrl.u32 %v1340, 30
      %v1342 = vshll.u32 %v1341, 30
      %v1343 = vsub.s32 %v1339, %v1342
      %vm1344 = vcmp.lt.s32.totalorder %v1343, 0
      %v1345 = vsub.s32 0, %v1343
      %v1346 = vsel %vm1344, %v1345, %v1343
      %v1347 = vclz %v1346
      %v1348 = vsub.s32 %v1347, 2
      %vm1349 = vcmp.gt.s32.totalorder 0, %v1348
      %v1350 = vsel %vm1349, 0, %v1348
      %v1351 = vsub.s32 32, %v1350
      %v1352 = vshll.u32 %v1343, %v1350
      %v1353 = vshrl.u32 %v1335, %v1351
      %v1354 = vor.u32 %v1352, %v1353
      %v1355 = vsub.s32 4294967266, %v1350
      %v1356 = vadd.s32 %v1355, 127
      %v1357 = vshll.u32 %v1356, 23
      %v1358 = vor.u32 4788187, %v1357
      %v1359 = vand.u32 2147483647, %v1358
      %v1361 = vcvt.s32.f32 %v1354
      %v1362 = vmul.f32 %v1361, %v1359
      %v1363 = vxor.u32 %v1362, 2147483648
      %v1364 = vsel %vm1281, %v1363, %v1362
      %v1365 = vsub.s32 4, %v1341
      %v1366 = vsel %vm1281, %v1365, %v1341
      %v1367 = vsel %vm1280, %v233, %v1364
      %v1368 = vsel %vm1280, 0, %v1366
      %v1369 = vcosq.f32.pop %v1367
      %v1370 = vsinq.f32.pop %v1367
      %vm1371 = vweird.f32 %v233
      %v1372 = vadd.s32 %v1368, 3
      %v1373 = vand.u32 %v1372, 3
      %vm1374 = vcmp.lt.s32.totalorder %v1373, 2
      %vm1375 = vcmp.eq.s32.totalorder %v1373, 0
      %v1376 = vxor.u32 %v1370, 2147483648
      %v1377 = vsel %vm1375, %v1369, %v1376
      %vm1378 = vcmp.eq.s32.totalorder %v1373, 2
      %v1379 = vxor.u32 %v1369, 2147483648
      %v1380 = vsel %vm1378, %v1379, %v1370
      %v1381 = vsel %vm1374, %v1377, %v1380
      %v1382 = vsel %vm1371, nan, %v1381
      %v1383 = vand.u32 2147483647, %v234
      %vm1384 = vcmp.le.f32.partialorder %v1383, 0.7853982
      %vm1385 = vcmp.lt.s32.totalorder %v234, 0
      %v1386 = vand.u32 %v234, 2139095040
      %v1387 = vshrl.u32 %v1386, 23
      %v1388 = vsub.s32 %v1387, 127
      %v1389 = vand.u32 2147483647, %v234
      %v1390 = vand.u32 %v1389, 8388607
      %v1391 = vor.u32 %v1390, 8388608
      %v1392 = vsub.s32 0, %v1391
      %v1393 = vadd.s32 %v1388, 1
      %vm1394 = vcmp.gt.s32.totalorder %v1393, 0
      %v1395 = vsel %vm1394, %v1393, 0
      %v1396 = vshrl.u32 %v1395, 5
      %v1397 = vand.u32 %v1395, 31
      %v1398 = vsub.s32 32, %v1397
      %v1399 = vshrl.u32 683565275, %v1398
      %v1400 = vshll.u32 683565275, %v1397
      %v1401 = vshrl.u32 2475754826, %v1398
      %v1402 = vor.u32 %v1400, %v1401
      %v1403 = vshll.u32 2475754826, %v1397
      %v1404 = vshrl.u32 2131351028, %v1398
      %v1405 = vor.u32 %v1403, %v1404
      %v1406 = vshll.u32 2131351028, %v1397
      %v1407 = vshrl.u32 2102212464, %v1398
      %v1408 = vor.u32 %v1406, %v1407
      %v1409 = vshll.u32 2102212464, %v1397
      %v1410 = vshrl.u32 920167782, %v1398
      %v1411 = vor.u32 %v1409, %v1410
      %v1412 = vshll.u32 920167782, %v1397
      %v1413 = vshrl.u32 1326507024, %v1398
      %v1414 = vor.u32 %v1412, %v1413
      %vm1415 = vcmp.lt.s32.totalorder %v1396, 1
      %vm1416 = vcmp.lt.s32.totalorder %v1396, 2
      %vm1417 = vcmp.lt.s32.totalorder %v1396, 3
      %vm1418 = vcmp.lt.s32.totalorder %v1396, 4
      %v1419 = vsel %vm1415, %v1399, %v1402
      %v1420 = vsel %vm1418, %v1408, 2102212464
      %v1421 = vsel %vm1417, %v1405, %v1420
      %v1422 = vsel %vm1416, %v1419, %v1421
      %v1423 = vsel %vm1415, %v1402, %v1405
      %v1424 = vsel %vm1418, %v1411, 920167782
      %v1425 = vsel %vm1417, %v1408, %v1424
      %v1426 = vsel %vm1416, %v1423, %v1425
      %v1427 = vsel %vm1415, %v1405, %v1408
      %v1428 = vsel %vm1418, %v1414, 1326507024
      %v1429 = vsel %vm1417, %v1411, %v1428
      %v1430 = vsel %vm1416, %v1427, %v1429
      %v1431 = vshll.u32 %v1391, 8
      %v1432 = vmul.u32.u64.compose %v1431, %v1430
      %v1433 = vextract.low.u32 %v1432
      %v1434 = vextract.high.u32 %v1432
      %v1435 = vmul.u32.u64.compose %v1431, %v1426
      %v1436 = vextract.low.u32 %v1435
      %v1437 = vextract.high.u32 %v1435
      %v1438 = vmul.u32 %v1431, %v1422
      %v1439 = vadd.s32 %v1434, %v1436
      %vm1440 = vc.u32 %v1434, %v1436
      %v1441 = vadd.s32 %v1437, 1
      %v1442 = vsel %vm1440, %v1441, %v1437
      %v1443 = vadd.s32 %v1438, %v1442
      %v1444 = vadd.s32 %v1443, 536870912
      %v1445 = vshrl.u32 %v1444, 30
      %v1446 = vshll.u32 %v1445, 30
      %v1447 = vsub.s32 %v1443, %v1446
      %vm1448 = vcmp.lt.s32.totalorder %v1447, 0
      %v1449 = vsub.s32 0, %v1447
      %v1450 = vsel %vm1448, %v1449, %v1447
      %v1451 = vclz %v1450
      %v1452 = vsub.s32 %v1451, 2
      %vm1453 = vcmp.gt.s32.totalorder 0, %v1452
      %v1454 = vsel %vm1453, 0, %v1452
      %v1455 = vsub.s32 32, %v1454
      %v1456 = vshll.u32 %v1447, %v1454
      %v1457 = vshrl.u32 %v1439, %v1455
      %v1458 = vor.u32 %v1456, %v1457
      %v1459 = vsub.s32 4294967266, %v1454
      %v1460 = vadd.s32 %v1459, 127
      %v1461 = vshll.u32 %v1460, 23
      %v1462 = vor.u32 4788187, %v1461
      %v1463 = vand.u32 2147483647, %v1462
      %v1465 = vcvt.s32.f32 %v1458
      %v1466 = vmul.f32 %v1465, %v1463
      %v1467 = vxor.u32 %v1466, 2147483648
      %v1468 = vsel %vm1385, %v1467, %v1466
      %v1469 = vsub.s32 4, %v1445
      %v1470 = vsel %vm1385, %v1469, %v1445
      %v1471 = vsel %vm1384, %v234, %v1468
      %v1472 = vsel %vm1384, 0, %v1470
      %v1473 = vcosq.f32.pop %v1471
      %v1474 = vsinq.f32.pop %v1471
      %vm1475 = vweird.f32 %v234
      %v1476 = vadd.s32 %v1472, 3
      %v1477 = vand.u32 %v1476, 3
      %vm1478 = vcmp.lt.s32.totalorder %v1477, 2
      %vm1479 = vcmp.eq.s32.totalorder %v1477, 0
      %v1480 = vxor.u32 %v1474, 2147483648
      %v1481 = vsel %vm1479, %v1473, %v1480
      %vm1482 = vcmp.eq.s32.totalorder %v1477, 2
      %v1483 = vxor.u32 %v1473, 2147483648
      %v1484 = vsel %vm1482, %v1483, %v1474
      %v1485 = vsel %vm1478, %v1481, %v1484
      %v1486 = vsel %vm1475, nan, %v1485
      %v1487 = vand.u32 2147483647, %v235
      %vm1488 = vcmp.le.f32.partialorder %v1487, 0.7853982
      %vm1489 = vcmp.lt.s32.totalorder %v235, 0
      %v1490 = vand.u32 %v235, 2139095040
      %v1491 = vshrl.u32 %v1490, 23
      %v1492 = vsub.s32 %v1491, 127
      %v1493 = vand.u32 2147483647, %v235
      %v1494 = vand.u32 %v1493, 8388607
      %v1495 = vor.u32 %v1494, 8388608
      %v1496 = vsub.s32 0, %v1495
      %v1497 = vadd.s32 %v1492, 1
      %vm1498 = vcmp.gt.s32.totalorder %v1497, 0
      %v1499 = vsel %vm1498, %v1497, 0
      %v1500 = vshrl.u32 %v1499, 5
      %v1501 = vand.u32 %v1499, 31
      %v1502 = vsub.s32 32, %v1501
      %v1503 = vshrl.u32 683565275, %v1502
      %v1504 = vshll.u32 683565275, %v1501
      %v1505 = vshrl.u32 2475754826, %v1502
      %v1506 = vor.u32 %v1504, %v1505
      %v1507 = vshll.u32 2475754826, %v1501
      %v1508 = vshrl.u32 2131351028, %v1502
      %v1509 = vor.u32 %v1507, %v1508
      %v1510 = vshll.u32 2131351028, %v1501
      %v1511 = vshrl.u32 2102212464, %v1502
      %v1512 = vor.u32 %v1510, %v1511
      %v1513 = vshll.u32 2102212464, %v1501
      %v1514 = vshrl.u32 920167782, %v1502
      %v1515 = vor.u32 %v1513, %v1514
      %v1516 = vshll.u32 920167782, %v1501
      %v1517 = vshrl.u32 1326507024, %v1502
      %v1518 = vor.u32 %v1516, %v1517
      %vm1519 = vcmp.lt.s32.totalorder %v1500, 1
      %vm1520 = vcmp.lt.s32.totalorder %v1500, 2
      %vm1521 = vcmp.lt.s32.totalorder %v1500, 3
      %vm1522 = vcmp.lt.s32.totalorder %v1500, 4
      %v1523 = vsel %vm1519, %v1503, %v1506
      %v1524 = vsel %vm1522, %v1512, 2102212464
      %v1525 = vsel %vm1521, %v1509, %v1524
      %v1526 = vsel %vm1520, %v1523, %v1525
      %v1527 = vsel %vm1519, %v1506, %v1509
      %v1528 = vsel %vm1522, %v1515, 920167782
      %v1529 = vsel %vm1521, %v1512, %v1528
      %v1530 = vsel %vm1520, %v1527, %v1529
      %v1531 = vsel %vm1519, %v1509, %v1512
      %v1532 = vsel %vm1522, %v1518, 1326507024
      %v1533 = vsel %vm1521, %v1515, %v1532
      %v1534 = vsel %vm1520, %v1531, %v1533
      %v1535 = vshll.u32 %v1495, 8
      %v1536 = vmul.u32.u64.compose %v1535, %v1534
      %v1537 = vextract.low.u32 %v1536
      %v1538 = vextract.high.u32 %v1536
      %v1539 = vmul.u32.u64.compose %v1535, %v1530
      %v1540 = vextract.low.u32 %v1539
      %v1541 = vextract.high.u32 %v1539
      %v1542 = vmul.u32 %v1535, %v1526
      %v1543 = vadd.s32 %v1538, %v1540
      %vm1544 = vc.u32 %v1538, %v1540
      %v1545 = vadd.s32 %v1541, 1
      %v1546 = vsel %vm1544, %v1545, %v1541
      %v1547 = vadd.s32 %v1542, %v1546
      %v1548 = vadd.s32 %v1547, 536870912
      %v1549 = vshrl.u32 %v1548, 30
      %v1550 = vshll.u32 %v1549, 30
      %v1551 = vsub.s32 %v1547, %v1550
      %vm1552 = vcmp.lt.s32.totalorder %v1551, 0
      %v1553 = vsub.s32 0, %v1551
      %v1554 = vsel %vm1552, %v1553, %v1551
      %v1555 = vclz %v1554
      %v1556 = vsub.s32 %v1555, 2
      %vm1557 = vcmp.gt.s32.totalorder 0, %v1556
      %v1558 = vsel %vm1557, 0, %v1556
      %v1559 = vsub.s32 32, %v1558
      %v1560 = vshll.u32 %v1551, %v1558
      %v1561 = vshrl.u32 %v1543, %v1559
      %v1562 = vor.u32 %v1560, %v1561
      %v1563 = vsub.s32 4294967266, %v1558
      %v1564 = vadd.s32 %v1563, 127
      %v1565 = vshll.u32 %v1564, 23
      %v1566 = vor.u32 4788187, %v1565
      %v1567 = vand.u32 2147483647, %v1566
      %v1569 = vcvt.s32.f32 %v1562
      %v1570 = vmul.f32 %v1569, %v1567
      %v1571 = vxor.u32 %v1570, 2147483648
      %v1572 = vsel %vm1489, %v1571, %v1570
      %v1573 = vsub.s32 4, %v1549
      %v1574 = vsel %vm1489, %v1573, %v1549
      %v1575 = vsel %vm1488, %v235, %v1572
      %v1576 = vsel %vm1488, 0, %v1574
      %v1577 = vcosq.f32.pop %v1575
      %v1578 = vsinq.f32.pop %v1575
      %vm1579 = vweird.f32 %v235
      %v1580 = vadd.s32 %v1576, 3
      %v1581 = vand.u32 %v1580, 3
      %vm1582 = vcmp.lt.s32.totalorder %v1581, 2
      %vm1583 = vcmp.eq.s32.totalorder %v1581, 0
      %v1584 = vxor.u32 %v1578, 2147483648
      %v1585 = vsel %vm1583, %v1577, %v1584
      %vm1586 = vcmp.eq.s32.totalorder %v1581, 2
      %v1587 = vxor.u32 %v1577, 2147483648
      %v1588 = vsel %vm1586, %v1587, %v1578
      %v1589 = vsel %vm1582, %v1585, %v1588
      %v1590 = vsel %vm1579, nan, %v1589
      %v1591 = vand.u32 2147483647, %v236
      %vm1592 = vcmp.le.f32.partialorder %v1591, 0.7853982
      %vm1593 = vcmp.lt.s32.totalorder %v236, 0
      %v1594 = vand.u32 %v236, 2139095040
      %v1595 = vshrl.u32 %v1594, 23
      %v1596 = vsub.s32 %v1595, 127
      %v1597 = vand.u32 2147483647, %v236
      %v1598 = vand.u32 %v1597, 8388607
      %v1599 = vor.u32 %v1598, 8388608
      %v1600 = vsub.s32 0, %v1599
      %v1601 = vadd.s32 %v1596, 1
      %vm1602 = vcmp.gt.s32.totalorder %v1601, 0
      %v1603 = vsel %vm1602, %v1601, 0
      %v1604 = vshrl.u32 %v1603, 5
      %v1605 = vand.u32 %v1603, 31
      %v1606 = vsub.s32 32, %v1605
      %v1607 = vshrl.u32 683565275, %v1606
      %v1608 = vshll.u32 683565275, %v1605
      %v1609 = vshrl.u32 2475754826, %v1606
      %v1610 = vor.u32 %v1608, %v1609
      %v1611 = vshll.u32 2475754826, %v1605
      %v1612 = vshrl.u32 2131351028, %v1606
      %v1613 = vor.u32 %v1611, %v1612
      %v1614 = vshll.u32 2131351028, %v1605
      %v1615 = vshrl.u32 2102212464, %v1606
      %v1616 = vor.u32 %v1614, %v1615
      %v1617 = vshll.u32 2102212464, %v1605
      %v1618 = vshrl.u32 920167782, %v1606
      %v1619 = vor.u32 %v1617, %v1618
      %v1620 = vshll.u32 920167782, %v1605
      %v1621 = vshrl.u32 1326507024, %v1606
      %v1622 = vor.u32 %v1620, %v1621
      %vm1623 = vcmp.lt.s32.totalorder %v1604, 1
      %vm1624 = vcmp.lt.s32.totalorder %v1604, 2
      %vm1625 = vcmp.lt.s32.totalorder %v1604, 3
      %vm1626 = vcmp.lt.s32.totalorder %v1604, 4
      %v1627 = vsel %vm1623, %v1607, %v1610
      %v1628 = vsel %vm1626, %v1616, 2102212464
      %v1629 = vsel %vm1625, %v1613, %v1628
      %v1630 = vsel %vm1624, %v1627, %v1629
      %v1631 = vsel %vm1623, %v1610, %v1613
      %v1632 = vsel %vm1626, %v1619, 920167782
      %v1633 = vsel %vm1625, %v1616, %v1632
      %v1634 = vsel %vm1624, %v1631, %v1633
      %v1635 = vsel %vm1623, %v1613, %v1616
      %v1636 = vsel %vm1626, %v1622, 1326507024
      %v1637 = vsel %vm1625, %v1619, %v1636
      %v1638 = vsel %vm1624, %v1635, %v1637
      %v1639 = vshll.u32 %v1599, 8
      %v1640 = vmul.u32.u64.compose %v1639, %v1638
      %v1641 = vextract.low.u32 %v1640
      %v1642 = vextract.high.u32 %v1640
      %v1643 = vmul.u32.u64.compose %v1639, %v1634
      %v1644 = vextract.low.u32 %v1643
      %v1645 = vextract.high.u32 %v1643
      %v1646 = vmul.u32 %v1639, %v1630
      %v1647 = vadd.s32 %v1642, %v1644
      %vm1648 = vc.u32 %v1642, %v1644
      %v1649 = vadd.s32 %v1645, 1
      %v1650 = vsel %vm1648, %v1649, %v1645
      %v1651 = vadd.s32 %v1646, %v1650
      %v1652 = vadd.s32 %v1651, 536870912
      %v1653 = vshrl.u32 %v1652, 30
      %v1654 = vshll.u32 %v1653, 30
      %v1655 = vsub.s32 %v1651, %v1654
      %vm1656 = vcmp.lt.s32.totalorder %v1655, 0
      %v1657 = vsub.s32 0, %v1655
      %v1658 = vsel %vm1656, %v1657, %v1655
      %v1659 = vclz %v1658
      %v1660 = vsub.s32 %v1659, 2
      %vm1661 = vcmp.gt.s32.totalorder 0, %v1660
      %v1662 = vsel %vm1661, 0, %v1660
      %v1663 = vsub.s32 32, %v1662
      %v1664 = vshll.u32 %v1655, %v1662
      %v1665 = vshrl.u32 %v1647, %v1663
      %v1666 = vor.u32 %v1664, %v1665
      %v1667 = vsub.s32 4294967266, %v1662
      %v1668 = vadd.s32 %v1667, 127
      %v1669 = vshll.u32 %v1668, 23
      %v1670 = vor.u32 4788187, %v1669
      %v1671 = vand.u32 2147483647, %v1670
      %v1673 = vcvt.s32.f32 %v1666
      %v1674 = vmul.f32 %v1673, %v1671
      %v1675 = vxor.u32 %v1674, 2147483648
      %v1676 = vsel %vm1593, %v1675, %v1674
      %v1677 = vsub.s32 4, %v1653
      %v1678 = vsel %vm1593, %v1677, %v1653
      %v1679 = vsel %vm1592, %v236, %v1676
      %v1680 = vsel %vm1592, 0, %v1678
      %v1681 = vcosq.f32.pop %v1679
      %v1682 = vsinq.f32.pop %v1679
      %vm1683 = vweird.f32 %v236
      %v1684 = vadd.s32 %v1680, 3
      %v1685 = vand.u32 %v1684, 3
      %vm1686 = vcmp.lt.s32.totalorder %v1685, 2
      %vm1687 = vcmp.eq.s32.totalorder %v1685, 0
      %v1688 = vxor.u32 %v1682, 2147483648
      %v1689 = vsel %vm1687, %v1681, %v1688
      %vm1690 = vcmp.eq.s32.totalorder %v1685, 2
      %v1691 = vxor.u32 %v1681, 2147483648
      %v1692 = vsel %vm1690, %v1691, %v1682
      %v1693 = vsel %vm1686, %v1689, %v1692
      %v1694 = vsel %vm1683, nan, %v1693
      %v1695 = vand.u32 2147483647, %v237
      %vm1696 = vcmp.le.f32.partialorder %v1695, 0.7853982
      %vm1697 = vcmp.lt.s32.totalorder %v237, 0
      %v1698 = vand.u32 %v237, 2139095040
      %v1699 = vshrl.u32 %v1698, 23
      %v1700 = vsub.s32 %v1699, 127
      %v1701 = vand.u32 2147483647, %v237
      %v1702 = vand.u32 %v1701, 8388607
      %v1703 = vor.u32 %v1702, 8388608
      %v1704 = vsub.s32 0, %v1703
      %v1705 = vadd.s32 %v1700, 1
      %vm1706 = vcmp.gt.s32.totalorder %v1705, 0
      %v1707 = vsel %vm1706, %v1705, 0
      %v1708 = vshrl.u32 %v1707, 5
      %v1709 = vand.u32 %v1707, 31
      %v1710 = vsub.s32 32, %v1709
      %v1711 = vshrl.u32 683565275, %v1710
      %v1712 = vshll.u32 683565275, %v1709
      %v1713 = vshrl.u32 2475754826, %v1710
      %v1714 = vor.u32 %v1712, %v1713
      %v1715 = vshll.u32 2475754826, %v1709
      %v1716 = vshrl.u32 2131351028, %v1710
      %v1717 = vor.u32 %v1715, %v1716
      %v1718 = vshll.u32 2131351028, %v1709
      %v1719 = vshrl.u32 2102212464, %v1710
      %v1720 = vor.u32 %v1718, %v1719
      %v1721 = vshll.u32 2102212464, %v1709
      %v1722 = vshrl.u32 920167782, %v1710
      %v1723 = vor.u32 %v1721, %v1722
      %v1724 = vshll.u32 920167782, %v1709
      %v1725 = vshrl.u32 1326507024, %v1710
      %v1726 = vor.u32 %v1724, %v1725
      %vm1727 = vcmp.lt.s32.totalorder %v1708, 1
      %vm1728 = vcmp.lt.s32.totalorder %v1708, 2
      %vm1729 = vcmp.lt.s32.totalorder %v1708, 3
      %vm1730 = vcmp.lt.s32.totalorder %v1708, 4
      %v1731 = vsel %vm1727, %v1711, %v1714
      %v1732 = vsel %vm1730, %v1720, 2102212464
      %v1733 = vsel %vm1729, %v1717, %v1732
      %v1734 = vsel %vm1728, %v1731, %v1733
      %v1735 = vsel %vm1727, %v1714, %v1717
      %v1736 = vsel %vm1730, %v1723, 920167782
      %v1737 = vsel %vm1729, %v1720, %v1736
      %v1738 = vsel %vm1728, %v1735, %v1737
      %v1739 = vsel %vm1727, %v1717, %v1720
      %v1740 = vsel %vm1730, %v1726, 1326507024
      %v1741 = vsel %vm1729, %v1723, %v1740
      %v1742 = vsel %vm1728, %v1739, %v1741
      %v1743 = vshll.u32 %v1703, 8
      %v1744 = vmul.u32.u64.compose %v1743, %v1742
      %v1745 = vextract.low.u32 %v1744
      %v1746 = vextract.high.u32 %v1744
      %v1747 = vmul.u32.u64.compose %v1743, %v1738
      %v1748 = vextract.low.u32 %v1747
      %v1749 = vextract.high.u32 %v1747
      %v1750 = vmul.u32 %v1743, %v1734
      %v1751 = vadd.s32 %v1746, %v1748
      %vm1752 = vc.u32 %v1746, %v1748
      %v1753 = vadd.s32 %v1749, 1
      %v1754 = vsel %vm1752, %v1753, %v1749
      %v1755 = vadd.s32 %v1750, %v1754
      %v1756 = vadd.s32 %v1755, 536870912
      %v1757 = vshrl.u32 %v1756, 30
      %v1758 = vshll.u32 %v1757, 30
      %v1759 = vsub.s32 %v1755, %v1758
      %vm1760 = vcmp.lt.s32.totalorder %v1759, 0
      %v1761 = vsub.s32 0, %v1759
      %v1762 = vsel %vm1760, %v1761, %v1759
      %v1763 = vclz %v1762
      %v1764 = vsub.s32 %v1763, 2
      %vm1765 = vcmp.gt.s32.totalorder 0, %v1764
      %v1766 = vsel %vm1765, 0, %v1764
      %v1767 = vsub.s32 32, %v1766
      %v1768 = vshll.u32 %v1759, %v1766
      %v1769 = vshrl.u32 %v1751, %v1767
      %v1770 = vor.u32 %v1768, %v1769
      %v1771 = vsub.s32 4294967266, %v1766
      %v1772 = vadd.s32 %v1771, 127
      %v1773 = vshll.u32 %v1772, 23
      %v1774 = vor.u32 4788187, %v1773
      %v1775 = vand.u32 2147483647, %v1774
      %v1777 = vcvt.s32.f32 %v1770
      %v1778 = vmul.f32 %v1777, %v1775
      %v1779 = vxor.u32 %v1778, 2147483648
      %v1780 = vsel %vm1697, %v1779, %v1778
      %v1781 = vsub.s32 4, %v1757
      %v1782 = vsel %vm1697, %v1781, %v1757
      %v1783 = vsel %vm1696, %v237, %v1780
      %v1784 = vsel %vm1696, 0, %v1782
      %v1785 = vcosq.f32.pop %v1783
      %v1786 = vsinq.f32.pop %v1783
      %vm1787 = vweird.f32 %v237
      %v1788 = vadd.s32 %v1784, 3
      %v1789 = vand.u32 %v1788, 3
      %vm1790 = vcmp.lt.s32.totalorder %v1789, 2
      %vm1791 = vcmp.eq.s32.totalorder %v1789, 0
      %v1792 = vxor.u32 %v1786, 2147483648
      %v1793 = vsel %vm1791, %v1785, %v1792
      %vm1794 = vcmp.eq.s32.totalorder %v1789, 2
      %v1795 = vxor.u32 %v1785, 2147483648
      %v1796 = vsel %vm1794, %v1795, %v1786
      %v1797 = vsel %vm1790, %v1793, %v1796
      %v1798 = vsel %vm1787, nan, %v1797
      %v1799 = vand.u32 2147483647, %v238
      %vm1800 = vcmp.le.f32.partialorder %v1799, 0.7853982
      %vm1801 = vcmp.lt.s32.totalorder %v238, 0
      %v1802 = vand.u32 %v238, 2139095040
      %v1803 = vshrl.u32 %v1802, 23
      %v1804 = vsub.s32 %v1803, 127
      %v1805 = vand.u32 2147483647, %v238
      %v1806 = vand.u32 %v1805, 8388607
      %v1807 = vor.u32 %v1806, 8388608
      %v1808 = vsub.s32 0, %v1807
      %v1809 = vadd.s32 %v1804, 1
      %vm1810 = vcmp.gt.s32.totalorder %v1809, 0
      %v1811 = vsel %vm1810, %v1809, 0
      %v1812 = vshrl.u32 %v1811, 5
      %v1813 = vand.u32 %v1811, 31
      %v1814 = vsub.s32 32, %v1813
      %v1815 = vshrl.u32 683565275, %v1814
      %v1816 = vshll.u32 683565275, %v1813
      %v1817 = vshrl.u32 2475754826, %v1814
      %v1818 = vor.u32 %v1816, %v1817
      %v1819 = vshll.u32 2475754826, %v1813
      %v1820 = vshrl.u32 2131351028, %v1814
      %v1821 = vor.u32 %v1819, %v1820
      %v1822 = vshll.u32 2131351028, %v1813
      %v1823 = vshrl.u32 2102212464, %v1814
      %v1824 = vor.u32 %v1822, %v1823
      %v1825 = vshll.u32 2102212464, %v1813
      %v1826 = vshrl.u32 920167782, %v1814
      %v1827 = vor.u32 %v1825, %v1826
      %v1828 = vshll.u32 920167782, %v1813
      %v1829 = vshrl.u32 1326507024, %v1814
      %v1830 = vor.u32 %v1828, %v1829
      %vm1831 = vcmp.lt.s32.totalorder %v1812, 1
      %vm1832 = vcmp.lt.s32.totalorder %v1812, 2
      %vm1833 = vcmp.lt.s32.totalorder %v1812, 3
      %vm1834 = vcmp.lt.s32.totalorder %v1812, 4
      %v1835 = vsel %vm1831, %v1815, %v1818
      %v1836 = vsel %vm1834, %v1824, 2102212464
      %v1837 = vsel %vm1833, %v1821, %v1836
      %v1838 = vsel %vm1832, %v1835, %v1837
      %v1839 = vsel %vm1831, %v1818, %v1821
      %v1840 = vsel %vm1834, %v1827, 920167782
      %v1841 = vsel %vm1833, %v1824, %v1840
      %v1842 = vsel %vm1832, %v1839, %v1841
      %v1843 = vsel %vm1831, %v1821, %v1824
      %v1844 = vsel %vm1834, %v1830, 1326507024
      %v1845 = vsel %vm1833, %v1827, %v1844
      %v1846 = vsel %vm1832, %v1843, %v1845
      %v1847 = vshll.u32 %v1807, 8
      %v1848 = vmul.u32.u64.compose %v1847, %v1846
      %v1849 = vextract.low.u32 %v1848
      %v1850 = vextract.high.u32 %v1848
      %v1851 = vmul.u32.u64.compose %v1847, %v1842
      %v1852 = vextract.low.u32 %v1851
      %v1853 = vextract.high.u32 %v1851
      %v1854 = vmul.u32 %v1847, %v1838
      %v1855 = vadd.s32 %v1850, %v1852
      %vm1856 = vc.u32 %v1850, %v1852
      %v1857 = vadd.s32 %v1853, 1
      %v1858 = vsel %vm1856, %v1857, %v1853
      %v1859 = vadd.s32 %v1854, %v1858
      %v1860 = vadd.s32 %v1859, 536870912
      %v1861 = vshrl.u32 %v1860, 30
      %v1862 = vshll.u32 %v1861, 30
      %v1863 = vsub.s32 %v1859, %v1862
      %vm1864 = vcmp.lt.s32.totalorder %v1863, 0
      %v1865 = vsub.s32 0, %v1863
      %v1866 = vsel %vm1864, %v1865, %v1863
      %v1867 = vclz %v1866
      %v1868 = vsub.s32 %v1867, 2
      %vm1869 = vcmp.gt.s32.totalorder 0, %v1868
      %v1870 = vsel %vm1869, 0, %v1868
      %v1871 = vsub.s32 32, %v1870
      %v1872 = vshll.u32 %v1863, %v1870
      %v1873 = vshrl.u32 %v1855, %v1871
      %v1874 = vor.u32 %v1872, %v1873
      %v1875 = vsub.s32 4294967266, %v1870
      %v1876 = vadd.s32 %v1875, 127
      %v1877 = vshll.u32 %v1876, 23
      %v1878 = vor.u32 4788187, %v1877
      %v1879 = vand.u32 2147483647, %v1878
      %v1881 = vcvt.s32.f32 %v1874
      %v1882 = vmul.f32 %v1881, %v1879
      %v1883 = vxor.u32 %v1882, 2147483648
      %v1884 = vsel %vm1801, %v1883, %v1882
      %v1885 = vsub.s32 4, %v1861
      %v1886 = vsel %vm1801, %v1885, %v1861
      %v1887 = vsel %vm1800, %v238, %v1884
      %v1888 = vsel %vm1800, 0, %v1886
      %v1889 = vcosq.f32.pop %v1887
      %v1890 = vsinq.f32.pop %v1887
      %vm1891 = vweird.f32 %v238
      %v1892 = vadd.s32 %v1888, 3
      %v1893 = vand.u32 %v1892, 3
      %vm1894 = vcmp.lt.s32.totalorder %v1893, 2
      %vm1895 = vcmp.eq.s32.totalorder %v1893, 0
      %v1896 = vxor.u32 %v1890, 2147483648
      %v1897 = vsel %vm1895, %v1889, %v1896
      %vm1898 = vcmp.eq.s32.totalorder %v1893, 2
      %v1899 = vxor.u32 %v1889, 2147483648
      %v1900 = vsel %vm1898, %v1899, %v1890
      %v1901 = vsel %vm1894, %v1897, %v1900
      %v1902 = vsel %vm1891, nan, %v1901
      %v1903 = vld [vmem:[%s215] sm:$0xff]
      %v1904 = vld [vmem:[%s215 + $0x8] sm:$0xff]
      %v1905 = vld [vmem:[%s215 + $0x10] sm:$0xff]
      %v1906 = vld [vmem:[%s215 + $0x18] sm:$0xff]
      %v1907 = vld [vmem:[%s215 + $0x20] sm:$0xff]
      %v1908 = vld [vmem:[%s215 + $0x28] sm:$0xff]
      %v1909 = vld [vmem:[%s215 + $0x30] sm:$0xff]
      %v1910 = vld [vmem:[%s215 + $0x38] sm:$0xff]
      %v1911 = vld [vmem:[%s215 + $0x40] sm:$0xff]
      %v1912 = vld [vmem:[%s215 + $0x48] sm:$0xff]
      %v1913 = vld [vmem:[%s215 + $0x50] sm:$0xff]
      %v1914 = vld [vmem:[%s215 + $0x58] sm:$0xff]
      %v1915 = vld [vmem:[%s215 + $0x60] sm:$0xff]
      %v1916 = vld [vmem:[%s215 + $0x68] sm:$0xff]
      %v1917 = vld [vmem:[%s215 + $0x70] sm:$0xff]
      %v1918 = vld [vmem:[%s215 + $0x78] sm:$0xff]
      %v1919 = vand.u32 2147483647, %v1903
      %vm1920 = vcmp.le.f32.partialorder %v1919, 0.7853982
      %vm1921 = vcmp.lt.s32.totalorder %v1903, 0
      %v1922 = vand.u32 %v1903, 2139095040
      %v1923 = vshrl.u32 %v1922, 23
      %v1924 = vsub.s32 %v1923, 127
      %v1925 = vand.u32 2147483647, %v1903
      %v1926 = vand.u32 %v1925, 8388607
      %v1927 = vor.u32 %v1926, 8388608
      %v1928 = vsub.s32 0, %v1927
      %v1929 = vadd.s32 %v1924, 1
      %vm1930 = vcmp.gt.s32.totalorder %v1929, 0
      %v1931 = vsel %vm1930, %v1929, 0
      %v1932 = vshrl.u32 %v1931, 5
      %v1933 = vand.u32 %v1931, 31
      %v1934 = vsub.s32 32, %v1933
      %v1935 = vshrl.u32 683565275, %v1934
      %v1936 = vshll.u32 683565275, %v1933
      %v1937 = vshrl.u32 2475754826, %v1934
      %v1938 = vor.u32 %v1936, %v1937
      %v1939 = vshll.u32 2475754826, %v1933
      %v1940 = vshrl.u32 2131351028, %v1934
      %v1941 = vor.u32 %v1939, %v1940
      %v1942 = vshll.u32 2131351028, %v1933
      %v1943 = vshrl.u32 2102212464, %v1934
      %v1944 = vor.u32 %v1942, %v1943
      %v1945 = vshll.u32 2102212464, %v1933
      %v1946 = vshrl.u32 920167782, %v1934
      %v1947 = vor.u32 %v1945, %v1946
      %v1948 = vshll.u32 920167782, %v1933
      %v1949 = vshrl.u32 1326507024, %v1934
      %v1950 = vor.u32 %v1948, %v1949
      %vm1951 = vcmp.lt.s32.totalorder %v1932, 1
      %vm1952 = vcmp.lt.s32.totalorder %v1932, 2
      %vm1953 = vcmp.lt.s32.totalorder %v1932, 3
      %vm1954 = vcmp.lt.s32.totalorder %v1932, 4
      %v1955 = vsel %vm1951, %v1935, %v1938
      %v1956 = vsel %vm1954, %v1944, 2102212464
      %v1957 = vsel %vm1953, %v1941, %v1956
      %v1958 = vsel %vm1952, %v1955, %v1957
      %v1959 = vsel %vm1951, %v1938, %v1941
      %v1960 = vsel %vm1954, %v1947, 920167782
      %v1961 = vsel %vm1953, %v1944, %v1960
      %v1962 = vsel %vm1952, %v1959, %v1961
      %v1963 = vsel %vm1951, %v1941, %v1944
      %v1964 = vsel %vm1954, %v1950, 1326507024
      %v1965 = vsel %vm1953, %v1947, %v1964
      %v1966 = vsel %vm1952, %v1963, %v1965
      %v1967 = vshll.u32 %v1927, 8
      %v1968 = vmul.u32.u64.compose %v1967, %v1966
      %v1969 = vextract.low.u32 %v1968
      %v1970 = vextract.high.u32 %v1968
      %v1971 = vmul.u32.u64.compose %v1967, %v1962
      %v1972 = vextract.low.u32 %v1971
      %v1973 = vextract.high.u32 %v1971
      %v1974 = vmul.u32 %v1967, %v1958
      %v1975 = vadd.s32 %v1970, %v1972
      %vm1976 = vc.u32 %v1970, %v1972
      %v1977 = vadd.s32 %v1973, 1
      %v1978 = vsel %vm1976, %v1977, %v1973
      %v1979 = vadd.s32 %v1974, %v1978
      %v1980 = vadd.s32 %v1979, 536870912
      %v1981 = vshrl.u32 %v1980, 30
      %v1982 = vshll.u32 %v1981, 30
      %v1983 = vsub.s32 %v1979, %v1982
      %vm1984 = vcmp.lt.s32.totalorder %v1983, 0
      %v1985 = vsub.s32 0, %v1983
      %v1986 = vsel %vm1984, %v1985, %v1983
      %v1987 = vclz %v1986
      %v1988 = vsub.s32 %v1987, 2
      %vm1989 = vcmp.gt.s32.totalorder 0, %v1988
      %v1990 = vsel %vm1989, 0, %v1988
      %v1991 = vsub.s32 32, %v1990
      %v1992 = vshll.u32 %v1983, %v1990
      %v1993 = vshrl.u32 %v1975, %v1991
      %v1994 = vor.u32 %v1992, %v1993
      %v1995 = vsub.s32 4294967266, %v1990
      %v1996 = vadd.s32 %v1995, 127
      %v1997 = vshll.u32 %v1996, 23
      %v1998 = vor.u32 4788187, %v1997
      %v1999 = vand.u32 2147483647, %v1998
      %v2001 = vcvt.s32.f32 %v1994
      %v2002 = vmul.f32 %v2001, %v1999
      %v2003 = vxor.u32 %v2002, 2147483648
      %v2004 = vsel %vm1921, %v2003, %v2002
      %v2005 = vsub.s32 4, %v1981
      %v2006 = vsel %vm1921, %v2005, %v1981
      %v2007 = vsel %vm1920, %v1903, %v2004
      %v2008 = vsel %vm1920, 0, %v2006
      %v2009 = vcosq.f32.pop %v2007
      %v2010 = vsinq.f32.pop %v2007
      %vm2011 = vweird.f32 %v1903
      %v2012 = vand.u32 %v2008, 3
      %vm2013 = vcmp.lt.s32.totalorder %v2012, 2
      %vm2014 = vcmp.eq.s32.totalorder %v2012, 0
      %v2015 = vxor.u32 %v2010, 2147483648
      %v2016 = vsel %vm2014, %v2009, %v2015
      %vm2017 = vcmp.eq.s32.totalorder %v2012, 2
      %v2018 = vxor.u32 %v2009, 2147483648
      %v2019 = vsel %vm2017, %v2018, %v2010
      %v2020 = vsel %vm2013, %v2016, %v2019
      %v2021 = vsel %vm2011, nan, %v2020
      %v2022 = vand.u32 2147483647, %v1904
      %vm2023 = vcmp.le.f32.partialorder %v2022, 0.7853982
      %vm2024 = vcmp.lt.s32.totalorder %v1904, 0
      %v2025 = vand.u32 %v1904, 2139095040
      %v2026 = vshrl.u32 %v2025, 23
      %v2027 = vsub.s32 %v2026, 127
      %v2028 = vand.u32 2147483647, %v1904
      %v2029 = vand.u32 %v2028, 8388607
      %v2030 = vor.u32 %v2029, 8388608
      %v2031 = vsub.s32 0, %v2030
      %v2032 = vadd.s32 %v2027, 1
      %vm2033 = vcmp.gt.s32.totalorder %v2032, 0
      %v2034 = vsel %vm2033, %v2032, 0
      %v2035 = vshrl.u32 %v2034, 5
      %v2036 = vand.u32 %v2034, 31
      %v2037 = vsub.s32 32, %v2036
      %v2038 = vshrl.u32 683565275, %v2037
      %v2039 = vshll.u32 683565275, %v2036
      %v2040 = vshrl.u32 2475754826, %v2037
      %v2041 = vor.u32 %v2039, %v2040
      %v2042 = vshll.u32 2475754826, %v2036
      %v2043 = vshrl.u32 2131351028, %v2037
      %v2044 = vor.u32 %v2042, %v2043
      %v2045 = vshll.u32 2131351028, %v2036
      %v2046 = vshrl.u32 2102212464, %v2037
      %v2047 = vor.u32 %v2045, %v2046
      %v2048 = vshll.u32 2102212464, %v2036
      %v2049 = vshrl.u32 920167782, %v2037
      %v2050 = vor.u32 %v2048, %v2049
      %v2051 = vshll.u32 920167782, %v2036
      %v2052 = vshrl.u32 1326507024, %v2037
      %v2053 = vor.u32 %v2051, %v2052
      %vm2054 = vcmp.lt.s32.totalorder %v2035, 1
      %vm2055 = vcmp.lt.s32.totalorder %v2035, 2
      %vm2056 = vcmp.lt.s32.totalorder %v2035, 3
      %vm2057 = vcmp.lt.s32.totalorder %v2035, 4
      %v2058 = vsel %vm2054, %v2038, %v2041
      %v2059 = vsel %vm2057, %v2047, 2102212464
      %v2060 = vsel %vm2056, %v2044, %v2059
      %v2061 = vsel %vm2055, %v2058, %v2060
      %v2062 = vsel %vm2054, %v2041, %v2044
      %v2063 = vsel %vm2057, %v2050, 920167782
      %v2064 = vsel %vm2056, %v2047, %v2063
      %v2065 = vsel %vm2055, %v2062, %v2064
      %v2066 = vsel %vm2054, %v2044, %v2047
      %v2067 = vsel %vm2057, %v2053, 1326507024
      %v2068 = vsel %vm2056, %v2050, %v2067
      %v2069 = vsel %vm2055, %v2066, %v2068
      %v2070 = vshll.u32 %v2030, 8
      %v2071 = vmul.u32.u64.compose %v2070, %v2069
      %v2072 = vextract.low.u32 %v2071
      %v2073 = vextract.high.u32 %v2071
      %v2074 = vmul.u32.u64.compose %v2070, %v2065
      %v2075 = vextract.low.u32 %v2074
      %v2076 = vextract.high.u32 %v2074
      %v2077 = vmul.u32 %v2070, %v2061
      %v2078 = vadd.s32 %v2073, %v2075
      %vm2079 = vc.u32 %v2073, %v2075
      %v2080 = vadd.s32 %v2076, 1
      %v2081 = vsel %vm2079, %v2080, %v2076
      %v2082 = vadd.s32 %v2077, %v2081
      %v2083 = vadd.s32 %v2082, 536870912
      %v2084 = vshrl.u32 %v2083, 30
      %v2085 = vshll.u32 %v2084, 30
      %v2086 = vsub.s32 %v2082, %v2085
      %vm2087 = vcmp.lt.s32.totalorder %v2086, 0
      %v2088 = vsub.s32 0, %v2086
      %v2089 = vsel %vm2087, %v2088, %v2086
      %v2090 = vclz %v2089
      %v2091 = vsub.s32 %v2090, 2
      %vm2092 = vcmp.gt.s32.totalorder 0, %v2091
      %v2093 = vsel %vm2092, 0, %v2091
      %v2094 = vsub.s32 32, %v2093
      %v2095 = vshll.u32 %v2086, %v2093
      %v2096 = vshrl.u32 %v2078, %v2094
      %v2097 = vor.u32 %v2095, %v2096
      %v2098 = vsub.s32 4294967266, %v2093
      %v2099 = vadd.s32 %v2098, 127
      %v2100 = vshll.u32 %v2099, 23
      %v2101 = vor.u32 4788187, %v2100
      %v2102 = vand.u32 2147483647, %v2101
      %v2104 = vcvt.s32.f32 %v2097
      %v2105 = vmul.f32 %v2104, %v2102
      %v2106 = vxor.u32 %v2105, 2147483648
      %v2107 = vsel %vm2024, %v2106, %v2105
      %v2108 = vsub.s32 4, %v2084
      %v2109 = vsel %vm2024, %v2108, %v2084
      %v2110 = vsel %vm2023, %v1904, %v2107
      %v2111 = vsel %vm2023, 0, %v2109
      %v2112 = vcosq.f32.pop %v2110
      %v2113 = vsinq.f32.pop %v2110
      %vm2114 = vweird.f32 %v1904
      %v2115 = vand.u32 %v2111, 3
      %vm2116 = vcmp.lt.s32.totalorder %v2115, 2
      %vm2117 = vcmp.eq.s32.totalorder %v2115, 0
      %v2118 = vxor.u32 %v2113, 2147483648
      %v2119 = vsel %vm2117, %v2112, %v2118
      %vm2120 = vcmp.eq.s32.totalorder %v2115, 2
      %v2121 = vxor.u32 %v2112, 2147483648
      %v2122 = vsel %vm2120, %v2121, %v2113
      %v2123 = vsel %vm2116, %v2119, %v2122
      %v2124 = vsel %vm2114, nan, %v2123
      %v2125 = vand.u32 2147483647, %v1905
      %vm2126 = vcmp.le.f32.partialorder %v2125, 0.7853982
      %vm2127 = vcmp.lt.s32.totalorder %v1905, 0
      %v2128 = vand.u32 %v1905, 2139095040
      %v2129 = vshrl.u32 %v2128, 23
      %v2130 = vsub.s32 %v2129, 127
      %v2131 = vand.u32 2147483647, %v1905
      %v2132 = vand.u32 %v2131, 8388607
      %v2133 = vor.u32 %v2132, 8388608
      %v2134 = vsub.s32 0, %v2133
      %v2135 = vadd.s32 %v2130, 1
      %vm2136 = vcmp.gt.s32.totalorder %v2135, 0
      %v2137 = vsel %vm2136, %v2135, 0
      %v2138 = vshrl.u32 %v2137, 5
      %v2139 = vand.u32 %v2137, 31
      %v2140 = vsub.s32 32, %v2139
      %v2141 = vshrl.u32 683565275, %v2140
      %v2142 = vshll.u32 683565275, %v2139
      %v2143 = vshrl.u32 2475754826, %v2140
      %v2144 = vor.u32 %v2142, %v2143
      %v2145 = vshll.u32 2475754826, %v2139
      %v2146 = vshrl.u32 2131351028, %v2140
      %v2147 = vor.u32 %v2145, %v2146
      %v2148 = vshll.u32 2131351028, %v2139
      %v2149 = vshrl.u32 2102212464, %v2140
      %v2150 = vor.u32 %v2148, %v2149
      %v2151 = vshll.u32 2102212464, %v2139
      %v2152 = vshrl.u32 920167782, %v2140
      %v2153 = vor.u32 %v2151, %v2152
      %v2154 = vshll.u32 920167782, %v2139
      %v2155 = vshrl.u32 1326507024, %v2140
      %v2156 = vor.u32 %v2154, %v2155
      %vm2157 = vcmp.lt.s32.totalorder %v2138, 1
      %vm2158 = vcmp.lt.s32.totalorder %v2138, 2
      %vm2159 = vcmp.lt.s32.totalorder %v2138, 3
      %vm2160 = vcmp.lt.s32.totalorder %v2138, 4
      %v2161 = vsel %vm2157, %v2141, %v2144
      %v2162 = vsel %vm2160, %v2150, 2102212464
      %v2163 = vsel %vm2159, %v2147, %v2162
      %v2164 = vsel %vm2158, %v2161, %v2163
      %v2165 = vsel %vm2157, %v2144, %v2147
      %v2166 = vsel %vm2160, %v2153, 920167782
      %v2167 = vsel %vm2159, %v2150, %v2166
      %v2168 = vsel %vm2158, %v2165, %v2167
      %v2169 = vsel %vm2157, %v2147, %v2150
      %v2170 = vsel %vm2160, %v2156, 1326507024
      %v2171 = vsel %vm2159, %v2153, %v2170
      %v2172 = vsel %vm2158, %v2169, %v2171
      %v2173 = vshll.u32 %v2133, 8
      %v2174 = vmul.u32.u64.compose %v2173, %v2172
      %v2175 = vextract.low.u32 %v2174
      %v2176 = vextract.high.u32 %v2174
      %v2177 = vmul.u32.u64.compose %v2173, %v2168
      %v2178 = vextract.low.u32 %v2177
      %v2179 = vextract.high.u32 %v2177
      %v2180 = vmul.u32 %v2173, %v2164
      %v2181 = vadd.s32 %v2176, %v2178
      %vm2182 = vc.u32 %v2176, %v2178
      %v2183 = vadd.s32 %v2179, 1
      %v2184 = vsel %vm2182, %v2183, %v2179
      %v2185 = vadd.s32 %v2180, %v2184
      %v2186 = vadd.s32 %v2185, 536870912
      %v2187 = vshrl.u32 %v2186, 30
      %v2188 = vshll.u32 %v2187, 30
      %v2189 = vsub.s32 %v2185, %v2188
      %vm2190 = vcmp.lt.s32.totalorder %v2189, 0
      %v2191 = vsub.s32 0, %v2189
      %v2192 = vsel %vm2190, %v2191, %v2189
      %v2193 = vclz %v2192
      %v2194 = vsub.s32 %v2193, 2
      %vm2195 = vcmp.gt.s32.totalorder 0, %v2194
      %v2196 = vsel %vm2195, 0, %v2194
      %v2197 = vsub.s32 32, %v2196
      %v2198 = vshll.u32 %v2189, %v2196
      %v2199 = vshrl.u32 %v2181, %v2197
      %v2200 = vor.u32 %v2198, %v2199
      %v2201 = vsub.s32 4294967266, %v2196
      %v2202 = vadd.s32 %v2201, 127
      %v2203 = vshll.u32 %v2202, 23
      %v2204 = vor.u32 4788187, %v2203
      %v2205 = vand.u32 2147483647, %v2204
      %v2207 = vcvt.s32.f32 %v2200
      %v2208 = vmul.f32 %v2207, %v2205
      %v2209 = vxor.u32 %v2208, 2147483648
      %v2210 = vsel %vm2127, %v2209, %v2208
      %v2211 = vsub.s32 4, %v2187
      %v2212 = vsel %vm2127, %v2211, %v2187
      %v2213 = vsel %vm2126, %v1905, %v2210
      %v2214 = vsel %vm2126, 0, %v2212
      %v2215 = vcosq.f32.pop %v2213
      %v2216 = vsinq.f32.pop %v2213
      %vm2217 = vweird.f32 %v1905
      %v2218 = vand.u32 %v2214, 3
      %vm2219 = vcmp.lt.s32.totalorder %v2218, 2
      %vm2220 = vcmp.eq.s32.totalorder %v2218, 0
      %v2221 = vxor.u32 %v2216, 2147483648
      %v2222 = vsel %vm2220, %v2215, %v2221
      %vm2223 = vcmp.eq.s32.totalorder %v2218, 2
      %v2224 = vxor.u32 %v2215, 2147483648
      %v2225 = vsel %vm2223, %v2224, %v2216
      %v2226 = vsel %vm2219, %v2222, %v2225
      %v2227 = vsel %vm2217, nan, %v2226
      %v2228 = vand.u32 2147483647, %v1906
      %vm2229 = vcmp.le.f32.partialorder %v2228, 0.7853982
      %vm2230 = vcmp.lt.s32.totalorder %v1906, 0
      %v2231 = vand.u32 %v1906, 2139095040
      %v2232 = vshrl.u32 %v2231, 23
      %v2233 = vsub.s32 %v2232, 127
      %v2234 = vand.u32 2147483647, %v1906
      %v2235 = vand.u32 %v2234, 8388607
      %v2236 = vor.u32 %v2235, 8388608
      %v2237 = vsub.s32 0, %v2236
      %v2238 = vadd.s32 %v2233, 1
      %vm2239 = vcmp.gt.s32.totalorder %v2238, 0
      %v2240 = vsel %vm2239, %v2238, 0
      %v2241 = vshrl.u32 %v2240, 5
      %v2242 = vand.u32 %v2240, 31
      %v2243 = vsub.s32 32, %v2242
      %v2244 = vshrl.u32 683565275, %v2243
      %v2245 = vshll.u32 683565275, %v2242
      %v2246 = vshrl.u32 2475754826, %v2243
      %v2247 = vor.u32 %v2245, %v2246
      %v2248 = vshll.u32 2475754826, %v2242
      %v2249 = vshrl.u32 2131351028, %v2243
      %v2250 = vor.u32 %v2248, %v2249
      %v2251 = vshll.u32 2131351028, %v2242
      %v2252 = vshrl.u32 2102212464, %v2243
      %v2253 = vor.u32 %v2251, %v2252
      %v2254 = vshll.u32 2102212464, %v2242
      %v2255 = vshrl.u32 920167782, %v2243
      %v2256 = vor.u32 %v2254, %v2255
      %v2257 = vshll.u32 920167782, %v2242
      %v2258 = vshrl.u32 1326507024, %v2243
      %v2259 = vor.u32 %v2257, %v2258
      %vm2260 = vcmp.lt.s32.totalorder %v2241, 1
      %vm2261 = vcmp.lt.s32.totalorder %v2241, 2
      %vm2262 = vcmp.lt.s32.totalorder %v2241, 3
      %vm2263 = vcmp.lt.s32.totalorder %v2241, 4
      %v2264 = vsel %vm2260, %v2244, %v2247
      %v2265 = vsel %vm2263, %v2253, 2102212464
      %v2266 = vsel %vm2262, %v2250, %v2265
      %v2267 = vsel %vm2261, %v2264, %v2266
      %v2268 = vsel %vm2260, %v2247, %v2250
      %v2269 = vsel %vm2263, %v2256, 920167782
      %v2270 = vsel %vm2262, %v2253, %v2269
      %v2271 = vsel %vm2261, %v2268, %v2270
      %v2272 = vsel %vm2260, %v2250, %v2253
      %v2273 = vsel %vm2263, %v2259, 1326507024
      %v2274 = vsel %vm2262, %v2256, %v2273
      %v2275 = vsel %vm2261, %v2272, %v2274
      %v2276 = vshll.u32 %v2236, 8
      %v2277 = vmul.u32.u64.compose %v2276, %v2275
      %v2278 = vextract.low.u32 %v2277
      %v2279 = vextract.high.u32 %v2277
      %v2280 = vmul.u32.u64.compose %v2276, %v2271
      %v2281 = vextract.low.u32 %v2280
      %v2282 = vextract.high.u32 %v2280
      %v2283 = vmul.u32 %v2276, %v2267
      %v2284 = vadd.s32 %v2279, %v2281
      %vm2285 = vc.u32 %v2279, %v2281
      %v2286 = vadd.s32 %v2282, 1
      %v2287 = vsel %vm2285, %v2286, %v2282
      %v2288 = vadd.s32 %v2283, %v2287
      %v2289 = vadd.s32 %v2288, 536870912
      %v2290 = vshrl.u32 %v2289, 30
      %v2291 = vshll.u32 %v2290, 30
      %v2292 = vsub.s32 %v2288, %v2291
      %vm2293 = vcmp.lt.s32.totalorder %v2292, 0
      %v2294 = vsub.s32 0, %v2292
      %v2295 = vsel %vm2293, %v2294, %v2292
      %v2296 = vclz %v2295
      %v2297 = vsub.s32 %v2296, 2
      %vm2298 = vcmp.gt.s32.totalorder 0, %v2297
      %v2299 = vsel %vm2298, 0, %v2297
      %v2300 = vsub.s32 32, %v2299
      %v2301 = vshll.u32 %v2292, %v2299
      %v2302 = vshrl.u32 %v2284, %v2300
      %v2303 = vor.u32 %v2301, %v2302
      %v2304 = vsub.s32 4294967266, %v2299
      %v2305 = vadd.s32 %v2304, 127
      %v2306 = vshll.u32 %v2305, 23
      %v2307 = vor.u32 4788187, %v2306
      %v2308 = vand.u32 2147483647, %v2307
      %v2310 = vcvt.s32.f32 %v2303
      %v2311 = vmul.f32 %v2310, %v2308
      %v2312 = vxor.u32 %v2311, 2147483648
      %v2313 = vsel %vm2230, %v2312, %v2311
      %v2314 = vsub.s32 4, %v2290
      %v2315 = vsel %vm2230, %v2314, %v2290
      %v2316 = vsel %vm2229, %v1906, %v2313
      %v2317 = vsel %vm2229, 0, %v2315
      %v2318 = vcosq.f32.pop %v2316
      %v2319 = vsinq.f32.pop %v2316
      %vm2320 = vweird.f32 %v1906
      %v2321 = vand.u32 %v2317, 3
      %vm2322 = vcmp.lt.s32.totalorder %v2321, 2
      %vm2323 = vcmp.eq.s32.totalorder %v2321, 0
      %v2324 = vxor.u32 %v2319, 2147483648
      %v2325 = vsel %vm2323, %v2318, %v2324
      %vm2326 = vcmp.eq.s32.totalorder %v2321, 2
      %v2327 = vxor.u32 %v2318, 2147483648
      %v2328 = vsel %vm2326, %v2327, %v2319
      %v2329 = vsel %vm2322, %v2325, %v2328
      %v2330 = vsel %vm2320, nan, %v2329
      %v2331 = vand.u32 2147483647, %v1907
      %vm2332 = vcmp.le.f32.partialorder %v2331, 0.7853982
      %vm2333 = vcmp.lt.s32.totalorder %v1907, 0
      %v2334 = vand.u32 %v1907, 2139095040
      %v2335 = vshrl.u32 %v2334, 23
      %v2336 = vsub.s32 %v2335, 127
      %v2337 = vand.u32 2147483647, %v1907
      %v2338 = vand.u32 %v2337, 8388607
      %v2339 = vor.u32 %v2338, 8388608
      %v2340 = vsub.s32 0, %v2339
      %v2341 = vadd.s32 %v2336, 1
      %vm2342 = vcmp.gt.s32.totalorder %v2341, 0
      %v2343 = vsel %vm2342, %v2341, 0
      %v2344 = vshrl.u32 %v2343, 5
      %v2345 = vand.u32 %v2343, 31
      %v2346 = vsub.s32 32, %v2345
      %v2347 = vshrl.u32 683565275, %v2346
      %v2348 = vshll.u32 683565275, %v2345
      %v2349 = vshrl.u32 2475754826, %v2346
      %v2350 = vor.u32 %v2348, %v2349
      %v2351 = vshll.u32 2475754826, %v2345
      %v2352 = vshrl.u32 2131351028, %v2346
      %v2353 = vor.u32 %v2351, %v2352
      %v2354 = vshll.u32 2131351028, %v2345
      %v2355 = vshrl.u32 2102212464, %v2346
      %v2356 = vor.u32 %v2354, %v2355
      %v2357 = vshll.u32 2102212464, %v2345
      %v2358 = vshrl.u32 920167782, %v2346
      %v2359 = vor.u32 %v2357, %v2358
      %v2360 = vshll.u32 920167782, %v2345
      %v2361 = vshrl.u32 1326507024, %v2346
      %v2362 = vor.u32 %v2360, %v2361
      %vm2363 = vcmp.lt.s32.totalorder %v2344, 1
      %vm2364 = vcmp.lt.s32.totalorder %v2344, 2
      %vm2365 = vcmp.lt.s32.totalorder %v2344, 3
      %vm2366 = vcmp.lt.s32.totalorder %v2344, 4
      %v2367 = vsel %vm2363, %v2347, %v2350
      %v2368 = vsel %vm2366, %v2356, 2102212464
      %v2369 = vsel %vm2365, %v2353, %v2368
      %v2370 = vsel %vm2364, %v2367, %v2369
      %v2371 = vsel %vm2363, %v2350, %v2353
      %v2372 = vsel %vm2366, %v2359, 920167782
      %v2373 = vsel %vm2365, %v2356, %v2372
      %v2374 = vsel %vm2364, %v2371, %v2373
      %v2375 = vsel %vm2363, %v2353, %v2356
      %v2376 = vsel %vm2366, %v2362, 1326507024
      %v2377 = vsel %vm2365, %v2359, %v2376
      %v2378 = vsel %vm2364, %v2375, %v2377
      %v2379 = vshll.u32 %v2339, 8
      %v2380 = vmul.u32.u64.compose %v2379, %v2378
      %v2381 = vextract.low.u32 %v2380
      %v2382 = vextract.high.u32 %v2380
      %v2383 = vmul.u32.u64.compose %v2379, %v2374
      %v2384 = vextract.low.u32 %v2383
      %v2385 = vextract.high.u32 %v2383
      %v2386 = vmul.u32 %v2379, %v2370
      %v2387 = vadd.s32 %v2382, %v2384
      %vm2388 = vc.u32 %v2382, %v2384
      %v2389 = vadd.s32 %v2385, 1
      %v2390 = vsel %vm2388, %v2389, %v2385
      %v2391 = vadd.s32 %v2386, %v2390
      %v2392 = vadd.s32 %v2391, 536870912
      %v2393 = vshrl.u32 %v2392, 30
      %v2394 = vshll.u32 %v2393, 30
      %v2395 = vsub.s32 %v2391, %v2394
      %vm2396 = vcmp.lt.s32.totalorder %v2395, 0
      %v2397 = vsub.s32 0, %v2395
      %v2398 = vsel %vm2396, %v2397, %v2395
      %v2399 = vclz %v2398
      %v2400 = vsub.s32 %v2399, 2
      %vm2401 = vcmp.gt.s32.totalorder 0, %v2400
      %v2402 = vsel %vm2401, 0, %v2400
      %v2403 = vsub.s32 32, %v2402
      %v2404 = vshll.u32 %v2395, %v2402
      %v2405 = vshrl.u32 %v2387, %v2403
      %v2406 = vor.u32 %v2404, %v2405
      %v2407 = vsub.s32 4294967266, %v2402
      %v2408 = vadd.s32 %v2407, 127
      %v2409 = vshll.u32 %v2408, 23
      %v2410 = vor.u32 4788187, %v2409
      %v2411 = vand.u32 2147483647, %v2410
      %v2413 = vcvt.s32.f32 %v2406
      %v2414 = vmul.f32 %v2413, %v2411
      %v2415 = vxor.u32 %v2414, 2147483648
      %v2416 = vsel %vm2333, %v2415, %v2414
      %v2417 = vsub.s32 4, %v2393
      %v2418 = vsel %vm2333, %v2417, %v2393
      %v2419 = vsel %vm2332, %v1907, %v2416
      %v2420 = vsel %vm2332, 0, %v2418
      %v2421 = vcosq.f32.pop %v2419
      %v2422 = vsinq.f32.pop %v2419
      %vm2423 = vweird.f32 %v1907
      %v2424 = vand.u32 %v2420, 3
      %vm2425 = vcmp.lt.s32.totalorder %v2424, 2
      %vm2426 = vcmp.eq.s32.totalorder %v2424, 0
      %v2427 = vxor.u32 %v2422, 2147483648
      %v2428 = vsel %vm2426, %v2421, %v2427
      %vm2429 = vcmp.eq.s32.totalorder %v2424, 2
      %v2430 = vxor.u32 %v2421, 2147483648
      %v2431 = vsel %vm2429, %v2430, %v2422
      %v2432 = vsel %vm2425, %v2428, %v2431
      %v2433 = vsel %vm2423, nan, %v2432
      %v2434 = vand.u32 2147483647, %v1908
      %vm2435 = vcmp.le.f32.partialorder %v2434, 0.7853982
      %vm2436 = vcmp.lt.s32.totalorder %v1908, 0
      %v2437 = vand.u32 %v1908, 2139095040
      %v2438 = vshrl.u32 %v2437, 23
      %v2439 = vsub.s32 %v2438, 127
      %v2440 = vand.u32 2147483647, %v1908
      %v2441 = vand.u32 %v2440, 8388607
      %v2442 = vor.u32 %v2441, 8388608
      %v2443 = vsub.s32 0, %v2442
      %v2444 = vadd.s32 %v2439, 1
      %vm2445 = vcmp.gt.s32.totalorder %v2444, 0
      %v2446 = vsel %vm2445, %v2444, 0
      %v2447 = vshrl.u32 %v2446, 5
      %v2448 = vand.u32 %v2446, 31
      %v2449 = vsub.s32 32, %v2448
      %v2450 = vshrl.u32 683565275, %v2449
      %v2451 = vshll.u32 683565275, %v2448
      %v2452 = vshrl.u32 2475754826, %v2449
      %v2453 = vor.u32 %v2451, %v2452
      %v2454 = vshll.u32 2475754826, %v2448
      %v2455 = vshrl.u32 2131351028, %v2449
      %v2456 = vor.u32 %v2454, %v2455
      %v2457 = vshll.u32 2131351028, %v2448
      %v2458 = vshrl.u32 2102212464, %v2449
      %v2459 = vor.u32 %v2457, %v2458
      %v2460 = vshll.u32 2102212464, %v2448
      %v2461 = vshrl.u32 920167782, %v2449
      %v2462 = vor.u32 %v2460, %v2461
      %v2463 = vshll.u32 920167782, %v2448
      %v2464 = vshrl.u32 1326507024, %v2449
      %v2465 = vor.u32 %v2463, %v2464
      %vm2466 = vcmp.lt.s32.totalorder %v2447, 1
      %vm2467 = vcmp.lt.s32.totalorder %v2447, 2
      %vm2468 = vcmp.lt.s32.totalorder %v2447, 3
      %vm2469 = vcmp.lt.s32.totalorder %v2447, 4
      %v2470 = vsel %vm2466, %v2450, %v2453
      %v2471 = vsel %vm2469, %v2459, 2102212464
      %v2472 = vsel %vm2468, %v2456, %v2471
      %v2473 = vsel %vm2467, %v2470, %v2472
      %v2474 = vsel %vm2466, %v2453, %v2456
      %v2475 = vsel %vm2469, %v2462, 920167782
      %v2476 = vsel %vm2468, %v2459, %v2475
      %v2477 = vsel %vm2467, %v2474, %v2476
      %v2478 = vsel %vm2466, %v2456, %v2459
      %v2479 = vsel %vm2469, %v2465, 1326507024
      %v2480 = vsel %vm2468, %v2462, %v2479
      %v2481 = vsel %vm2467, %v2478, %v2480
      %v2482 = vshll.u32 %v2442, 8
      %v2483 = vmul.u32.u64.compose %v2482, %v2481
      %v2484 = vextract.low.u32 %v2483
      %v2485 = vextract.high.u32 %v2483
      %v2486 = vmul.u32.u64.compose %v2482, %v2477
      %v2487 = vextract.low.u32 %v2486
      %v2488 = vextract.high.u32 %v2486
      %v2489 = vmul.u32 %v2482, %v2473
      %v2490 = vadd.s32 %v2485, %v2487
      %vm2491 = vc.u32 %v2485, %v2487
      %v2492 = vadd.s32 %v2488, 1
      %v2493 = vsel %vm2491, %v2492, %v2488
      %v2494 = vadd.s32 %v2489, %v2493
      %v2495 = vadd.s32 %v2494, 536870912
      %v2496 = vshrl.u32 %v2495, 30
      %v2497 = vshll.u32 %v2496, 30
      %v2498 = vsub.s32 %v2494, %v2497
      %vm2499 = vcmp.lt.s32.totalorder %v2498, 0
      %v2500 = vsub.s32 0, %v2498
      %v2501 = vsel %vm2499, %v2500, %v2498
      %v2502 = vclz %v2501
      %v2503 = vsub.s32 %v2502, 2
      %vm2504 = vcmp.gt.s32.totalorder 0, %v2503
      %v2505 = vsel %vm2504, 0, %v2503
      %v2506 = vsub.s32 32, %v2505
      %v2507 = vshll.u32 %v2498, %v2505
      %v2508 = vshrl.u32 %v2490, %v2506
      %v2509 = vor.u32 %v2507, %v2508
      %v2510 = vsub.s32 4294967266, %v2505
      %v2511 = vadd.s32 %v2510, 127
      %v2512 = vshll.u32 %v2511, 23
      %v2513 = vor.u32 4788187, %v2512
      %v2514 = vand.u32 2147483647, %v2513
      %v2516 = vcvt.s32.f32 %v2509
      %v2517 = vmul.f32 %v2516, %v2514
      %v2518 = vxor.u32 %v2517, 2147483648
      %v2519 = vsel %vm2436, %v2518, %v2517
      %v2520 = vsub.s32 4, %v2496
      %v2521 = vsel %vm2436, %v2520, %v2496
      %v2522 = vsel %vm2435, %v1908, %v2519
      %v2523 = vsel %vm2435, 0, %v2521
      %v2524 = vcosq.f32.pop %v2522
      %v2525 = vsinq.f32.pop %v2522
      %vm2526 = vweird.f32 %v1908
      %v2527 = vand.u32 %v2523, 3
      %vm2528 = vcmp.lt.s32.totalorder %v2527, 2
      %vm2529 = vcmp.eq.s32.totalorder %v2527, 0
      %v2530 = vxor.u32 %v2525, 2147483648
      %v2531 = vsel %vm2529, %v2524, %v2530
      %vm2532 = vcmp.eq.s32.totalorder %v2527, 2
      %v2533 = vxor.u32 %v2524, 2147483648
      %v2534 = vsel %vm2532, %v2533, %v2525
      %v2535 = vsel %vm2528, %v2531, %v2534
      %v2536 = vsel %vm2526, nan, %v2535
      %v2537 = vand.u32 2147483647, %v1909
      %vm2538 = vcmp.le.f32.partialorder %v2537, 0.7853982
      %vm2539 = vcmp.lt.s32.totalorder %v1909, 0
      %v2540 = vand.u32 %v1909, 2139095040
      %v2541 = vshrl.u32 %v2540, 23
      %v2542 = vsub.s32 %v2541, 127
      %v2543 = vand.u32 2147483647, %v1909
      %v2544 = vand.u32 %v2543, 8388607
      %v2545 = vor.u32 %v2544, 8388608
      %v2546 = vsub.s32 0, %v2545
      %v2547 = vadd.s32 %v2542, 1
      %vm2548 = vcmp.gt.s32.totalorder %v2547, 0
      %v2549 = vsel %vm2548, %v2547, 0
      %v2550 = vshrl.u32 %v2549, 5
      %v2551 = vand.u32 %v2549, 31
      %v2552 = vsub.s32 32, %v2551
      %v2553 = vshrl.u32 683565275, %v2552
      %v2554 = vshll.u32 683565275, %v2551
      %v2555 = vshrl.u32 2475754826, %v2552
      %v2556 = vor.u32 %v2554, %v2555
      %v2557 = vshll.u32 2475754826, %v2551
      %v2558 = vshrl.u32 2131351028, %v2552
      %v2559 = vor.u32 %v2557, %v2558
      %v2560 = vshll.u32 2131351028, %v2551
      %v2561 = vshrl.u32 2102212464, %v2552
      %v2562 = vor.u32 %v2560, %v2561
      %v2563 = vshll.u32 2102212464, %v2551
      %v2564 = vshrl.u32 920167782, %v2552
      %v2565 = vor.u32 %v2563, %v2564
      %v2566 = vshll.u32 920167782, %v2551
      %v2567 = vshrl.u32 1326507024, %v2552
      %v2568 = vor.u32 %v2566, %v2567
      %vm2569 = vcmp.lt.s32.totalorder %v2550, 1
      %vm2570 = vcmp.lt.s32.totalorder %v2550, 2
      %vm2571 = vcmp.lt.s32.totalorder %v2550, 3
      %vm2572 = vcmp.lt.s32.totalorder %v2550, 4
      %v2573 = vsel %vm2569, %v2553, %v2556
      %v2574 = vsel %vm2572, %v2562, 2102212464
      %v2575 = vsel %vm2571, %v2559, %v2574
      %v2576 = vsel %vm2570, %v2573, %v2575
      %v2577 = vsel %vm2569, %v2556, %v2559
      %v2578 = vsel %vm2572, %v2565, 920167782
      %v2579 = vsel %vm2571, %v2562, %v2578
      %v2580 = vsel %vm2570, %v2577, %v2579
      %v2581 = vsel %vm2569, %v2559, %v2562
      %v2582 = vsel %vm2572, %v2568, 1326507024
      %v2583 = vsel %vm2571, %v2565, %v2582
      %v2584 = vsel %vm2570, %v2581, %v2583
      %v2585 = vshll.u32 %v2545, 8
      %v2586 = vmul.u32.u64.compose %v2585, %v2584
      %v2587 = vextract.low.u32 %v2586
      %v2588 = vextract.high.u32 %v2586
      %v2589 = vmul.u32.u64.compose %v2585, %v2580
      %v2590 = vextract.low.u32 %v2589
      %v2591 = vextract.high.u32 %v2589
      %v2592 = vmul.u32 %v2585, %v2576
      %v2593 = vadd.s32 %v2588, %v2590
      %vm2594 = vc.u32 %v2588, %v2590
      %v2595 = vadd.s32 %v2591, 1
      %v2596 = vsel %vm2594, %v2595, %v2591
      %v2597 = vadd.s32 %v2592, %v2596
      %v2598 = vadd.s32 %v2597, 536870912
      %v2599 = vshrl.u32 %v2598, 30
      %v2600 = vshll.u32 %v2599, 30
      %v2601 = vsub.s32 %v2597, %v2600
      %vm2602 = vcmp.lt.s32.totalorder %v2601, 0
      %v2603 = vsub.s32 0, %v2601
      %v2604 = vsel %vm2602, %v2603, %v2601
      %v2605 = vclz %v2604
      %v2606 = vsub.s32 %v2605, 2
      %vm2607 = vcmp.gt.s32.totalorder 0, %v2606
      %v2608 = vsel %vm2607, 0, %v2606
      %v2609 = vsub.s32 32, %v2608
      %v2610 = vshll.u32 %v2601, %v2608
      %v2611 = vshrl.u32 %v2593, %v2609
      %v2612 = vor.u32 %v2610, %v2611
      %v2613 = vsub.s32 4294967266, %v2608
      %v2614 = vadd.s32 %v2613, 127
      %v2615 = vshll.u32 %v2614, 23
      %v2616 = vor.u32 4788187, %v2615
      %v2617 = vand.u32 2147483647, %v2616
      %v2619 = vcvt.s32.f32 %v2612
      %v2620 = vmul.f32 %v2619, %v2617
      %v2621 = vxor.u32 %v2620, 2147483648
      %v2622 = vsel %vm2539, %v2621, %v2620
      %v2623 = vsub.s32 4, %v2599
      %v2624 = vsel %vm2539, %v2623, %v2599
      %v2625 = vsel %vm2538, %v1909, %v2622
      %v2626 = vsel %vm2538, 0, %v2624
      %v2627 = vcosq.f32.pop %v2625
      %v2628 = vsinq.f32.pop %v2625
      %vm2629 = vweird.f32 %v1909
      %v2630 = vand.u32 %v2626, 3
      %vm2631 = vcmp.lt.s32.totalorder %v2630, 2
      %vm2632 = vcmp.eq.s32.totalorder %v2630, 0
      %v2633 = vxor.u32 %v2628, 2147483648
      %v2634 = vsel %vm2632, %v2627, %v2633
      %vm2635 = vcmp.eq.s32.totalorder %v2630, 2
      %v2636 = vxor.u32 %v2627, 2147483648
      %v2637 = vsel %vm2635, %v2636, %v2628
      %v2638 = vsel %vm2631, %v2634, %v2637
      %v2639 = vsel %vm2629, nan, %v2638
      %v2640 = vand.u32 2147483647, %v1910
      %vm2641 = vcmp.le.f32.partialorder %v2640, 0.7853982
      %vm2642 = vcmp.lt.s32.totalorder %v1910, 0
      %v2643 = vand.u32 %v1910, 2139095040
      %v2644 = vshrl.u32 %v2643, 23
      %v2645 = vsub.s32 %v2644, 127
      %v2646 = vand.u32 2147483647, %v1910
      %v2647 = vand.u32 %v2646, 8388607
      %v2648 = vor.u32 %v2647, 8388608
      %v2649 = vsub.s32 0, %v2648
      %v2650 = vadd.s32 %v2645, 1
      %vm2651 = vcmp.gt.s32.totalorder %v2650, 0
      %v2652 = vsel %vm2651, %v2650, 0
      %v2653 = vshrl.u32 %v2652, 5
      %v2654 = vand.u32 %v2652, 31
      %v2655 = vsub.s32 32, %v2654
      %v2656 = vshrl.u32 683565275, %v2655
      %v2657 = vshll.u32 683565275, %v2654
      %v2658 = vshrl.u32 2475754826, %v2655
      %v2659 = vor.u32 %v2657, %v2658
      %v2660 = vshll.u32 2475754826, %v2654
      %v2661 = vshrl.u32 2131351028, %v2655
      %v2662 = vor.u32 %v2660, %v2661
      %v2663 = vshll.u32 2131351028, %v2654
      %v2664 = vshrl.u32 2102212464, %v2655
      %v2665 = vor.u32 %v2663, %v2664
      %v2666 = vshll.u32 2102212464, %v2654
      %v2667 = vshrl.u32 920167782, %v2655
      %v2668 = vor.u32 %v2666, %v2667
      %v2669 = vshll.u32 920167782, %v2654
      %v2670 = vshrl.u32 1326507024, %v2655
      %v2671 = vor.u32 %v2669, %v2670
      %vm2672 = vcmp.lt.s32.totalorder %v2653, 1
      %vm2673 = vcmp.lt.s32.totalorder %v2653, 2
      %vm2674 = vcmp.lt.s32.totalorder %v2653, 3
      %vm2675 = vcmp.lt.s32.totalorder %v2653, 4
      %v2676 = vsel %vm2672, %v2656, %v2659
      %v2677 = vsel %vm2675, %v2665, 2102212464
      %v2678 = vsel %vm2674, %v2662, %v2677
      %v2679 = vsel %vm2673, %v2676, %v2678
      %v2680 = vsel %vm2672, %v2659, %v2662
      %v2681 = vsel %vm2675, %v2668, 920167782
      %v2682 = vsel %vm2674, %v2665, %v2681
      %v2683 = vsel %vm2673, %v2680, %v2682
      %v2684 = vsel %vm2672, %v2662, %v2665
      %v2685 = vsel %vm2675, %v2671, 1326507024
      %v2686 = vsel %vm2674, %v2668, %v2685
      %v2687 = vsel %vm2673, %v2684, %v2686
      %v2688 = vshll.u32 %v2648, 8
      %v2689 = vmul.u32.u64.compose %v2688, %v2687
      %v2690 = vextract.low.u32 %v2689
      %v2691 = vextract.high.u32 %v2689
      %v2692 = vmul.u32.u64.compose %v2688, %v2683
      %v2693 = vextract.low.u32 %v2692
      %v2694 = vextract.high.u32 %v2692
      %v2695 = vmul.u32 %v2688, %v2679
      %v2696 = vadd.s32 %v2691, %v2693
      %vm2697 = vc.u32 %v2691, %v2693
      %v2698 = vadd.s32 %v2694, 1
      %v2699 = vsel %vm2697, %v2698, %v2694
      %v2700 = vadd.s32 %v2695, %v2699
      %v2701 = vadd.s32 %v2700, 536870912
      %v2702 = vshrl.u32 %v2701, 30
      %v2703 = vshll.u32 %v2702, 30
      %v2704 = vsub.s32 %v2700, %v2703
      %vm2705 = vcmp.lt.s32.totalorder %v2704, 0
      %v2706 = vsub.s32 0, %v2704
      %v2707 = vsel %vm2705, %v2706, %v2704
      %v2708 = vclz %v2707
      %v2709 = vsub.s32 %v2708, 2
      %vm2710 = vcmp.gt.s32.totalorder 0, %v2709
      %v2711 = vsel %vm2710, 0, %v2709
      %v2712 = vsub.s32 32, %v2711
      %v2713 = vshll.u32 %v2704, %v2711
      %v2714 = vshrl.u32 %v2696, %v2712
      %v2715 = vor.u32 %v2713, %v2714
      %v2716 = vsub.s32 4294967266, %v2711
      %v2717 = vadd.s32 %v2716, 127
      %v2718 = vshll.u32 %v2717, 23
      %v2719 = vor.u32 4788187, %v2718
      %v2720 = vand.u32 2147483647, %v2719
      %v2722 = vcvt.s32.f32 %v2715
      %v2723 = vmul.f32 %v2722, %v2720
      %v2724 = vxor.u32 %v2723, 2147483648
      %v2725 = vsel %vm2642, %v2724, %v2723
      %v2726 = vsub.s32 4, %v2702
      %v2727 = vsel %vm2642, %v2726, %v2702
      %v2728 = vsel %vm2641, %v1910, %v2725
      %v2729 = vsel %vm2641, 0, %v2727
      %v2730 = vcosq.f32.pop %v2728
      %v2731 = vsinq.f32.pop %v2728
      %vm2732 = vweird.f32 %v1910
      %v2733 = vand.u32 %v2729, 3
      %vm2734 = vcmp.lt.s32.totalorder %v2733, 2
      %vm2735 = vcmp.eq.s32.totalorder %v2733, 0
      %v2736 = vxor.u32 %v2731, 2147483648
      %v2737 = vsel %vm2735, %v2730, %v2736
      %vm2738 = vcmp.eq.s32.totalorder %v2733, 2
      %v2739 = vxor.u32 %v2730, 2147483648
      %v2740 = vsel %vm2738, %v2739, %v2731
      %v2741 = vsel %vm2734, %v2737, %v2740
      %v2742 = vsel %vm2732, nan, %v2741
      %v2743 = vand.u32 2147483647, %v1911
      %vm2744 = vcmp.le.f32.partialorder %v2743, 0.7853982
      %vm2745 = vcmp.lt.s32.totalorder %v1911, 0
      %v2746 = vand.u32 %v1911, 2139095040
      %v2747 = vshrl.u32 %v2746, 23
      %v2748 = vsub.s32 %v2747, 127
      %v2749 = vand.u32 2147483647, %v1911
      %v2750 = vand.u32 %v2749, 8388607
      %v2751 = vor.u32 %v2750, 8388608
      %v2752 = vsub.s32 0, %v2751
      %v2753 = vadd.s32 %v2748, 1
      %vm2754 = vcmp.gt.s32.totalorder %v2753, 0
      %v2755 = vsel %vm2754, %v2753, 0
      %v2756 = vshrl.u32 %v2755, 5
      %v2757 = vand.u32 %v2755, 31
      %v2758 = vsub.s32 32, %v2757
      %v2759 = vshrl.u32 683565275, %v2758
      %v2760 = vshll.u32 683565275, %v2757
      %v2761 = vshrl.u32 2475754826, %v2758
      %v2762 = vor.u32 %v2760, %v2761
      %v2763 = vshll.u32 2475754826, %v2757
      %v2764 = vshrl.u32 2131351028, %v2758
      %v2765 = vor.u32 %v2763, %v2764
      %v2766 = vshll.u32 2131351028, %v2757
      %v2767 = vshrl.u32 2102212464, %v2758
      %v2768 = vor.u32 %v2766, %v2767
      %v2769 = vshll.u32 2102212464, %v2757
      %v2770 = vshrl.u32 920167782, %v2758
      %v2771 = vor.u32 %v2769, %v2770
      %v2772 = vshll.u32 920167782, %v2757
      %v2773 = vshrl.u32 1326507024, %v2758
      %v2774 = vor.u32 %v2772, %v2773
      %vm2775 = vcmp.lt.s32.totalorder %v2756, 1
      %vm2776 = vcmp.lt.s32.totalorder %v2756, 2
      %vm2777 = vcmp.lt.s32.totalorder %v2756, 3
      %vm2778 = vcmp.lt.s32.totalorder %v2756, 4
      %v2779 = vsel %vm2775, %v2759, %v2762
      %v2780 = vsel %vm2778, %v2768, 2102212464
      %v2781 = vsel %vm2777, %v2765, %v2780
      %v2782 = vsel %vm2776, %v2779, %v2781
      %v2783 = vsel %vm2775, %v2762, %v2765
      %v2784 = vsel %vm2778, %v2771, 920167782
      %v2785 = vsel %vm2777, %v2768, %v2784
      %v2786 = vsel %vm2776, %v2783, %v2785
      %v2787 = vsel %vm2775, %v2765, %v2768
      %v2788 = vsel %vm2778, %v2774, 1326507024
      %v2789 = vsel %vm2777, %v2771, %v2788
      %v2790 = vsel %vm2776, %v2787, %v2789
      %v2791 = vshll.u32 %v2751, 8
      %v2792 = vmul.u32.u64.compose %v2791, %v2790
      %v2793 = vextract.low.u32 %v2792
      %v2794 = vextract.high.u32 %v2792
      %v2795 = vmul.u32.u64.compose %v2791, %v2786
      %v2796 = vextract.low.u32 %v2795
      %v2797 = vextract.high.u32 %v2795
      %v2798 = vmul.u32 %v2791, %v2782
      %v2799 = vadd.s32 %v2794, %v2796
      %vm2800 = vc.u32 %v2794, %v2796
      %v2801 = vadd.s32 %v2797, 1
      %v2802 = vsel %vm2800, %v2801, %v2797
      %v2803 = vadd.s32 %v2798, %v2802
      %v2804 = vadd.s32 %v2803, 536870912
      %v2805 = vshrl.u32 %v2804, 30
      %v2806 = vshll.u32 %v2805, 30
      %v2807 = vsub.s32 %v2803, %v2806
      %vm2808 = vcmp.lt.s32.totalorder %v2807, 0
      %v2809 = vsub.s32 0, %v2807
      %v2810 = vsel %vm2808, %v2809, %v2807
      %v2811 = vclz %v2810
      %v2812 = vsub.s32 %v2811, 2
      %vm2813 = vcmp.gt.s32.totalorder 0, %v2812
      %v2814 = vsel %vm2813, 0, %v2812
      %v2815 = vsub.s32 32, %v2814
      %v2816 = vshll.u32 %v2807, %v2814
      %v2817 = vshrl.u32 %v2799, %v2815
      %v2818 = vor.u32 %v2816, %v2817
      %v2819 = vsub.s32 4294967266, %v2814
      %v2820 = vadd.s32 %v2819, 127
      %v2821 = vshll.u32 %v2820, 23
      %v2822 = vor.u32 4788187, %v2821
      %v2823 = vand.u32 2147483647, %v2822
      %v2825 = vcvt.s32.f32 %v2818
      %v2826 = vmul.f32 %v2825, %v2823
      %v2827 = vxor.u32 %v2826, 2147483648
      %v2828 = vsel %vm2745, %v2827, %v2826
      %v2829 = vsub.s32 4, %v2805
      %v2830 = vsel %vm2745, %v2829, %v2805
      %v2831 = vsel %vm2744, %v1911, %v2828
      %v2832 = vsel %vm2744, 0, %v2830
      %v2833 = vcosq.f32.pop %v2831
      %v2834 = vsinq.f32.pop %v2831
      %vm2835 = vweird.f32 %v1911
      %v2836 = vand.u32 %v2832, 3
      %vm2837 = vcmp.lt.s32.totalorder %v2836, 2
      %vm2838 = vcmp.eq.s32.totalorder %v2836, 0
      %v2839 = vxor.u32 %v2834, 2147483648
      %v2840 = vsel %vm2838, %v2833, %v2839
      %vm2841 = vcmp.eq.s32.totalorder %v2836, 2
      %v2842 = vxor.u32 %v2833, 2147483648
      %v2843 = vsel %vm2841, %v2842, %v2834
      %v2844 = vsel %vm2837, %v2840, %v2843
      %v2845 = vsel %vm2835, nan, %v2844
      %v2846 = vand.u32 2147483647, %v1912
      %vm2847 = vcmp.le.f32.partialorder %v2846, 0.7853982
      %vm2848 = vcmp.lt.s32.totalorder %v1912, 0
      %v2849 = vand.u32 %v1912, 2139095040
      %v2850 = vshrl.u32 %v2849, 23
      %v2851 = vsub.s32 %v2850, 127
      %v2852 = vand.u32 2147483647, %v1912
      %v2853 = vand.u32 %v2852, 8388607
      %v2854 = vor.u32 %v2853, 8388608
      %v2855 = vsub.s32 0, %v2854
      %v2856 = vadd.s32 %v2851, 1
      %vm2857 = vcmp.gt.s32.totalorder %v2856, 0
      %v2858 = vsel %vm2857, %v2856, 0
      %v2859 = vshrl.u32 %v2858, 5
      %v2860 = vand.u32 %v2858, 31
      %v2861 = vsub.s32 32, %v2860
      %v2862 = vshrl.u32 683565275, %v2861
      %v2863 = vshll.u32 683565275, %v2860
      %v2864 = vshrl.u32 2475754826, %v2861
      %v2865 = vor.u32 %v2863, %v2864
      %v2866 = vshll.u32 2475754826, %v2860
      %v2867 = vshrl.u32 2131351028, %v2861
      %v2868 = vor.u32 %v2866, %v2867
      %v2869 = vshll.u32 2131351028, %v2860
      %v2870 = vshrl.u32 2102212464, %v2861
      %v2871 = vor.u32 %v2869, %v2870
      %v2872 = vshll.u32 2102212464, %v2860
      %v2873 = vshrl.u32 920167782, %v2861
      %v2874 = vor.u32 %v2872, %v2873
      %v2875 = vshll.u32 920167782, %v2860
      %v2876 = vshrl.u32 1326507024, %v2861
      %v2877 = vor.u32 %v2875, %v2876
      %vm2878 = vcmp.lt.s32.totalorder %v2859, 1
      %vm2879 = vcmp.lt.s32.totalorder %v2859, 2
      %vm2880 = vcmp.lt.s32.totalorder %v2859, 3
      %vm2881 = vcmp.lt.s32.totalorder %v2859, 4
      %v2882 = vsel %vm2878, %v2862, %v2865
      %v2883 = vsel %vm2881, %v2871, 2102212464
      %v2884 = vsel %vm2880, %v2868, %v2883
      %v2885 = vsel %vm2879, %v2882, %v2884
      %v2886 = vsel %vm2878, %v2865, %v2868
      %v2887 = vsel %vm2881, %v2874, 920167782
      %v2888 = vsel %vm2880, %v2871, %v2887
      %v2889 = vsel %vm2879, %v2886, %v2888
      %v2890 = vsel %vm2878, %v2868, %v2871
      %v2891 = vsel %vm2881, %v2877, 1326507024
      %v2892 = vsel %vm2880, %v2874, %v2891
      %v2893 = vsel %vm2879, %v2890, %v2892
      %v2894 = vshll.u32 %v2854, 8
      %v2895 = vmul.u32.u64.compose %v2894, %v2893
      %v2896 = vextract.low.u32 %v2895
      %v2897 = vextract.high.u32 %v2895
      %v2898 = vmul.u32.u64.compose %v2894, %v2889
      %v2899 = vextract.low.u32 %v2898
      %v2900 = vextract.high.u32 %v2898
      %v2901 = vmul.u32 %v2894, %v2885
      %v2902 = vadd.s32 %v2897, %v2899
      %vm2903 = vc.u32 %v2897, %v2899
      %v2904 = vadd.s32 %v2900, 1
      %v2905 = vsel %vm2903, %v2904, %v2900
      %v2906 = vadd.s32 %v2901, %v2905
      %v2907 = vadd.s32 %v2906, 536870912
      %v2908 = vshrl.u32 %v2907, 30
      %v2909 = vshll.u32 %v2908, 30
      %v2910 = vsub.s32 %v2906, %v2909
      %vm2911 = vcmp.lt.s32.totalorder %v2910, 0
      %v2912 = vsub.s32 0, %v2910
      %v2913 = vsel %vm2911, %v2912, %v2910
      %v2914 = vclz %v2913
      %v2915 = vsub.s32 %v2914, 2
      %vm2916 = vcmp.gt.s32.totalorder 0, %v2915
      %v2917 = vsel %vm2916, 0, %v2915
      %v2918 = vsub.s32 32, %v2917
      %v2919 = vshll.u32 %v2910, %v2917
      %v2920 = vshrl.u32 %v2902, %v2918
      %v2921 = vor.u32 %v2919, %v2920
      %v2922 = vsub.s32 4294967266, %v2917
      %v2923 = vadd.s32 %v2922, 127
      %v2924 = vshll.u32 %v2923, 23
      %v2925 = vor.u32 4788187, %v2924
      %v2926 = vand.u32 2147483647, %v2925
      %v2928 = vcvt.s32.f32 %v2921
      %v2929 = vmul.f32 %v2928, %v2926
      %v2930 = vxor.u32 %v2929, 2147483648
      %v2931 = vsel %vm2848, %v2930, %v2929
      %v2932 = vsub.s32 4, %v2908
      %v2933 = vsel %vm2848, %v2932, %v2908
      %v2934 = vsel %vm2847, %v1912, %v2931
      %v2935 = vsel %vm2847, 0, %v2933
      %v2936 = vcosq.f32.pop %v2934
      %v2937 = vsinq.f32.pop %v2934
      %vm2938 = vweird.f32 %v1912
      %v2939 = vand.u32 %v2935, 3
      %vm2940 = vcmp.lt.s32.totalorder %v2939, 2
      %vm2941 = vcmp.eq.s32.totalorder %v2939, 0
      %v2942 = vxor.u32 %v2937, 2147483648
      %v2943 = vsel %vm2941, %v2936, %v2942
      %vm2944 = vcmp.eq.s32.totalorder %v2939, 2
      %v2945 = vxor.u32 %v2936, 2147483648
      %v2946 = vsel %vm2944, %v2945, %v2937
      %v2947 = vsel %vm2940, %v2943, %v2946
      %v2948 = vsel %vm2938, nan, %v2947
      %v2949 = vand.u32 2147483647, %v1913
      %vm2950 = vcmp.le.f32.partialorder %v2949, 0.7853982
      %vm2951 = vcmp.lt.s32.totalorder %v1913, 0
      %v2952 = vand.u32 %v1913, 2139095040
      %v2953 = vshrl.u32 %v2952, 23
      %v2954 = vsub.s32 %v2953, 127
      %v2955 = vand.u32 2147483647, %v1913
      %v2956 = vand.u32 %v2955, 8388607
      %v2957 = vor.u32 %v2956, 8388608
      %v2958 = vsub.s32 0, %v2957
      %v2959 = vadd.s32 %v2954, 1
      %vm2960 = vcmp.gt.s32.totalorder %v2959, 0
      %v2961 = vsel %vm2960, %v2959, 0
      %v2962 = vshrl.u32 %v2961, 5
      %v2963 = vand.u32 %v2961, 31
      %v2964 = vsub.s32 32, %v2963
      %v2965 = vshrl.u32 683565275, %v2964
      %v2966 = vshll.u32 683565275, %v2963
      %v2967 = vshrl.u32 2475754826, %v2964
      %v2968 = vor.u32 %v2966, %v2967
      %v2969 = vshll.u32 2475754826, %v2963
      %v2970 = vshrl.u32 2131351028, %v2964
      %v2971 = vor.u32 %v2969, %v2970
      %v2972 = vshll.u32 2131351028, %v2963
      %v2973 = vshrl.u32 2102212464, %v2964
      %v2974 = vor.u32 %v2972, %v2973
      %v2975 = vshll.u32 2102212464, %v2963
      %v2976 = vshrl.u32 920167782, %v2964
      %v2977 = vor.u32 %v2975, %v2976
      %v2978 = vshll.u32 920167782, %v2963
      %v2979 = vshrl.u32 1326507024, %v2964
      %v2980 = vor.u32 %v2978, %v2979
      %vm2981 = vcmp.lt.s32.totalorder %v2962, 1
      %vm2982 = vcmp.lt.s32.totalorder %v2962, 2
      %vm2983 = vcmp.lt.s32.totalorder %v2962, 3
      %vm2984 = vcmp.lt.s32.totalorder %v2962, 4
      %v2985 = vsel %vm2981, %v2965, %v2968
      %v2986 = vsel %vm2984, %v2974, 2102212464
      %v2987 = vsel %vm2983, %v2971, %v2986
      %v2988 = vsel %vm2982, %v2985, %v2987
      %v2989 = vsel %vm2981, %v2968, %v2971
      %v2990 = vsel %vm2984, %v2977, 920167782
      %v2991 = vsel %vm2983, %v2974, %v2990
      %v2992 = vsel %vm2982, %v2989, %v2991
      %v2993 = vsel %vm2981, %v2971, %v2974
      %v2994 = vsel %vm2984, %v2980, 1326507024
      %v2995 = vsel %vm2983, %v2977, %v2994
      %v2996 = vsel %vm2982, %v2993, %v2995
      %v2997 = vshll.u32 %v2957, 8
      %v2998 = vmul.u32.u64.compose %v2997, %v2996
      %v2999 = vextract.low.u32 %v2998
      %v3000 = vextract.high.u32 %v2998
      %v3001 = vmul.u32.u64.compose %v2997, %v2992
      %v3002 = vextract.low.u32 %v3001
      %v3003 = vextract.high.u32 %v3001
      %v3004 = vmul.u32 %v2997, %v2988
      %v3005 = vadd.s32 %v3000, %v3002
      %vm3006 = vc.u32 %v3000, %v3002
      %v3007 = vadd.s32 %v3003, 1
      %v3008 = vsel %vm3006, %v3007, %v3003
      %v3009 = vadd.s32 %v3004, %v3008
      %v3010 = vadd.s32 %v3009, 536870912
      %v3011 = vshrl.u32 %v3010, 30
      %v3012 = vshll.u32 %v3011, 30
      %v3013 = vsub.s32 %v3009, %v3012
      %vm3014 = vcmp.lt.s32.totalorder %v3013, 0
      %v3015 = vsub.s32 0, %v3013
      %v3016 = vsel %vm3014, %v3015, %v3013
      %v3017 = vclz %v3016
      %v3018 = vsub.s32 %v3017, 2
      %vm3019 = vcmp.gt.s32.totalorder 0, %v3018
      %v3020 = vsel %vm3019, 0, %v3018
      %v3021 = vsub.s32 32, %v3020
      %v3022 = vshll.u32 %v3013, %v3020
      %v3023 = vshrl.u32 %v3005, %v3021
      %v3024 = vor.u32 %v3022, %v3023
      %v3025 = vsub.s32 4294967266, %v3020
      %v3026 = vadd.s32 %v3025, 127
      %v3027 = vshll.u32 %v3026, 23
      %v3028 = vor.u32 4788187, %v3027
      %v3029 = vand.u32 2147483647, %v3028
      %v3031 = vcvt.s32.f32 %v3024
      %v3032 = vmul.f32 %v3031, %v3029
      %v3033 = vxor.u32 %v3032, 2147483648
      %v3034 = vsel %vm2951, %v3033, %v3032
      %v3035 = vsub.s32 4, %v3011
      %v3036 = vsel %vm2951, %v3035, %v3011
      %v3037 = vsel %vm2950, %v1913, %v3034
      %v3038 = vsel %vm2950, 0, %v3036
      %v3039 = vcosq.f32.pop %v3037
      %v3040 = vsinq.f32.pop %v3037
      %vm3041 = vweird.f32 %v1913
      %v3042 = vand.u32 %v3038, 3
      %vm3043 = vcmp.lt.s32.totalorder %v3042, 2
      %vm3044 = vcmp.eq.s32.totalorder %v3042, 0
      %v3045 = vxor.u32 %v3040, 2147483648
      %v3046 = vsel %vm3044, %v3039, %v3045
      %vm3047 = vcmp.eq.s32.totalorder %v3042, 2
      %v3048 = vxor.u32 %v3039, 2147483648
      %v3049 = vsel %vm3047, %v3048, %v3040
      %v3050 = vsel %vm3043, %v3046, %v3049
      %v3051 = vsel %vm3041, nan, %v3050
      %v3052 = vand.u32 2147483647, %v1914
      %vm3053 = vcmp.le.f32.partialorder %v3052, 0.7853982
      %vm3054 = vcmp.lt.s32.totalorder %v1914, 0
      %v3055 = vand.u32 %v1914, 2139095040
      %v3056 = vshrl.u32 %v3055, 23
      %v3057 = vsub.s32 %v3056, 127
      %v3058 = vand.u32 2147483647, %v1914
      %v3059 = vand.u32 %v3058, 8388607
      %v3060 = vor.u32 %v3059, 8388608
      %v3061 = vsub.s32 0, %v3060
      %v3062 = vadd.s32 %v3057, 1
      %vm3063 = vcmp.gt.s32.totalorder %v3062, 0
      %v3064 = vsel %vm3063, %v3062, 0
      %v3065 = vshrl.u32 %v3064, 5
      %v3066 = vand.u32 %v3064, 31
      %v3067 = vsub.s32 32, %v3066
      %v3068 = vshrl.u32 683565275, %v3067
      %v3069 = vshll.u32 683565275, %v3066
      %v3070 = vshrl.u32 2475754826, %v3067
      %v3071 = vor.u32 %v3069, %v3070
      %v3072 = vshll.u32 2475754826, %v3066
      %v3073 = vshrl.u32 2131351028, %v3067
      %v3074 = vor.u32 %v3072, %v3073
      %v3075 = vshll.u32 2131351028, %v3066
      %v3076 = vshrl.u32 2102212464, %v3067
      %v3077 = vor.u32 %v3075, %v3076
      %v3078 = vshll.u32 2102212464, %v3066
      %v3079 = vshrl.u32 920167782, %v3067
      %v3080 = vor.u32 %v3078, %v3079
      %v3081 = vshll.u32 920167782, %v3066
      %v3082 = vshrl.u32 1326507024, %v3067
      %v3083 = vor.u32 %v3081, %v3082
      %vm3084 = vcmp.lt.s32.totalorder %v3065, 1
      %vm3085 = vcmp.lt.s32.totalorder %v3065, 2
      %vm3086 = vcmp.lt.s32.totalorder %v3065, 3
      %vm3087 = vcmp.lt.s32.totalorder %v3065, 4
      %v3088 = vsel %vm3084, %v3068, %v3071
      %v3089 = vsel %vm3087, %v3077, 2102212464
      %v3090 = vsel %vm3086, %v3074, %v3089
      %v3091 = vsel %vm3085, %v3088, %v3090
      %v3092 = vsel %vm3084, %v3071, %v3074
      %v3093 = vsel %vm3087, %v3080, 920167782
      %v3094 = vsel %vm3086, %v3077, %v3093
      %v3095 = vsel %vm3085, %v3092, %v3094
      %v3096 = vsel %vm3084, %v3074, %v3077
      %v3097 = vsel %vm3087, %v3083, 1326507024
      %v3098 = vsel %vm3086, %v3080, %v3097
      %v3099 = vsel %vm3085, %v3096, %v3098
      %v3100 = vshll.u32 %v3060, 8
      %v3101 = vmul.u32.u64.compose %v3100, %v3099
      %v3102 = vextract.low.u32 %v3101
      %v3103 = vextract.high.u32 %v3101
      %v3104 = vmul.u32.u64.compose %v3100, %v3095
      %v3105 = vextract.low.u32 %v3104
      %v3106 = vextract.high.u32 %v3104
      %v3107 = vmul.u32 %v3100, %v3091
      %v3108 = vadd.s32 %v3103, %v3105
      %vm3109 = vc.u32 %v3103, %v3105
      %v3110 = vadd.s32 %v3106, 1
      %v3111 = vsel %vm3109, %v3110, %v3106
      %v3112 = vadd.s32 %v3107, %v3111
      %v3113 = vadd.s32 %v3112, 536870912
      %v3114 = vshrl.u32 %v3113, 30
      %v3115 = vshll.u32 %v3114, 30
      %v3116 = vsub.s32 %v3112, %v3115
      %vm3117 = vcmp.lt.s32.totalorder %v3116, 0
      %v3118 = vsub.s32 0, %v3116
      %v3119 = vsel %vm3117, %v3118, %v3116
      %v3120 = vclz %v3119
      %v3121 = vsub.s32 %v3120, 2
      %vm3122 = vcmp.gt.s32.totalorder 0, %v3121
      %v3123 = vsel %vm3122, 0, %v3121
      %v3124 = vsub.s32 32, %v3123
      %v3125 = vshll.u32 %v3116, %v3123
      %v3126 = vshrl.u32 %v3108, %v3124
      %v3127 = vor.u32 %v3125, %v3126
      %v3128 = vsub.s32 4294967266, %v3123
      %v3129 = vadd.s32 %v3128, 127
      %v3130 = vshll.u32 %v3129, 23
      %v3131 = vor.u32 4788187, %v3130
      %v3132 = vand.u32 2147483647, %v3131
      %v3134 = vcvt.s32.f32 %v3127
      %v3135 = vmul.f32 %v3134, %v3132
      %v3136 = vxor.u32 %v3135, 2147483648
      %v3137 = vsel %vm3054, %v3136, %v3135
      %v3138 = vsub.s32 4, %v3114
      %v3139 = vsel %vm3054, %v3138, %v3114
      %v3140 = vsel %vm3053, %v1914, %v3137
      %v3141 = vsel %vm3053, 0, %v3139
      %v3142 = vcosq.f32.pop %v3140
      %v3143 = vsinq.f32.pop %v3140
      %vm3144 = vweird.f32 %v1914
      %v3145 = vand.u32 %v3141, 3
      %vm3146 = vcmp.lt.s32.totalorder %v3145, 2
      %vm3147 = vcmp.eq.s32.totalorder %v3145, 0
      %v3148 = vxor.u32 %v3143, 2147483648
      %v3149 = vsel %vm3147, %v3142, %v3148
      %vm3150 = vcmp.eq.s32.totalorder %v3145, 2
      %v3151 = vxor.u32 %v3142, 2147483648
      %v3152 = vsel %vm3150, %v3151, %v3143
      %v3153 = vsel %vm3146, %v3149, %v3152
      %v3154 = vsel %vm3144, nan, %v3153
      %v3155 = vand.u32 2147483647, %v1915
      %vm3156 = vcmp.le.f32.partialorder %v3155, 0.7853982
      %vm3157 = vcmp.lt.s32.totalorder %v1915, 0
      %v3158 = vand.u32 %v1915, 2139095040
      %v3159 = vshrl.u32 %v3158, 23
      %v3160 = vsub.s32 %v3159, 127
      %v3161 = vand.u32 2147483647, %v1915
      %v3162 = vand.u32 %v3161, 8388607
      %v3163 = vor.u32 %v3162, 8388608
      %v3164 = vsub.s32 0, %v3163
      %v3165 = vadd.s32 %v3160, 1
      %vm3166 = vcmp.gt.s32.totalorder %v3165, 0
      %v3167 = vsel %vm3166, %v3165, 0
      %v3168 = vshrl.u32 %v3167, 5
      %v3169 = vand.u32 %v3167, 31
      %v3170 = vsub.s32 32, %v3169
      %v3171 = vshrl.u32 683565275, %v3170
      %v3172 = vshll.u32 683565275, %v3169
      %v3173 = vshrl.u32 2475754826, %v3170
      %v3174 = vor.u32 %v3172, %v3173
      %v3175 = vshll.u32 2475754826, %v3169
      %v3176 = vshrl.u32 2131351028, %v3170
      %v3177 = vor.u32 %v3175, %v3176
      %v3178 = vshll.u32 2131351028, %v3169
      %v3179 = vshrl.u32 2102212464, %v3170
      %v3180 = vor.u32 %v3178, %v3179
      %v3181 = vshll.u32 2102212464, %v3169
      %v3182 = vshrl.u32 920167782, %v3170
      %v3183 = vor.u32 %v3181, %v3182
      %v3184 = vshll.u32 920167782, %v3169
      %v3185 = vshrl.u32 1326507024, %v3170
      %v3186 = vor.u32 %v3184, %v3185
      %vm3187 = vcmp.lt.s32.totalorder %v3168, 1
      %vm3188 = vcmp.lt.s32.totalorder %v3168, 2
      %vm3189 = vcmp.lt.s32.totalorder %v3168, 3
      %vm3190 = vcmp.lt.s32.totalorder %v3168, 4
      %v3191 = vsel %vm3187, %v3171, %v3174
      %v3192 = vsel %vm3190, %v3180, 2102212464
      %v3193 = vsel %vm3189, %v3177, %v3192
      %v3194 = vsel %vm3188, %v3191, %v3193
      %v3195 = vsel %vm3187, %v3174, %v3177
      %v3196 = vsel %vm3190, %v3183, 920167782
      %v3197 = vsel %vm3189, %v3180, %v3196
      %v3198 = vsel %vm3188, %v3195, %v3197
      %v3199 = vsel %vm3187, %v3177, %v3180
      %v3200 = vsel %vm3190, %v3186, 1326507024
      %v3201 = vsel %vm3189, %v3183, %v3200
      %v3202 = vsel %vm3188, %v3199, %v3201
      %v3203 = vshll.u32 %v3163, 8
      %v3204 = vmul.u32.u64.compose %v3203, %v3202
      %v3205 = vextract.low.u32 %v3204
      %v3206 = vextract.high.u32 %v3204
      %v3207 = vmul.u32.u64.compose %v3203, %v3198
      %v3208 = vextract.low.u32 %v3207
      %v3209 = vextract.high.u32 %v3207
      %v3210 = vmul.u32 %v3203, %v3194
      %v3211 = vadd.s32 %v3206, %v3208
      %vm3212 = vc.u32 %v3206, %v3208
      %v3213 = vadd.s32 %v3209, 1
      %v3214 = vsel %vm3212, %v3213, %v3209
      %v3215 = vadd.s32 %v3210, %v3214
      %v3216 = vadd.s32 %v3215, 536870912
      %v3217 = vshrl.u32 %v3216, 30
      %v3218 = vshll.u32 %v3217, 30
      %v3219 = vsub.s32 %v3215, %v3218
      %vm3220 = vcmp.lt.s32.totalorder %v3219, 0
      %v3221 = vsub.s32 0, %v3219
      %v3222 = vsel %vm3220, %v3221, %v3219
      %v3223 = vclz %v3222
      %v3224 = vsub.s32 %v3223, 2
      %vm3225 = vcmp.gt.s32.totalorder 0, %v3224
      %v3226 = vsel %vm3225, 0, %v3224
      %v3227 = vsub.s32 32, %v3226
      %v3228 = vshll.u32 %v3219, %v3226
      %v3229 = vshrl.u32 %v3211, %v3227
      %v3230 = vor.u32 %v3228, %v3229
      %v3231 = vsub.s32 4294967266, %v3226
      %v3232 = vadd.s32 %v3231, 127
      %v3233 = vshll.u32 %v3232, 23
      %v3234 = vor.u32 4788187, %v3233
      %v3235 = vand.u32 2147483647, %v3234
      %v3237 = vcvt.s32.f32 %v3230
      %v3238 = vmul.f32 %v3237, %v3235
      %v3239 = vxor.u32 %v3238, 2147483648
      %v3240 = vsel %vm3157, %v3239, %v3238
      %v3241 = vsub.s32 4, %v3217
      %v3242 = vsel %vm3157, %v3241, %v3217
      %v3243 = vsel %vm3156, %v1915, %v3240
      %v3244 = vsel %vm3156, 0, %v3242
      %v3245 = vcosq.f32.pop %v3243
      %v3246 = vsinq.f32.pop %v3243
      %vm3247 = vweird.f32 %v1915
      %v3248 = vand.u32 %v3244, 3
      %vm3249 = vcmp.lt.s32.totalorder %v3248, 2
      %vm3250 = vcmp.eq.s32.totalorder %v3248, 0
      %v3251 = vxor.u32 %v3246, 2147483648
      %v3252 = vsel %vm3250, %v3245, %v3251
      %vm3253 = vcmp.eq.s32.totalorder %v3248, 2
      %v3254 = vxor.u32 %v3245, 2147483648
      %v3255 = vsel %vm3253, %v3254, %v3246
      %v3256 = vsel %vm3249, %v3252, %v3255
      %v3257 = vsel %vm3247, nan, %v3256
      %v3258 = vand.u32 2147483647, %v1916
      %vm3259 = vcmp.le.f32.partialorder %v3258, 0.7853982
      %vm3260 = vcmp.lt.s32.totalorder %v1916, 0
      %v3261 = vand.u32 %v1916, 2139095040
      %v3262 = vshrl.u32 %v3261, 23
      %v3263 = vsub.s32 %v3262, 127
      %v3264 = vand.u32 2147483647, %v1916
      %v3265 = vand.u32 %v3264, 8388607
      %v3266 = vor.u32 %v3265, 8388608
      %v3267 = vsub.s32 0, %v3266
      %v3268 = vadd.s32 %v3263, 1
      %vm3269 = vcmp.gt.s32.totalorder %v3268, 0
      %v3270 = vsel %vm3269, %v3268, 0
      %v3271 = vshrl.u32 %v3270, 5
      %v3272 = vand.u32 %v3270, 31
      %v3273 = vsub.s32 32, %v3272
      %v3274 = vshrl.u32 683565275, %v3273
      %v3275 = vshll.u32 683565275, %v3272
      %v3276 = vshrl.u32 2475754826, %v3273
      %v3277 = vor.u32 %v3275, %v3276
      %v3278 = vshll.u32 2475754826, %v3272
      %v3279 = vshrl.u32 2131351028, %v3273
      %v3280 = vor.u32 %v3278, %v3279
      %v3281 = vshll.u32 2131351028, %v3272
      %v3282 = vshrl.u32 2102212464, %v3273
      %v3283 = vor.u32 %v3281, %v3282
      %v3284 = vshll.u32 2102212464, %v3272
      %v3285 = vshrl.u32 920167782, %v3273
      %v3286 = vor.u32 %v3284, %v3285
      %v3287 = vshll.u32 920167782, %v3272
      %v3288 = vshrl.u32 1326507024, %v3273
      %v3289 = vor.u32 %v3287, %v3288
      %vm3290 = vcmp.lt.s32.totalorder %v3271, 1
      %vm3291 = vcmp.lt.s32.totalorder %v3271, 2
      %vm3292 = vcmp.lt.s32.totalorder %v3271, 3
      %vm3293 = vcmp.lt.s32.totalorder %v3271, 4
      %v3294 = vsel %vm3290, %v3274, %v3277
      %v3295 = vsel %vm3293, %v3283, 2102212464
      %v3296 = vsel %vm3292, %v3280, %v3295
      %v3297 = vsel %vm3291, %v3294, %v3296
      %v3298 = vsel %vm3290, %v3277, %v3280
      %v3299 = vsel %vm3293, %v3286, 920167782
      %v3300 = vsel %vm3292, %v3283, %v3299
      %v3301 = vsel %vm3291, %v3298, %v3300
      %v3302 = vsel %vm3290, %v3280, %v3283
      %v3303 = vsel %vm3293, %v3289, 1326507024
      %v3304 = vsel %vm3292, %v3286, %v3303
      %v3305 = vsel %vm3291, %v3302, %v3304
      %v3306 = vshll.u32 %v3266, 8
      %v3307 = vmul.u32.u64.compose %v3306, %v3305
      %v3308 = vextract.low.u32 %v3307
      %v3309 = vextract.high.u32 %v3307
      %v3310 = vmul.u32.u64.compose %v3306, %v3301
      %v3311 = vextract.low.u32 %v3310
      %v3312 = vextract.high.u32 %v3310
      %v3313 = vmul.u32 %v3306, %v3297
      %v3314 = vadd.s32 %v3309, %v3311
      %vm3315 = vc.u32 %v3309, %v3311
      %v3316 = vadd.s32 %v3312, 1
      %v3317 = vsel %vm3315, %v3316, %v3312
      %v3318 = vadd.s32 %v3313, %v3317
      %v3319 = vadd.s32 %v3318, 536870912
      %v3320 = vshrl.u32 %v3319, 30
      %v3321 = vshll.u32 %v3320, 30
      %v3322 = vsub.s32 %v3318, %v3321
      %vm3323 = vcmp.lt.s32.totalorder %v3322, 0
      %v3324 = vsub.s32 0, %v3322
      %v3325 = vsel %vm3323, %v3324, %v3322
      %v3326 = vclz %v3325
      %v3327 = vsub.s32 %v3326, 2
      %vm3328 = vcmp.gt.s32.totalorder 0, %v3327
      %v3329 = vsel %vm3328, 0, %v3327
      %v3330 = vsub.s32 32, %v3329
      %v3331 = vshll.u32 %v3322, %v3329
      %v3332 = vshrl.u32 %v3314, %v3330
      %v3333 = vor.u32 %v3331, %v3332
      %v3334 = vsub.s32 4294967266, %v3329
      %v3335 = vadd.s32 %v3334, 127
      %v3336 = vshll.u32 %v3335, 23
      %v3337 = vor.u32 4788187, %v3336
      %v3338 = vand.u32 2147483647, %v3337
      %v3340 = vcvt.s32.f32 %v3333
      %v3341 = vmul.f32 %v3340, %v3338
      %v3342 = vxor.u32 %v3341, 2147483648
      %v3343 = vsel %vm3260, %v3342, %v3341
      %v3344 = vsub.s32 4, %v3320
      %v3345 = vsel %vm3260, %v3344, %v3320
      %v3346 = vsel %vm3259, %v1916, %v3343
      %v3347 = vsel %vm3259, 0, %v3345
      %v3348 = vcosq.f32.pop %v3346
      %v3349 = vsinq.f32.pop %v3346
      %vm3350 = vweird.f32 %v1916
      %v3351 = vand.u32 %v3347, 3
      %vm3352 = vcmp.lt.s32.totalorder %v3351, 2
      %vm3353 = vcmp.eq.s32.totalorder %v3351, 0
      %v3354 = vxor.u32 %v3349, 2147483648
      %v3355 = vsel %vm3353, %v3348, %v3354
      %vm3356 = vcmp.eq.s32.totalorder %v3351, 2
      %v3357 = vxor.u32 %v3348, 2147483648
      %v3358 = vsel %vm3356, %v3357, %v3349
      %v3359 = vsel %vm3352, %v3355, %v3358
      %v3360 = vsel %vm3350, nan, %v3359
      %v3361 = vand.u32 2147483647, %v1917
      %vm3362 = vcmp.le.f32.partialorder %v3361, 0.7853982
      %vm3363 = vcmp.lt.s32.totalorder %v1917, 0
      %v3364 = vand.u32 %v1917, 2139095040
      %v3365 = vshrl.u32 %v3364, 23
      %v3366 = vsub.s32 %v3365, 127
      %v3367 = vand.u32 2147483647, %v1917
      %v3368 = vand.u32 %v3367, 8388607
      %v3369 = vor.u32 %v3368, 8388608
      %v3370 = vsub.s32 0, %v3369
      %v3371 = vadd.s32 %v3366, 1
      %vm3372 = vcmp.gt.s32.totalorder %v3371, 0
      %v3373 = vsel %vm3372, %v3371, 0
      %v3374 = vshrl.u32 %v3373, 5
      %v3375 = vand.u32 %v3373, 31
      %v3376 = vsub.s32 32, %v3375
      %v3377 = vshrl.u32 683565275, %v3376
      %v3378 = vshll.u32 683565275, %v3375
      %v3379 = vshrl.u32 2475754826, %v3376
      %v3380 = vor.u32 %v3378, %v3379
      %v3381 = vshll.u32 2475754826, %v3375
      %v3382 = vshrl.u32 2131351028, %v3376
      %v3383 = vor.u32 %v3381, %v3382
      %v3384 = vshll.u32 2131351028, %v3375
      %v3385 = vshrl.u32 2102212464, %v3376
      %v3386 = vor.u32 %v3384, %v3385
      %v3387 = vshll.u32 2102212464, %v3375
      %v3388 = vshrl.u32 920167782, %v3376
      %v3389 = vor.u32 %v3387, %v3388
      %v3390 = vshll.u32 920167782, %v3375
      %v3391 = vshrl.u32 1326507024, %v3376
      %v3392 = vor.u32 %v3390, %v3391
      %vm3393 = vcmp.lt.s32.totalorder %v3374, 1
      %vm3394 = vcmp.lt.s32.totalorder %v3374, 2
      %vm3395 = vcmp.lt.s32.totalorder %v3374, 3
      %vm3396 = vcmp.lt.s32.totalorder %v3374, 4
      %v3397 = vsel %vm3393, %v3377, %v3380
      %v3398 = vsel %vm3396, %v3386, 2102212464
      %v3399 = vsel %vm3395, %v3383, %v3398
      %v3400 = vsel %vm3394, %v3397, %v3399
      %v3401 = vsel %vm3393, %v3380, %v3383
      %v3402 = vsel %vm3396, %v3389, 920167782
      %v3403 = vsel %vm3395, %v3386, %v3402
      %v3404 = vsel %vm3394, %v3401, %v3403
      %v3405 = vsel %vm3393, %v3383, %v3386
      %v3406 = vsel %vm3396, %v3392, 1326507024
      %v3407 = vsel %vm3395, %v3389, %v3406
      %v3408 = vsel %vm3394, %v3405, %v3407
      %v3409 = vshll.u32 %v3369, 8
      %v3410 = vmul.u32.u64.compose %v3409, %v3408
      %v3411 = vextract.low.u32 %v3410
      %v3412 = vextract.high.u32 %v3410
      %v3413 = vmul.u32.u64.compose %v3409, %v3404
      %v3414 = vextract.low.u32 %v3413
      %v3415 = vextract.high.u32 %v3413
      %v3416 = vmul.u32 %v3409, %v3400
      %v3417 = vadd.s32 %v3412, %v3414
      %vm3418 = vc.u32 %v3412, %v3414
      %v3419 = vadd.s32 %v3415, 1
      %v3420 = vsel %vm3418, %v3419, %v3415
      %v3421 = vadd.s32 %v3416, %v3420
      %v3422 = vadd.s32 %v3421, 536870912
      %v3423 = vshrl.u32 %v3422, 30
      %v3424 = vshll.u32 %v3423, 30
      %v3425 = vsub.s32 %v3421, %v3424
      %vm3426 = vcmp.lt.s32.totalorder %v3425, 0
      %v3427 = vsub.s32 0, %v3425
      %v3428 = vsel %vm3426, %v3427, %v3425
      %v3429 = vclz %v3428
      %v3430 = vsub.s32 %v3429, 2
      %vm3431 = vcmp.gt.s32.totalorder 0, %v3430
      %v3432 = vsel %vm3431, 0, %v3430
      %v3433 = vsub.s32 32, %v3432
      %v3434 = vshll.u32 %v3425, %v3432
      %v3435 = vshrl.u32 %v3417, %v3433
      %v3436 = vor.u32 %v3434, %v3435
      %v3437 = vsub.s32 4294967266, %v3432
      %v3438 = vadd.s32 %v3437, 127
      %v3439 = vshll.u32 %v3438, 23
      %v3440 = vor.u32 4788187, %v3439
      %v3441 = vand.u32 2147483647, %v3440
      %v3443 = vcvt.s32.f32 %v3436
      %v3444 = vmul.f32 %v3443, %v3441
      %v3445 = vxor.u32 %v3444, 2147483648
      %v3446 = vsel %vm3363, %v3445, %v3444
      %v3447 = vsub.s32 4, %v3423
      %v3448 = vsel %vm3363, %v3447, %v3423
      %v3449 = vsel %vm3362, %v1917, %v3446
      %v3450 = vsel %vm3362, 0, %v3448
      %v3451 = vcosq.f32.pop %v3449
      %v3452 = vsinq.f32.pop %v3449
      %vm3453 = vweird.f32 %v1917
      %v3454 = vand.u32 %v3450, 3
      %vm3455 = vcmp.lt.s32.totalorder %v3454, 2
      %vm3456 = vcmp.eq.s32.totalorder %v3454, 0
      %v3457 = vxor.u32 %v3452, 2147483648
      %v3458 = vsel %vm3456, %v3451, %v3457
      %vm3459 = vcmp.eq.s32.totalorder %v3454, 2
      %v3460 = vxor.u32 %v3451, 2147483648
      %v3461 = vsel %vm3459, %v3460, %v3452
      %v3462 = vsel %vm3455, %v3458, %v3461
      %v3463 = vsel %vm3453, nan, %v3462
      %v3464 = vand.u32 2147483647, %v1918
      %vm3465 = vcmp.le.f32.partialorder %v3464, 0.7853982
      %vm3466 = vcmp.lt.s32.totalorder %v1918, 0
      %v3467 = vand.u32 %v1918, 2139095040
      %v3468 = vshrl.u32 %v3467, 23
      %v3469 = vsub.s32 %v3468, 127
      %v3470 = vand.u32 2147483647, %v1918
      %v3471 = vand.u32 %v3470, 8388607
      %v3472 = vor.u32 %v3471, 8388608
      %v3473 = vsub.s32 0, %v3472
      %v3474 = vadd.s32 %v3469, 1
      %vm3475 = vcmp.gt.s32.totalorder %v3474, 0
      %v3476 = vsel %vm3475, %v3474, 0
      %v3477 = vshrl.u32 %v3476, 5
      %v3478 = vand.u32 %v3476, 31
      %v3479 = vsub.s32 32, %v3478
      %v3480 = vshrl.u32 683565275, %v3479
      %v3481 = vshll.u32 683565275, %v3478
      %v3482 = vshrl.u32 2475754826, %v3479
      %v3483 = vor.u32 %v3481, %v3482
      %v3484 = vshll.u32 2475754826, %v3478
      %v3485 = vshrl.u32 2131351028, %v3479
      %v3486 = vor.u32 %v3484, %v3485
      %v3487 = vshll.u32 2131351028, %v3478
      %v3488 = vshrl.u32 2102212464, %v3479
      %v3489 = vor.u32 %v3487, %v3488
      %v3490 = vshll.u32 2102212464, %v3478
      %v3491 = vshrl.u32 920167782, %v3479
      %v3492 = vor.u32 %v3490, %v3491
      %v3493 = vshll.u32 920167782, %v3478
      %v3494 = vshrl.u32 1326507024, %v3479
      %v3495 = vor.u32 %v3493, %v3494
      %vm3496 = vcmp.lt.s32.totalorder %v3477, 1
      %vm3497 = vcmp.lt.s32.totalorder %v3477, 2
      %vm3498 = vcmp.lt.s32.totalorder %v3477, 3
      %vm3499 = vcmp.lt.s32.totalorder %v3477, 4
      %v3500 = vsel %vm3496, %v3480, %v3483
      %v3501 = vsel %vm3499, %v3489, 2102212464
      %v3502 = vsel %vm3498, %v3486, %v3501
      %v3503 = vsel %vm3497, %v3500, %v3502
      %v3504 = vsel %vm3496, %v3483, %v3486
      %v3505 = vsel %vm3499, %v3492, 920167782
      %v3506 = vsel %vm3498, %v3489, %v3505
      %v3507 = vsel %vm3497, %v3504, %v3506
      %v3508 = vsel %vm3496, %v3486, %v3489
      %v3509 = vsel %vm3499, %v3495, 1326507024
      %v3510 = vsel %vm3498, %v3492, %v3509
      %v3511 = vsel %vm3497, %v3508, %v3510
      %v3512 = vshll.u32 %v3472, 8
      %v3513 = vmul.u32.u64.compose %v3512, %v3511
      %v3514 = vextract.low.u32 %v3513
      %v3515 = vextract.high.u32 %v3513
      %v3516 = vmul.u32.u64.compose %v3512, %v3507
      %v3517 = vextract.low.u32 %v3516
      %v3518 = vextract.high.u32 %v3516
      %v3519 = vmul.u32 %v3512, %v3503
      %v3520 = vadd.s32 %v3515, %v3517
      %vm3521 = vc.u32 %v3515, %v3517
      %v3522 = vadd.s32 %v3518, 1
      %v3523 = vsel %vm3521, %v3522, %v3518
      %v3524 = vadd.s32 %v3519, %v3523
      %v3525 = vadd.s32 %v3524, 536870912
      %v3526 = vshrl.u32 %v3525, 30
      %v3527 = vshll.u32 %v3526, 30
      %v3528 = vsub.s32 %v3524, %v3527
      %vm3529 = vcmp.lt.s32.totalorder %v3528, 0
      %v3530 = vsub.s32 0, %v3528
      %v3531 = vsel %vm3529, %v3530, %v3528
      %v3532 = vclz %v3531
      %v3533 = vsub.s32 %v3532, 2
      %vm3534 = vcmp.gt.s32.totalorder 0, %v3533
      %v3535 = vsel %vm3534, 0, %v3533
      %v3536 = vsub.s32 32, %v3535
      %v3537 = vshll.u32 %v3528, %v3535
      %v3538 = vshrl.u32 %v3520, %v3536
      %v3539 = vor.u32 %v3537, %v3538
      %v3540 = vsub.s32 4294967266, %v3535
      %v3541 = vadd.s32 %v3540, 127
      %v3542 = vshll.u32 %v3541, 23
      %v3543 = vor.u32 4788187, %v3542
      %v3544 = vand.u32 2147483647, %v3543
      %v3546 = vcvt.s32.f32 %v3539
      %v3547 = vmul.f32 %v3546, %v3544
      %v3548 = vxor.u32 %v3547, 2147483648
      %v3549 = vsel %vm3466, %v3548, %v3547
      %v3550 = vsub.s32 4, %v3526
      %v3551 = vsel %vm3466, %v3550, %v3526
      %v3552 = vsel %vm3465, %v1918, %v3549
      %v3553 = vsel %vm3465, 0, %v3551
      %v3554 = vcosq.f32.pop %v3552
      %v3555 = vsinq.f32.pop %v3552
      %vm3556 = vweird.f32 %v1918
      %v3557 = vand.u32 %v3553, 3
      %vm3558 = vcmp.lt.s32.totalorder %v3557, 2
      %vm3559 = vcmp.eq.s32.totalorder %v3557, 0
      %v3560 = vxor.u32 %v3555, 2147483648
      %v3561 = vsel %vm3559, %v3554, %v3560
      %vm3562 = vcmp.eq.s32.totalorder %v3557, 2
      %v3563 = vxor.u32 %v3554, 2147483648
      %v3564 = vsel %vm3562, %v3563, %v3555
      %v3565 = vsel %vm3558, %v3561, %v3564
      %v3566 = vsel %vm3556, nan, %v3565
      %v3567 = vadd.f32 %v342, %v2021
      %v3568 = vadd.f32 %v446, %v2124
      %v3569 = vadd.f32 %v550, %v2227
      %v3570 = vadd.f32 %v654, %v2330
      %v3571 = vadd.f32 %v758, %v2433
      %v3572 = vadd.f32 %v862, %v2536
      %v3573 = vadd.f32 %v966, %v2639
      %v3574 = vadd.f32 %v1070, %v2742
      %v3575 = vadd.f32 %v1174, %v2845
      %v3576 = vadd.f32 %v1278, %v2948
      %v3577 = vadd.f32 %v1382, %v3051
      %v3578 = vadd.f32 %v1486, %v3154
      %v3579 = vadd.f32 %v1590, %v3257
      %v3580 = vadd.f32 %v1694, %v3360
      %v3581 = vadd.f32 %v1798, %v3463
      %v3582 = vadd.f32 %v1902, %v3566
      %v3583 = vld [vmem:[%s2] sm:$0xff]
      %v3584 = vld [vmem:[%s2 + $0x8] sm:$0xff]
      %v3585 = vld [vmem:[%s2 + $0x10] sm:$0xff]
      %v3586 = vld [vmem:[%s2 + $0x18] sm:$0xff]
      %v3587 = vld [vmem:[%s2 + $0x20] sm:$0xff]
      %v3588 = vld [vmem:[%s2 + $0x28] sm:$0xff]
      %v3589 = vld [vmem:[%s2 + $0x30] sm:$0xff]
      %v3590 = vld [vmem:[%s2 + $0x38] sm:$0xff]
      %v3591 = vld [vmem:[%s3] sm:$0x1]
      %v3593 = vlaneseq
      %v3594 = vshrl.u32 %v3593, 7
      %v3595 = vsub.s32 0, %v3594
      %v3596 = vrot.slane %v3591, %v3595
      %vm3598 = vcmask 523264
      %v3600 = vsel %vm3598, %v3567, 0
      %v3603 = vsel %vm3598, %v3568, 0
      %v3606 = vsel %vm3598, %v3569, 0
      %v3609 = vsel %vm3598, %v3570, 0
      %v3612 = vsel %vm3598, %v3571, 0
      %v3615 = vsel %vm3598, %v3572, 0
      %v3618 = vsel %vm3598, %v3573, 0
      %v3621 = vsel %vm3598, %v3574, 0
      %v3624 = vsel %vm3598, %v3575, 0
      %v3627 = vsel %vm3598, %v3576, 0
      %v3630 = vsel %vm3598, %v3577, 0
      %v3633 = vsel %vm3598, %v3578, 0
      %v3636 = vsel %vm3598, %v3579, 0
      %v3639 = vsel %vm3598, %v3580, 0
      %v3642 = vsel %vm3598, %v3581, 0
      %v3645 = vsel %vm3598, %v3582, 0
      %3647 = vmatprep.subr.mxu0 0.0
      %3648 = vmatpush1.msra.mxu0 %v3583
      %3649 = vmatprep.subr.mxu0 0.0
      %3650 = vmatpush1.msra.mxu0 %v3584
      %3651 = vmatprep.subr.mxu0 0.0
      %3652 = vmatpush1.msra.mxu0 %v3585
      %3653 = vmatprep.subr.mxu0 0.0
      %3654 = vmatpush1.msra.mxu0 %v3586
      %3655 = vmatprep.subr.mxu0 0.0
      %3656 = vmatpush1.msra.mxu0 %v3587
      %3657 = vmatprep.subr.mxu0 0.0
      %3658 = vmatpush1.msra.mxu0 %v3588
      %3659 = vmatprep.subr.mxu0 0.0
      %3660 = vmatpush1.msra.mxu0 %v3589
      %3661 = vmatprep.subr.mxu0 0.0
      %3662 = vmatpush1.msra.mxu0 %v3590
      %3663 = vmatprep.subr.mxu0 0.0
      %3664 = vmatpush1.msra.mxu0 0.0
      %3665 = vmatprep.subr.mxu0 0.0
      %3666 = vmatpush1.msra.mxu0 0.0
      %3667 = vmatprep.subr.mxu0 0.0
      %3668 = vmatpush1.msra.mxu0 0.0
      %3669 = vmatprep.subr.mxu0 0.0
      %3670 = vmatpush1.msra.mxu0 0.0
      %3671 = vmatprep.subr.mxu0 0.0
      %3672 = vmatpush1.msra.mxu0 0.0
      %3673 = vmatprep.subr.mxu0 0.0
      %3674 = vmatpush1.msra.mxu0 0.0
      %3675 = vmatprep.subr.mxu0 0.0
      %3676 = vmatpush1.msra.mxu0 0.0
      %3677 = vmatprep.subr.mxu0 0.0
      %3678 = vmatpush1.msra.mxu0 0.0
      %3679 = vmatprep.subr.mxu0 0.0
      %3680 = vmatpush1.msra.mxu0 0.0
      %3681 = vmatprep.subr.mxu0 0.0
      %3682 = vmatpush1.msra.mxu0 0.0
      %3683 = vmatprep.subr.mxu0 0.0
      %3684 = vmatpush1.msra.mxu0 0.0
      %3685 = vmatprep.subr.mxu0 0.0
      %3686 = vmatpush1.msra.mxu0 0.0
      %3687 = vmatprep.subr.mxu0 0.0
      %3688 = vmatpush1.msra.mxu0 0.0
      %3689 = vmatprep.subr.mxu0 0.0
      %3690 = vmatpush1.msra.mxu0 0.0
      %3691 = vmatprep.subr.mxu0 0.0
      %3692 = vmatpush1.msra.mxu0 0.0
      %3693 = vmatprep.subr.mxu0 0.0
      %3694 = vmatpush1.msra.mxu0 0.0
      %3695 = vmatprep.subr.mxu0 0.0
      %3696 = vmatpush1.msra.mxu0 0.0
      %3697 = vmatprep.subr.mxu0 0.0
      %3698 = vmatpush1.msra.mxu0 0.0
      %3699 = vmatprep.subr.mxu0 0.0
      %3700 = vmatpush1.msra.mxu0 0.0
      %3701 = vmatprep.subr.mxu0 0.0
      %3702 = vmatpush1.msra.mxu0 0.0
      %3703 = vmatprep.subr.mxu0 0.0
      %3704 = vmatpush1.msra.mxu0 0.0
      %3705 = vmatprep.subr.mxu0 0.0
      %3706 = vmatpush1.msra.mxu0 0.0
      %3707 = vmatprep.subr.mxu0 0.0
      %3708 = vmatpush1.msra.mxu0 0.0
      %3709 = vmatprep.subr.mxu0 0.0
      %3710 = vmatpush1.msra.mxu0 0.0
      %3711 = vmatprep.mubr.f32.mxu0 0.0
      %3712 = vmatmul.mubr.f32.gmra.mrb[0].mxu0 %v3600
      %v3713 = vpop.f32.mrb[0].mxu0
      %v3714 = vadd.f32 %v3596, %v3713
      %v3715 = vpop.f32.mrb[0].mxu0
      %3716 = vmatprep.mubr.f32.mxu0 0.0
      %3717 = vmatmul.mubr.f32.gmra.mrb[0].mxu0 %v3603
      %v3718 = vpop.f32.mrb[0].mxu0
      %v3719 = vadd.f32 %v3596, %v3718
      %v3720 = vpop.f32.mrb[0].mxu0
      %3721 = vmatprep.mubr.f32.mxu0 0.0
      %3722 = vmatmul.mubr.f32.gmra.mrb[0].mxu0 %v3606
      %v3723 = vpop.f32.mrb[0].mxu0
      %v3724 = vadd.f32 %v3596, %v3723
      %v3725 = vpop.f32.mrb[0].mxu0
      %3726 = vmatprep.mubr.f32.mxu0 0.0
      %3727 = vmatmul.mubr.f32.gmra.mrb[0].mxu0 %v3609
      %v3728 = vpop.f32.mrb[0].mxu0
      %v3729 = vadd.f32 %v3596, %v3728
      %v3730 = vpop.f32.mrb[0].mxu0
      %3731 = vmatprep.mubr.f32.mxu0 0.0
      %3732 = vmatmul.mubr.f32.gmra.mrb[0].mxu0 %v3612
      %v3733 = vpop.f32.mrb[0].mxu0
      %v3734 = vadd.f32 %v3596, %v3733
      %v3735 = vpop.f32.mrb[0].mxu0
      %3736 = vmatprep.mubr.f32.mxu0 0.0
      %3737 = vmatmul.mubr.f32.gmra.mrb[0].mxu0 %v3615
      %v3738 = vpop.f32.mrb[0].mxu0
      %v3739 = vadd.f32 %v3596, %v3738
      %v3740 = vpop.f32.mrb[0].mxu0
      %3741 = vmatprep.mubr.f32.mxu0 0.0
      %3742 = vmatmul.mubr.f32.gmra.mrb[0].mxu0 %v3618
      %v3743 = vpop.f32.mrb[0].mxu0
      %v3744 = vadd.f32 %v3596, %v3743
      %v3745 = vpop.f32.mrb[0].mxu0
      %3746 = vmatprep.mubr.f32.mxu0 0.0
      %3747 = vmatmul.mubr.f32.gmra.mrb[0].mxu0 %v3621
      %v3748 = vpop.f32.mrb[0].mxu0
      %v3749 = vadd.f32 %v3596, %v3748
      %v3750 = vpop.f32.mrb[0].mxu0
      %3751 = vmatprep.mubr.f32.mxu0 0.0
      %3752 = vmatmul.mubr.f32.gmra.mrb[0].mxu0 %v3624
      %v3753 = vpop.f32.mrb[0].mxu0
      %v3754 = vadd.f32 %v3596, %v3753
      %v3755 = vpop.f32.mrb[0].mxu0
      %3756 = vmatprep.mubr.f32.mxu0 0.0
      %3757 = vmatmul.mubr.f32.gmra.mrb[0].mxu0 %v3627
      %v3758 = vpop.f32.mrb[0].mxu0
      %v3759 = vadd.f32 %v3596, %v3758
      %v3760 = vpop.f32.mrb[0].mxu0
      %3761 = vmatprep.mubr.f32.mxu0 0.0
      %3762 = vmatmul.mubr.f32.gmra.mrb[0].mxu0 %v3630
      %v3763 = vpop.f32.mrb[0].mxu0
      %v3764 = vadd.f32 %v3596, %v3763
      %v3765 = vpop.f32.mrb[0].mxu0
      %3766 = vmatprep.mubr.f32.mxu0 0.0
      %3767 = vmatmul.mubr.f32.gmra.mrb[0].mxu0 %v3633
      %v3768 = vpop.f32.mrb[0].mxu0
      %v3769 = vadd.f32 %v3596, %v3768
      %v3770 = vpop.f32.mrb[0].mxu0
      %3771 = vmatprep.mubr.f32.mxu0 0.0
      %3772 = vmatmul.mubr.f32.gmra.mrb[0].mxu0 %v3636
      %v3773 = vpop.f32.mrb[0].mxu0
      %v3774 = vadd.f32 %v3596, %v3773
      %v3775 = vpop.f32.mrb[0].mxu0
      %3776 = vmatprep.mubr.f32.mxu0 0.0
      %3777 = vmatmul.mubr.f32.gmra.mrb[0].mxu0 %v3639
      %v3778 = vpop.f32.mrb[0].mxu0
      %v3779 = vadd.f32 %v3596, %v3778
      %v3780 = vpop.f32.mrb[0].mxu0
      %3781 = vmatprep.mubr.f32.mxu0 0.0
      %3782 = vmatmul.mubr.f32.gmra.mrb[0].mxu0 %v3642
      %v3783 = vpop.f32.mrb[0].mxu0
      %v3784 = vadd.f32 %v3596, %v3783
      %v3785 = vpop.f32.mrb[0].mxu0
      %3786 = vmatprep.mubr.f32.mxu0 0.0
      %3787 = vmatmul.mubr.f32.gmra.mrb[0].mxu0 %v3645
      %v3788 = vpop.f32.mrb[0].mxu0
      %v3789 = vadd.f32 %v3596, %v3788
      %v3790 = vpop.f32.mrb[0].mxu0
      %3791 = vdwg.mxu0
      %vm3792 = vcmask 80896
      %3793 = vst.msk [vmem:[%s221] sm:$0xff] %vm3792, %v3714
      %3794 = vst.msk [vmem:[%s221 + $0x8] sm:$0xff] %vm3792, %v3719
      %3795 = vst.msk [vmem:[%s221 + $0x10] sm:$0xff] %vm3792, %v3724
      %3796 = vst.msk [vmem:[%s221 + $0x18] sm:$0xff] %vm3792, %v3729
      %3797 = vst.msk [vmem:[%s221 + $0x20] sm:$0xff] %vm3792, %v3734
      %3798 = vst.msk [vmem:[%s221 + $0x28] sm:$0xff] %vm3792, %v3739
      %3799 = vst.msk [vmem:[%s221 + $0x30] sm:$0xff] %vm3792, %v3744
      %3800 = vst.msk [vmem:[%s221 + $0x38] sm:$0xff] %vm3792, %v3749
      %3801 = vst.msk [vmem:[%s221 + $0x40] sm:$0xff] %vm3792, %v3754
      %3802 = vst.msk [vmem:[%s221 + $0x48] sm:$0xff] %vm3792, %v3759
      %3803 = vst.msk [vmem:[%s221 + $0x50] sm:$0xff] %vm3792, %v3764
      %3804 = vst.msk [vmem:[%s221 + $0x58] sm:$0xff] %vm3792, %v3769
      %3805 = vst.msk [vmem:[%s221 + $0x60] sm:$0xff] %vm3792, %v3774
      %3806 = vst.msk [vmem:[%s221 + $0x68] sm:$0xff] %vm3792, %v3779
      %3807 = vst.msk [vmem:[%s221 + $0x70] sm:$0xff] %vm3792, %v3784
      %3808 = vst.msk [vmem:[%s221 + $0x78] sm:$0xff] %vm3792, %v3789
      %s3809 = smul.u32 16, %s15
      %p3810 = scmp.lt.s32.totalorder %s3809, 31
      %s3811 = scalar_select %p3810, %s3809, 31
      %s3812 = smul.addr %s3811, 8
      %s3813 = scalar_lea.vmem %s4, %s3812
      // Predicated region
      $region37: #{tpu_custom_call.1} parent=35 // pred_check
        %p3814 = pneg %p127
      $region38: #{tpu_custom_call.1} parent=35 // pred_check_branch
        %3816 = sbr.rel (%p3814) target = $region40
      $region39: #{tpu_custom_call.1} parent=35 // pred_region
        %s3817 = smul.u32 16, %s15
      $region40: #{tpu_custom_call.1} parent=35 // pred_fallthru
        _
    $region36: #{tpu_custom_call.1} parent=5 // pred_fallthru
      _
    %p3818 = scmp.le.s32.totalorder 2, %s10
    // Predicated region
    $region41: #{tpu_custom_call.1} parent=5 // pred_check
      %p3819 = pneg %p3818
    $region42: #{tpu_custom_call.1} parent=5 // pred_check_branch
      %3821 = sbr.rel (%p3819) target = $region44
    $region43: #{tpu_custom_call.1} parent=5 // pred_region
      %s3822 = ssub.s32 %s10, 2
      // Predicated region
      $region45: #{tpu_custom_call.1} parent=43 // pred_check
        %p3823 = pneg %p133
      $region46: #{tpu_custom_call.1} parent=43 // pred_check_branch
        %3825 = sbr.rel (%p3823) target = $region48
      $region47: #{tpu_custom_call.1} parent=43 // pred_region
        %s3826 = smul.u32 16, %s16
        %p3827 = scmp.lt.s32.totalorder %s3826, 31
        %s3828 = scalar_select %p3827, %s3826, 31
        %s3829 = smul.addr %s3828, 8
        %s3830 = scalar_lea.vmem %s4, %s3829
      $region48: #{tpu_custom_call.1} parent=43 // pred_fallthru
        _
    $region44: #{tpu_custom_call.1} parent=5 // pred_fallthru
      _
  $region6: #{tpu_custom_call.1} parent=0 // loop_footer
    %s14 = sadd.s32 1, %s10
  $region7: #{tpu_custom_call.1} parent=0 // loop_footer_branch
    %9 = sbr.rel target = $region3
  $region8: #{tpu_custom_call.1} parent=0 // loop_exit
    _

</llo_original>
